<compile_context>
chip_gen: v5e
topology: v5e:2x2
jax: 0.10.0
libtpu: 0.0.40
codegen_flags: <defaults>
</compile_context>

<pallas_src>
import functools

import jax
import jax.numpy as jnp
from jax.experimental import pallas as pl
from jax.experimental.pallas import tpu as pltpu

COMPUTE_DTYPE = jnp.bfloat16        # MXU operand / inter-layer activation dtype


def _round_up(x, m):
    return (x + m - 1) // m * m


# ----------------------------------------------------------------------------
# Fused GEMM kernel:  out = act( X @ W + shift [+ residual] )
#   (BN scale is already folded into W; accumulate in f32 on the MXU.)
# ----------------------------------------------------------------------------
def _fused_matmul_kernel(*refs, activation, has_residual):
    if has_residual:
        x_ref, w_ref, shift_ref, res_ref, o_ref = refs
    else:
        x_ref, w_ref, shift_ref, o_ref = refs
        res_ref = None

    acc = jnp.dot(x_ref[...], w_ref[...], preferred_element_type=jnp.float32)
    y = acc + shift_ref[...]                     # f32 epilogue (v5e-safe)
    if has_residual:
        y = y + res_ref[...].astype(jnp.float32)
    if activation == "relu":
        y = jnp.maximum(y, 0.0)
    elif activation == "tanh":
        y = jnp.tanh(y)
    o_ref[...] = y.astype(o_ref.dtype)


def fused_matmul(x, w, shift, activation="none", residual=None):
    """x: (M, K), w: (K, N), shift: (N,), residual: (M, N) or None.

    Single-shot-K bf16 GEMM with fused shift / residual / activation epilogue.
    Returns (M, N) in COMPUTE_DTYPE.
    """
    M, K = x.shape
    Kw, N = w.shape
    assert K == Kw

    tm = min(512, _round_up(M, 16))
    tn = min(512, _round_up(N, 128))
    Mp, Kp, Np = _round_up(M, tm), _round_up(K, 128), _round_up(N, 128 if tn == 128 else tn)
    Np = _round_up(Np, tn)

    xp = jnp.pad(x.astype(COMPUTE_DTYPE), ((0, Mp - M), (0, Kp - K)))
    wp = jnp.pad(w.astype(COMPUTE_DTYPE), ((0, Kp - K), (0, Np - N)))
    sp = jnp.pad(shift.astype(jnp.float32), (0, Np - N)).reshape(1, Np)

    has_res = residual is not None
    operands = [xp, wp, sp]
    in_specs = [
        pl.BlockSpec((tm, Kp), lambda i, j: (i, 0)),
        pl.BlockSpec((Kp, tn), lambda i, j: (0, j)),
        pl.BlockSpec((1, tn), lambda i, j: (0, j)),
    ]
    if has_res:
        rp = jnp.pad(residual.astype(COMPUTE_DTYPE), ((0, Mp - M), (0, Np - N)))
        operands.append(rp)
        in_specs.append(pl.BlockSpec((tm, tn), lambda i, j: (i, j)))

    kernel = functools.partial(_fused_matmul_kernel,
                               activation=activation, has_residual=has_res)

    flops = int(2 * Mp * Np * Kp)
    transcendentals = int(Mp * Np) if activation == "tanh" else 0
    bytes_accessed = int(2 * (Mp * Kp + Kp * Np + Mp * Np * (2 if has_res else 1))
                         + 4 * Np)

    out = pl.pallas_call(
        kernel,
        out_shape=jax.ShapeDtypeStruct((Mp, Np), COMPUTE_DTYPE),
        grid_spec=pltpu.PrefetchScalarGridSpec(
            num_scalar_prefetch=0,
            grid=(Mp // tm, Np // tn),
            in_specs=in_specs,
            out_specs=pl.BlockSpec((tm, tn), lambda i, j: (i, j)),
        ),
        compiler_params=pltpu.CompilerParams(
            dimension_semantics=("parallel", "parallel"),
            vmem_limit_bytes=48 * 1024 * 1024),
        cost_estimate=pl.CostEstimate(flops=flops,
                                      transcendentals=transcendentals,
                                      bytes_accessed=bytes_accessed),
    )(*operands)
    return out[:M, :N]


# ----------------------------------------------------------------------------
# Conv / ConvTranspose wrappers (padding + im2col are pure-JAX glue in bf16)
# ----------------------------------------------------------------------------
def _im2col(x, kh, kw, stride):
    N, H, W, C = x.shape
    Ho = (H - kh) // stride + 1
    Wo = (W - kw) // stride + 1
    cols = []
    for i in range(kh):
        for j in range(kw):
            cols.append(x[:, i:i + (Ho - 1) * stride + 1:stride,
                            j:j + (Wo - 1) * stride + 1:stride, :])
    patches = jnp.stack(cols, axis=3)                 # (N, Ho, Wo, kh*kw, C)
    return patches.reshape(N * Ho * Wo, kh * kw * C), (N, Ho, Wo)


def conv2d_fused(x, layer, *, stride=1, pad=0, pad_mode="constant",
                 activation="none", residual=None):
    """x: NHWC (bf16).  layer: prepared conv dict (scale-folded GEMM weight)."""
    kh, kw = layer["kh"], layer["kw"]
    if pad > 0:
        x = jnp.pad(x, ((0, 0), (pad, pad), (pad, pad), (0, 0)), mode=pad_mode)
    patches, (N, Ho, Wo) = _im2col(x, kh, kw, stride)
    cout = layer["wmat"].shape[1]
    res2d = None if residual is None else residual.reshape(N * Ho * Wo, cout)
    y = fused_matmul(patches, layer["wmat"], layer["shift"], activation, res2d)
    return y.reshape(N, Ho, Wo, cout)


def conv_transpose2d_fused(x, layer, *, activation="none"):
    """Sub-pixel lowering of ConvTranspose2d(k=3, stride=2, pad=1, out_pad=1):
    one stride-1 2x2 conv (4*Cout channels) on x padded bottom/right by 1,
    followed by a pixel shuffle.  Fused BN shift + activation in the GEMM."""
    N, H, W, _ = x.shape
    xp = jnp.pad(x, ((0, 0), (0, 1), (0, 1), (0, 0)))
    y = conv2d_fused(xp, layer, stride=1, pad=0, activation=activation)
    cout = y.shape[-1] // 4
    y = y.reshape(N, H, W, 2, 2, cout)                       # (dr, dc) sub-pixels
    y = jnp.transpose(y, (0, 1, 3, 2, 4, 5)).reshape(N, 2 * H, 2 * W, cout)
    return y


# ----------------------------------------------------------------------------
# Parameter preparation (done ONCE, outside the per-forward path):
#   fold BN scale into the GEMM weight, pre-transpose/reshape, cast to bf16,
#   and build the sub-pixel weights for the transposed convs.
# ----------------------------------------------------------------------------
def prepare_conv_layer(w, scale=None, shift=None):
    """w: PyTorch Conv2d layout (Cout, Cin, kh, kw)."""
    Cout, Cin, kh, kw = w.shape
    wmat = jnp.transpose(w, (2, 3, 1, 0)).reshape(kh * kw * Cin, Cout)
    wmat = wmat.astype(jnp.float32)
    if scale is not None:
        wmat = wmat * scale[None, :]              # fold BN scale into weights
    sh = (shift.astype(jnp.float32) if shift is not None
          else jnp.zeros((Cout,), jnp.float32))
    return {"wmat": wmat.astype(COMPUTE_DTYPE), "shift": sh, "kh": kh, "kw": kw}


def prepare_deconv_layer(wt, scale, shift):
    """wt: PyTorch ConvTranspose2d layout (Cin, Cout, 3, 3) -> sub-pixel 2x2 conv
    with 4*Cout output channels (channel order: sub-pixel major, (dr, dc))."""
    Cin, Cout, kh, kw = wt.shape
    w_eq = jnp.transpose(wt[:, :, ::-1, ::-1], (1, 0, 2, 3))   # (Cout, Cin, 3, 3)
    w_big = jnp.zeros((4, Cout, Cin, 2, 2), jnp.float32)
    # out[2i,   2j  ] = x[i,j]*w_eq[1,1]
    w_big = w_big.at[0, :, :, 0, 0].set(w_eq[:, :, 1, 1])
    # out[2i,   2j+1] = x[i,j]*w_eq[1,0] + x[i,j+1]*w_eq[1,2]
    w_big = w_big.at[1, :, :, 0, 0].set(w_eq[:, :, 1, 0])
    w_big = w_big.at[1, :, :, 0, 1].set(w_eq[:, :, 1, 2])
    # out[2i+1, 2j  ] = x[i,j]*w_eq[0,1] + x[i+1,j]*w_eq[2,1]
    w_big = w_big.at[2, :, :, 0, 0].set(w_eq[:, :, 0, 1])
    w_big = w_big.at[2, :, :, 1, 0].set(w_eq[:, :, 2, 1])
    # out[2i+1, 2j+1] = 4-tap corner kernel
    w_big = w_big.at[3, :, :, 0, 0].set(w_eq[:, :, 0, 0])
    w_big = w_big.at[3, :, :, 0, 1].set(w_eq[:, :, 0, 2])
    w_big = w_big.at[3, :, :, 1, 0].set(w_eq[:, :, 2, 0])
    w_big = w_big.at[3, :, :, 1, 1].set(w_eq[:, :, 2, 2])
    w_big = w_big.reshape(4 * Cout, Cin, 2, 2)
    return prepare_conv_layer(w_big, jnp.tile(scale, 4), jnp.tile(shift, 4))


# ----------------------------------------------------------------------------
# Deterministic raw parameters (BatchNorm2d => conv bias=False except last conv)
# ----------------------------------------------------------------------------
def _conv_w(key, cout, cin, k):
    return 0.05 * jax.random.normal(key, (cout, cin, k, k), jnp.float32)


def _bn_params(key, c, eps=1e-5):
    k1, k2 = jax.random.split(key)
    gamma = 1.0 + 0.1 * jax.random.normal(k1, (c,), jnp.float32)
    beta = 0.1 * jax.random.normal(k2, (c,), jnp.float32)
    # eval-mode BN with running_mean=0, running_var=1
    scale = gamma / jnp.sqrt(1.0 + eps)
    shift = beta
    return scale, shift


def init_resnet_generator(key, input_ch, output_ch, ngf, n_blks):
    keys = iter(jax.random.split(key, 16 + 4 * n_blks))
    p = {}
    p["c1_w"] = _conv_w(next(keys), ngf, input_ch, 7)
    p["c1_bn"] = _bn_params(next(keys), ngf)
    p["d1_w"] = _conv_w(next(keys), ngf * 2, ngf, 3)
    p["d1_bn"] = _bn_params(next(keys), ngf * 2)
    p["d2_w"] = _conv_w(next(keys), ngf * 4, ngf * 2, 3)
    p["d2_bn"] = _bn_params(next(keys), ngf * 4)
    blocks = []
    for _ in range(n_blks):
        blocks.append({
            "w1": _conv_w(next(keys), ngf * 4, ngf * 4, 3),
            "bn1": _bn_params(next(keys), ngf * 4),
            "w2": _conv_w(next(keys), ngf * 4, ngf * 4, 3),
            "bn2": _bn_params(next(keys), ngf * 4),
        })
    p["blocks"] = blocks
    # ConvTranspose2d weights: (Cin, Cout, kh, kw)
    p["u1_w"] = 0.05 * jax.random.normal(next(keys), (ngf * 4, ngf * 2, 3, 3),
                                         jnp.float32)
    p["u1_bn"] = _bn_params(next(keys), ngf * 2)
    p["u2_w"] = 0.05 * jax.random.normal(next(keys), (ngf * 2, ngf, 3, 3),
                                         jnp.float32)
    p["u2_bn"] = _bn_params(next(keys), ngf)
    p["co_w"] = _conv_w(next(keys), output_ch, ngf, 7)   # final conv has bias=True
    p["co_b"] = 0.1 * jax.random.normal(next(keys), (output_ch,), jnp.float32)
    return p


def prepare_resnet_generator(p):
    prep = {}
    prep["c1"] = prepare_conv_layer(p["c1_w"], *p["c1_bn"])
    prep["d1"] = prepare_conv_layer(p["d1_w"], *p["d1_bn"])
    prep["d2"] = prepare_conv_layer(p["d2_w"], *p["d2_bn"])
    prep["blocks"] = [{"c1": prepare_conv_layer(b["w1"], *b["bn1"]),
                       "c2": prepare_conv_layer(b["w2"], *b["bn2"])}
                      for b in p["blocks"]]
    prep["u1"] = prepare_deconv_layer(p["u1_w"], *p["u1_bn"])
    prep["u2"] = prepare_deconv_layer(p["u2_w"], *p["u2_bn"])
    prep["co"] = prepare_conv_layer(p["co_w"], shift=p["co_b"])
    return prep


# ----------------------------------------------------------------------------
# Forward pass (matches nn.Sequential of ResNetGenerator, padding_type='reflect',
# norm_layer=BatchNorm2d (eval mode), use_dropout=False)
# ----------------------------------------------------------------------------
def resnet_generator_forward(prep, x_nchw):
    x = jnp.transpose(x_nchw, (0, 2, 3, 1)).astype(COMPUTE_DTYPE)  # NCHW -> NHWC

    # ReflectionPad2d(3) + Conv 7x7 + BN + ReLU
    x = conv2d_fused(x, prep["c1"], stride=1, pad=3, pad_mode="reflect",
                     activation="relu")
    # two stride-2 downsampling convs (zero pad 1) + BN + ReLU
    x = conv2d_fused(x, prep["d1"], stride=2, pad=1, activation="relu")
    x = conv2d_fused(x, prep["d2"], stride=2, pad=1, activation="relu")
    # ResNet blocks: reflect-pad conv+BN+ReLU, reflect-pad conv+BN, residual add
    for blk in prep["blocks"]:
        h = conv2d_fused(x, blk["c1"], stride=1, pad=1, pad_mode="reflect",
                         activation="relu")
        x = conv2d_fused(h, blk["c2"], stride=1, pad=1, pad_mode="reflect",
                         activation="none", residual=x)
    # two stride-2 transposed convs (sub-pixel lowering) + BN + ReLU
    x = conv_transpose2d_fused(x, prep["u1"], activation="relu")
    x = conv_transpose2d_fused(x, prep["u2"], activation="relu")
    # ReflectionPad2d(3) + Conv 7x7 (with bias) + Tanh
    x = conv2d_fused(x, prep["co"], stride=1, pad=3, pad_mode="reflect",
                     activation="tanh")
    return jnp.transpose(x, (0, 3, 1, 2)).astype(jnp.float32)      # NHWC -> NCHW


if __name__ == "__main__":
    key = jax.random.PRNGKey(0)
    kp, kx = jax.random.split(key)

    input_ch, output_ch, ngf, n_blks = 3, 3, 8, 2     # small synthetic config
    raw_params = init_resnet_generator(kp, input_ch, output_ch, ngf, n_blks)
    prep = prepare_resnet_generator(raw_params)        # once, outside forward
    x = jax.random.normal(kx, (2, input_ch, 16, 16), jnp.float32)

    fwd = jax.jit(functools.partial(resnet_generator_forward, prep))
    y = jax.block_until_ready(fwd(x))

    assert y.shape == (2, output_ch, 16, 16), y.shape
    assert bool(jnp.all(jnp.isfinite(y)))
    assert bool(jnp.all(jnp.abs(y) <= 1.0))           # tanh output range
    print("KERNEL_OK")
</pallas_src>

<mosaic_0001>
module attributes {stable_mosaic.version = 11 : i64} {
  func.func @_fused_matmul_kernel(%arg0: i32, %arg1: i32, %arg2: memref<512x256xbf16, #tpu.memory_space<vmem>>, %arg3: memref<256x128xbf16, #tpu.memory_space<vmem>>, %arg4: memref<1x128xf32, #tpu.memory_space<vmem>>, %arg5: memref<512x128xbf16, #tpu.memory_space<vmem>>) attributes {dimension_semantics = [#tpu.dimension_semantics<parallel>, #tpu.dimension_semantics<parallel>], iteration_bounds = array<i64: 1, 1>, scalar_prefetch = 0 : i64, scratch_operands = 0 : i64, tpu.core_type = #tpu.core_type<tc>, window_params = [{transform_indices = @transform_0, window_bounds = array<i64: 512, 256>}, {transform_indices = @transform_1, window_bounds = array<i64: 256, 128>}, {transform_indices = @transform_2, window_bounds = array<i64: 1, 128>}, {transform_indices = @transform_3, window_bounds = array<i64: 512, 128>}]} {
    %c0 = arith.constant 0 : index
    %c0_0 = arith.constant 0 : index
    %0 = vector.load %arg2[%c0, %c0_0] : memref<512x256xbf16, #tpu.memory_space<vmem>>, vector<512x256xbf16>
    %c0_1 = arith.constant 0 : index
    %c0_2 = arith.constant 0 : index
    %1 = vector.load %arg3[%c0_1, %c0_2] : memref<256x128xbf16, #tpu.memory_space<vmem>>, vector<256x128xbf16>
    %cst = arith.constant dense<0.000000e+00> : vector<512x128xf32>
    %2 = tpu.matmul %0, %1, %cst {dimension_numbers = #tpu.dot_dimension_numbers<[1], [0], [0], [1], [0, 0, 1, 1], [], []>} : vector<512x256xbf16>, vector<256x128xbf16>, vector<512x128xf32> -> vector<512x128xf32>
    %c0_3 = arith.constant 0 : index
    %c0_4 = arith.constant 0 : index
    %3 = vector.load %arg4[%c0_3, %c0_4] : memref<1x128xf32, #tpu.memory_space<vmem>>, vector<1x128xf32>
    %4 = vector.broadcast %3 : vector<1x128xf32> to vector<512x128xf32>
    %5 = arith.addf %2, %4 : vector<512x128xf32>
    %cst_5 = arith.constant 0.000000e+00 : f32
    %6 = vector.broadcast %cst_5 : f32 to vector<512x128xf32>
    %7 = arith.maximumf %5, %6 : vector<512x128xf32>
    %8 = arith.truncf %7 : vector<512x128xf32> to vector<512x128xbf16>
    %c0_6 = arith.constant 0 : index
    %c0_7 = arith.constant 0 : index
    %9 = vector.load %arg5[%c0_6, %c0_7] : memref<512x128xbf16, #tpu.memory_space<vmem>>, vector<512x128xbf16>
    tpu.vector_store %arg5[%c0_6, %c0_7], %8 {strides = array<i32>} : memref<512x128xbf16, #tpu.memory_space<vmem>>, vector<512x128xbf16>,
    return
  }
  func.func @transform_0(%arg0: i32, %arg1: i32) -> (i32, i32) {
    %c0_i32 = arith.constant 0 : i32
    %c0_i32_0 = arith.constant 0 : i32
    return %arg0, %c0_i32 : i32, i32
  }
  func.func @transform_1(%arg0: i32, %arg1: i32) -> (i32, i32) {
    %c0_i32 = arith.constant 0 : i32
    %c0_i32_0 = arith.constant 0 : i32
    return %c0_i32, %arg1 : i32, i32
  }
  func.func @transform_2(%arg0: i32, %arg1: i32) -> (i32, i32) {
    %c0_i32 = arith.constant 0 : i32
    %c0_i32_0 = arith.constant 0 : i32
    return %c0_i32, %arg1 : i32, i32
  }
  func.func @transform_3(%arg0: i32, %arg1: i32) -> (i32, i32) {
    %c0_i32 = arith.constant 0 : i32
    return %arg0, %arg1 : i32, i32
  }
}

module attributes {stable_mosaic.version = 11 : i64} {
  func.func @_fused_matmul_kernel(%arg0: i32, %arg1: i32, %arg2: memref<128x128xbf16, #tpu.memory_space<vmem>>, %arg3: memref<128x128xbf16, #tpu.memory_space<vmem>>, %arg4: memref<1x128xf32, #tpu.memory_space<vmem>>, %arg5: memref<128x128xbf16, #tpu.memory_space<vmem>>) attributes {dimension_semantics = [#tpu.dimension_semantics<parallel>, #tpu.dimension_semantics<parallel>], iteration_bounds = array<i64: 1, 1>, scalar_prefetch = 0 : i64, scratch_operands = 0 : i64, tpu.core_type = #tpu.core_type<tc>, window_params = [{transform_indices = @transform_0, window_bounds = array<i64: 128, 128>}, {transform_indices = @transform_1, window_bounds = array<i64: 128, 128>}, {transform_indices = @transform_2, window_bounds = array<i64: 1, 128>}, {transform_indices = @transform_3, window_bounds = array<i64: 128, 128>}]} {
    %c0 = arith.constant 0 : index
    %c0_0 = arith.constant 0 : index
    %0 = vector.load %arg2[%c0, %c0_0] : memref<128x128xbf16, #tpu.memory_space<vmem>>, vector<128x128xbf16>
    %c0_1 = arith.constant 0 : index
    %c0_2 = arith.constant 0 : index
    %1 = vector.load %arg3[%c0_1, %c0_2] : memref<128x128xbf16, #tpu.memory_space<vmem>>, vector<128x128xbf16>
    %cst = arith.constant dense<0.000000e+00> : vector<128x128xf32>
    %2 = tpu.matmul %0, %1, %cst {dimension_numbers = #tpu.dot_dimension_numbers<[1], [0], [0], [1], [0, 0, 1, 1], [], []>} : vector<128x128xbf16>, vector<128x128xbf16>, vector<128x128xf32> -> vector<128x128xf32>
    %c0_3 = arith.constant 0 : index
    %c0_4 = arith.constant 0 : index
    %3 = vector.load %arg4[%c0_3, %c0_4] : memref<1x128xf32, #tpu.memory_space<vmem>>, vector<1x128xf32>
    %4 = vector.broadcast %3 : vector<1x128xf32> to vector<128x128xf32>
    %5 = arith.addf %2, %4 : vector<128x128xf32>
    %cst_5 = arith.constant 0.000000e+00 : f32
    %6 = vector.broadcast %cst_5 : f32 to vector<128x128xf32>
    %7 = arith.maximumf %5, %6 : vector<128x128xf32>
    %8 = arith.truncf %7 : vector<128x128xf32> to vector<128x128xbf16>
    %c0_6 = arith.constant 0 : index
    %c0_7 = arith.constant 0 : index
    %9 = vector.load %arg5[%c0_6, %c0_7] : memref<128x128xbf16, #tpu.memory_space<vmem>>, vector<128x128xbf16>
    tpu.vector_store %arg5[%c0_6, %c0_7], %8 {strides = array<i32>} : memref<128x128xbf16, #tpu.memory_space<vmem>>, vector<128x128xbf16>,
    return
  }
  func.func @transform_0(%arg0: i32, %arg1: i32) -> (i32, i32) {
    %c0_i32 = arith.constant 0 : i32
    %c0_i32_0 = arith.constant 0 : i32
    return %arg0, %c0_i32 : i32, i32
  }
  func.func @transform_1(%arg0: i32, %arg1: i32) -> (i32, i32) {
    %c0_i32 = arith.constant 0 : i32
    %c0_i32_0 = arith.constant 0 : i32
    return %c0_i32, %arg1 : i32, i32
  }
  func.func @transform_2(%arg0: i32, %arg1: i32) -> (i32, i32) {
    %c0_i32 = arith.constant 0 : i32
    %c0_i32_0 = arith.constant 0 : i32
    return %c0_i32, %arg1 : i32, i32
  }
  func.func @transform_3(%arg0: i32, %arg1: i32) -> (i32, i32) {
    %c0_i32 = arith.constant 0 : i32
    return %arg0, %arg1 : i32, i32
  }
}

module attributes {stable_mosaic.version = 11 : i64} {
  func.func @_fused_matmul_kernel(%arg0: i32, %arg1: i32, %arg2: memref<32x256xbf16, #tpu.memory_space<vmem>>, %arg3: memref<256x128xbf16, #tpu.memory_space<vmem>>, %arg4: memref<1x128xf32, #tpu.memory_space<vmem>>, %arg5: memref<32x128xbf16, #tpu.memory_space<vmem>>) attributes {dimension_semantics = [#tpu.dimension_semantics<parallel>, #tpu.dimension_semantics<parallel>], iteration_bounds = array<i64: 1, 1>, scalar_prefetch = 0 : i64, scratch_operands = 0 : i64, tpu.core_type = #tpu.core_type<tc>, window_params = [{transform_indices = @transform_0, window_bounds = array<i64: 32, 256>}, {transform_indices = @transform_1, window_bounds = array<i64: 256, 128>}, {transform_indices = @transform_2, window_bounds = array<i64: 1, 128>}, {transform_indices = @transform_3, window_bounds = array<i64: 32, 128>}]} {
    %c0 = arith.constant 0 : index
    %c0_0 = arith.constant 0 : index
    %0 = vector.load %arg2[%c0, %c0_0] : memref<32x256xbf16, #tpu.memory_space<vmem>>, vector<32x256xbf16>
    %c0_1 = arith.constant 0 : index
    %c0_2 = arith.constant 0 : index
    %1 = vector.load %arg3[%c0_1, %c0_2] : memref<256x128xbf16, #tpu.memory_space<vmem>>, vector<256x128xbf16>
    %cst = arith.constant dense<0.000000e+00> : vector<32x128xf32>
    %2 = tpu.matmul %0, %1, %cst {dimension_numbers = #tpu.dot_dimension_numbers<[1], [0], [0], [1], [0, 0, 1, 1], [], []>} : vector<32x256xbf16>, vector<256x128xbf16>, vector<32x128xf32> -> vector<32x128xf32>
    %c0_3 = arith.constant 0 : index
    %c0_4 = arith.constant 0 : index
    %3 = vector.load %arg4[%c0_3, %c0_4] : memref<1x128xf32, #tpu.memory_space<vmem>>, vector<1x128xf32>
    %4 = vector.broadcast %3 : vector<1x128xf32> to vector<32x128xf32>
    %5 = arith.addf %2, %4 : vector<32x128xf32>
    %cst_5 = arith.constant 0.000000e+00 : f32
    %6 = vector.broadcast %cst_5 : f32 to vector<32x128xf32>
    %7 = arith.maximumf %5, %6 : vector<32x128xf32>
    %8 = arith.truncf %7 : vector<32x128xf32> to vector<32x128xbf16>
    %c0_6 = arith.constant 0 : index
    %c0_7 = arith.constant 0 : index
    %9 = vector.load %arg5[%c0_6, %c0_7] : memref<32x128xbf16, #tpu.memory_space<vmem>>, vector<32x128xbf16>
    tpu.vector_store %arg5[%c0_6, %c0_7], %8 {strides = array<i32>} : memref<32x128xbf16, #tpu.memory_space<vmem>>, vector<32x128xbf16>,
    return
  }
  func.func @transform_0(%arg0: i32, %arg1: i32) -> (i32, i32) {
    %c0_i32 = arith.constant 0 : i32
    %c0_i32_0 = arith.constant 0 : i32
    return %arg0, %c0_i32 : i32, i32
  }
  func.func @transform_1(%arg0: i32, %arg1: i32) -> (i32, i32) {
    %c0_i32 = arith.constant 0 : i32
    %c0_i32_0 = arith.constant 0 : i32
    return %c0_i32, %arg1 : i32, i32
  }
  func.func @transform_2(%arg0: i32, %arg1: i32) -> (i32, i32) {
    %c0_i32 = arith.constant 0 : i32
    %c0_i32_0 = arith.constant 0 : i32
    return %c0_i32, %arg1 : i32, i32
  }
  func.func @transform_3(%arg0: i32, %arg1: i32) -> (i32, i32) {
    %c0_i32 = arith.constant 0 : i32
    return %arg0, %arg1 : i32, i32
  }
}

module attributes {stable_mosaic.version = 11 : i64} {
  func.func @_fused_matmul_kernel(%arg0: i32, %arg1: i32, %arg2: memref<32x384xbf16, #tpu.memory_space<vmem>>, %arg3: memref<384x128xbf16, #tpu.memory_space<vmem>>, %arg4: memref<1x128xf32, #tpu.memory_space<vmem>>, %arg5: memref<32x128xbf16, #tpu.memory_space<vmem>>) attributes {dimension_semantics = [#tpu.dimension_semantics<parallel>, #tpu.dimension_semantics<parallel>], iteration_bounds = array<i64: 1, 1>, scalar_prefetch = 0 : i64, scratch_operands = 0 : i64, tpu.core_type = #tpu.core_type<tc>, window_params = [{transform_indices = @transform_0, window_bounds = array<i64: 32, 384>}, {transform_indices = @transform_1, window_bounds = array<i64: 384, 128>}, {transform_indices = @transform_2, window_bounds = array<i64: 1, 128>}, {transform_indices = @transform_3, window_bounds = array<i64: 32, 128>}]} {
    %c0 = arith.constant 0 : index
    %c0_0 = arith.constant 0 : index
    %0 = vector.load %arg2[%c0, %c0_0] : memref<32x384xbf16, #tpu.memory_space<vmem>>, vector<32x384xbf16>
    %c0_1 = arith.constant 0 : index
    %c0_2 = arith.constant 0 : index
    %1 = vector.load %arg3[%c0_1, %c0_2] : memref<384x128xbf16, #tpu.memory_space<vmem>>, vector<384x128xbf16>
    %cst = arith.constant dense<0.000000e+00> : vector<32x128xf32>
    %2 = tpu.matmul %0, %1, %cst {dimension_numbers = #tpu.dot_dimension_numbers<[1], [0], [0], [1], [0, 0, 1, 1], [], []>} : vector<32x384xbf16>, vector<384x128xbf16>, vector<32x128xf32> -> vector<32x128xf32>
    %c0_3 = arith.constant 0 : index
    %c0_4 = arith.constant 0 : index
    %3 = vector.load %arg4[%c0_3, %c0_4] : memref<1x128xf32, #tpu.memory_space<vmem>>, vector<1x128xf32>
    %4 = vector.broadcast %3 : vector<1x128xf32> to vector<32x128xf32>
    %5 = arith.addf %2, %4 : vector<32x128xf32>
    %cst_5 = arith.constant 0.000000e+00 : f32
    %6 = vector.broadcast %cst_5 : f32 to vector<32x128xf32>
    %7 = arith.maximumf %5, %6 : vector<32x128xf32>
    %8 = arith.truncf %7 : vector<32x128xf32> to vector<32x128xbf16>
    %c0_6 = arith.constant 0 : index
    %c0_7 = arith.constant 0 : index
    %9 = vector.load %arg5[%c0_6, %c0_7] : memref<32x128xbf16, #tpu.memory_space<vmem>>, vector<32x128xbf16>
    tpu.vector_store %arg5[%c0_6, %c0_7], %8 {strides = array<i32>} : memref<32x128xbf16, #tpu.memory_space<vmem>>, vector<32x128xbf16>,
    return
  }
  func.func @transform_0(%arg0: i32, %arg1: i32) -> (i32, i32) {
    %c0_i32 = arith.constant 0 : i32
    %c0_i32_0 = arith.constant 0 : i32
    return %arg0, %c0_i32 : i32, i32
  }
  func.func @transform_1(%arg0: i32, %arg1: i32) -> (i32, i32) {
    %c0_i32 = arith.constant 0 : i32
    %c0_i32_0 = arith.constant 0 : i32
    return %c0_i32, %arg1 : i32, i32
  }
  func.func @transform_2(%arg0: i32, %arg1: i32) -> (i32, i32) {
    %c0_i32 = arith.constant 0 : i32
    %c0_i32_0 = arith.constant 0 : i32
    return %c0_i32, %arg1 : i32, i32
  }
  func.func @transform_3(%arg0: i32, %arg1: i32) -> (i32, i32) {
    %c0_i32 = arith.constant 0 : i32
    return %arg0, %arg1 : i32, i32
  }
}

module attributes {stable_mosaic.version = 11 : i64} {
  func.func @_fused_matmul_kernel(%arg0: i32, %arg1: i32, %arg2: memref<32x384xbf16, #tpu.memory_space<vmem>>, %arg3: memref<384x128xbf16, #tpu.memory_space<vmem>>, %arg4: memref<1x128xf32, #tpu.memory_space<vmem>>, %arg5: memref<32x128xbf16, #tpu.memory_space<vmem>>, %arg6: memref<32x128xbf16, #tpu.memory_space<vmem>>) attributes {dimension_semantics = [#tpu.dimension_semantics<parallel>, #tpu.dimension_semantics<parallel>], iteration_bounds = array<i64: 1, 1>, scalar_prefetch = 0 : i64, scratch_operands = 0 : i64, tpu.core_type = #tpu.core_type<tc>, window_params = [{transform_indices = @transform_0, window_bounds = array<i64: 32, 384>}, {transform_indices = @transform_1, window_bounds = array<i64: 384, 128>}, {transform_indices = @transform_2, window_bounds = array<i64: 1, 128>}, {transform_indices = @transform_3, window_bounds = array<i64: 32, 128>}, {transform_indices = @transform_4, window_bounds = array<i64: 32, 128>}]} {
    %c0 = arith.constant 0 : index
    %c0_0 = arith.constant 0 : index
    %0 = vector.load %arg2[%c0, %c0_0] : memref<32x384xbf16, #tpu.memory_space<vmem>>, vector<32x384xbf16>
    %c0_1 = arith.constant 0 : index
    %c0_2 = arith.constant 0 : index
    %1 = vector.load %arg3[%c0_1, %c0_2] : memref<384x128xbf16, #tpu.memory_space<vmem>>, vector<384x128xbf16>
    %cst = arith.constant dense<0.000000e+00> : vector<32x128xf32>
    %2 = tpu.matmul %0, %1, %cst {dimension_numbers = #tpu.dot_dimension_numbers<[1], [0], [0], [1], [0, 0, 1, 1], [], []>} : vector<32x384xbf16>, vector<384x128xbf16>, vector<32x128xf32> -> vector<32x128xf32>
    %c0_3 = arith.constant 0 : index
    %c0_4 = arith.constant 0 : index
    %3 = vector.load %arg4[%c0_3, %c0_4] : memref<1x128xf32, #tpu.memory_space<vmem>>, vector<1x128xf32>
    %4 = vector.broadcast %3 : vector<1x128xf32> to vector<32x128xf32>
    %5 = arith.addf %2, %4 : vector<32x128xf32>
    %c0_5 = arith.constant 0 : index
    %c0_6 = arith.constant 0 : index
    %6 = vector.load %arg5[%c0_5, %c0_6] : memref<32x128xbf16, #tpu.memory_space<vmem>>, vector<32x128xbf16>
    %7 = arith.extf %6 : vector<32x128xbf16> to vector<32x128xf32>
    %8 = arith.addf %5, %7 : vector<32x128xf32>
    %9 = arith.truncf %8 : vector<32x128xf32> to vector<32x128xbf16>
    %c0_7 = arith.constant 0 : index
    %c0_8 = arith.constant 0 : index
    %10 = vector.load %arg6[%c0_7, %c0_8] : memref<32x128xbf16, #tpu.memory_space<vmem>>, vector<32x128xbf16>
    tpu.vector_store %arg6[%c0_7, %c0_8], %9 {strides = array<i32>} : memref<32x128xbf16, #tpu.memory_space<vmem>>, vector<32x128xbf16>,
    return
  }
  func.func @transform_0(%arg0: i32, %arg1: i32) -> (i32, i32) {
    %c0_i32 = arith.constant 0 : i32
    %c0_i32_0 = arith.constant 0 : i32
    return %arg0, %c0_i32 : i32, i32
  }
  func.func @transform_1(%arg0: i32, %arg1: i32) -> (i32, i32) {
    %c0_i32 = arith.constant 0 : i32
    %c0_i32_0 = arith.constant 0 : i32
    return %c0_i32, %arg1 : i32, i32
  }
  func.func @transform_2(%arg0: i32, %arg1: i32) -> (i32, i32) {
    %c0_i32 = arith.constant 0 : i32
    %c0_i32_0 = arith.constant 0 : i32
    return %c0_i32, %arg1 : i32, i32
  }
  func.func @transform_3(%arg0: i32, %arg1: i32) -> (i32, i32) {
    %c0_i32 = arith.constant 0 : i32
    return %arg0, %arg1 : i32, i32
  }
  func.func @transform_4(%arg0: i32, %arg1: i32) -> (i32, i32) {
    %c0_i32 = arith.constant 0 : i32
    return %arg0, %arg1 : i32, i32
  }
}

module attributes {stable_mosaic.version = 11 : i64} {
  func.func @_fused_matmul_kernel(%arg0: i32, %arg1: i32, %arg2: memref<32x128xbf16, #tpu.memory_space<vmem>>, %arg3: memref<128x128xbf16, #tpu.memory_space<vmem>>, %arg4: memref<1x128xf32, #tpu.memory_space<vmem>>, %arg5: memref<32x128xbf16, #tpu.memory_space<vmem>>) attributes {dimension_semantics = [#tpu.dimension_semantics<parallel>, #tpu.dimension_semantics<parallel>], iteration_bounds = array<i64: 1, 1>, scalar_prefetch = 0 : i64, scratch_operands = 0 : i64, tpu.core_type = #tpu.core_type<tc>, window_params = [{transform_indices = @transform_0, window_bounds = array<i64: 32, 128>}, {transform_indices = @transform_1, window_bounds = array<i64: 128, 128>}, {transform_indices = @transform_2, window_bounds = array<i64: 1, 128>}, {transform_indices = @transform_3, window_bounds = array<i64: 32, 128>}]} {
    %c0 = arith.constant 0 : index
    %c0_0 = arith.constant 0 : index
    %0 = vector.load %arg2[%c0, %c0_0] : memref<32x128xbf16, #tpu.memory_space<vmem>>, vector<32x128xbf16>
    %c0_1 = arith.constant 0 : index
    %c0_2 = arith.constant 0 : index
    %1 = vector.load %arg3[%c0_1, %c0_2] : memref<128x128xbf16, #tpu.memory_space<vmem>>, vector<128x128xbf16>
    %cst = arith.constant dense<0.000000e+00> : vector<32x128xf32>
    %2 = tpu.matmul %0, %1, %cst {dimension_numbers = #tpu.dot_dimension_numbers<[1], [0], [0], [1], [0, 0, 1, 1], [], []>} : vector<32x128xbf16>, vector<128x128xbf16>, vector<32x128xf32> -> vector<32x128xf32>
    %c0_3 = arith.constant 0 : index
    %c0_4 = arith.constant 0 : index
    %3 = vector.load %arg4[%c0_3, %c0_4] : memref<1x128xf32, #tpu.memory_space<vmem>>, vector<1x128xf32>
    %4 = vector.broadcast %3 : vector<1x128xf32> to vector<32x128xf32>
    %5 = arith.addf %2, %4 : vector<32x128xf32>
    %cst_5 = arith.constant 0.000000e+00 : f32
    %6 = vector.broadcast %cst_5 : f32 to vector<32x128xf32>
    %7 = arith.maximumf %5, %6 : vector<32x128xf32>
    %8 = arith.truncf %7 : vector<32x128xf32> to vector<32x128xbf16>
    %c0_6 = arith.constant 0 : index
    %c0_7 = arith.constant 0 : index
    %9 = vector.load %arg5[%c0_6, %c0_7] : memref<32x128xbf16, #tpu.memory_space<vmem>>, vector<32x128xbf16>
    tpu.vector_store %arg5[%c0_6, %c0_7], %8 {strides = array<i32>} : memref<32x128xbf16, #tpu.memory_space<vmem>>, vector<32x128xbf16>,
    return
  }
  func.func @transform_0(%arg0: i32, %arg1: i32) -> (i32, i32) {
    %c0_i32 = arith.constant 0 : i32
    %c0_i32_0 = arith.constant 0 : i32
    return %arg0, %c0_i32 : i32, i32
  }
  func.func @transform_1(%arg0: i32, %arg1: i32) -> (i32, i32) {
    %c0_i32 = arith.constant 0 : i32
    %c0_i32_0 = arith.constant 0 : i32
    return %c0_i32, %arg1 : i32, i32
  }
  func.func @transform_2(%arg0: i32, %arg1: i32) -> (i32, i32) {
    %c0_i32 = arith.constant 0 : i32
    %c0_i32_0 = arith.constant 0 : i32
    return %c0_i32, %arg1 : i32, i32
  }
  func.func @transform_3(%arg0: i32, %arg1: i32) -> (i32, i32) {
    %c0_i32 = arith.constant 0 : i32
    return %arg0, %arg1 : i32, i32
  }
}

module attributes {stable_mosaic.version = 11 : i64} {
  func.func @_fused_matmul_kernel(%arg0: i32, %arg1: i32, %arg2: memref<512x512xbf16, #tpu.memory_space<vmem>>, %arg3: memref<512x128xbf16, #tpu.memory_space<vmem>>, %arg4: memref<1x128xf32, #tpu.memory_space<vmem>>, %arg5: memref<512x128xbf16, #tpu.memory_space<vmem>>) attributes {dimension_semantics = [#tpu.dimension_semantics<parallel>, #tpu.dimension_semantics<parallel>], iteration_bounds = array<i64: 1, 1>, scalar_prefetch = 0 : i64, scratch_operands = 0 : i64, tpu.core_type = #tpu.core_type<tc>, window_params = [{transform_indices = @transform_0, window_bounds = array<i64: 512, 512>}, {transform_indices = @transform_1, window_bounds = array<i64: 512, 128>}, {transform_indices = @transform_2, window_bounds = array<i64: 1, 128>}, {transform_indices = @transform_3, window_bounds = array<i64: 512, 128>}]} {
    %c0 = arith.constant 0 : index
    %c0_0 = arith.constant 0 : index
    %0 = vector.load %arg2[%c0, %c0_0] : memref<512x512xbf16, #tpu.memory_space<vmem>>, vector<512x512xbf16>
    %c0_1 = arith.constant 0 : index
    %c0_2 = arith.constant 0 : index
    %1 = vector.load %arg3[%c0_1, %c0_2] : memref<512x128xbf16, #tpu.memory_space<vmem>>, vector<512x128xbf16>
    %cst = arith.constant dense<0.000000e+00> : vector<512x128xf32>
    %2 = tpu.matmul %0, %1, %cst {dimension_numbers = #tpu.dot_dimension_numbers<[1], [0], [0], [1], [0, 0, 1, 1], [], []>} : vector<512x512xbf16>, vector<512x128xbf16>, vector<512x128xf32> -> vector<512x128xf32>
    %c0_3 = arith.constant 0 : index
    %c0_4 = arith.constant 0 : index
    %3 = vector.load %arg4[%c0_3, %c0_4] : memref<1x128xf32, #tpu.memory_space<vmem>>, vector<1x128xf32>
    %4 = vector.broadcast %3 : vector<1x128xf32> to vector<512x128xf32>
    %5 = arith.addf %2, %4 : vector<512x128xf32>
    %6 = math.tanh %5 : vector<512x128xf32>
    %7 = arith.truncf %6 : vector<512x128xf32> to vector<512x128xbf16>
    %c0_5 = arith.constant 0 : index
    %c0_6 = arith.constant 0 : index
    %8 = vector.load %arg5[%c0_5, %c0_6] : memref<512x128xbf16, #tpu.memory_space<vmem>>, vector<512x128xbf16>
    tpu.vector_store %arg5[%c0_5, %c0_6], %7 {strides = array<i32>} : memref<512x128xbf16, #tpu.memory_space<vmem>>, vector<512x128xbf16>,
    return
  }
  func.func @transform_0(%arg0: i32, %arg1: i32) -> (i32, i32) {
    %c0_i32 = arith.constant 0 : i32
    %c0_i32_0 = arith.constant 0 : i32
    return %arg0, %c0_i32 : i32, i32
  }
  func.func @transform_1(%arg0: i32, %arg1: i32) -> (i32, i32) {
    %c0_i32 = arith.constant 0 : i32
    %c0_i32_0 = arith.constant 0 : i32
    return %c0_i32, %arg1 : i32, i32
  }
  func.func @transform_2(%arg0: i32, %arg1: i32) -> (i32, i32) {
    %c0_i32 = arith.constant 0 : i32
    %c0_i32_0 = arith.constant 0 : i32
    return %c0_i32, %arg1 : i32, i32
  }
  func.func @transform_3(%arg0: i32, %arg1: i32) -> (i32, i32) {
    %c0_i32 = arith.constant 0 : i32
    return %arg0, %arg1 : i32, i32
  }
}

</mosaic_0001>

<llo_original>
// kernel: resnet_generator_forward.10
$region0: #{resnet_generator_forward.10}
  #allocation0 [shape = 'u32[]', space=smem, size = 0x4, offset = 0x4, fixed_abs, tag = 'smem constant byte address 0x4 - core index']
  #allocation1 [shape = 'u32[72,128]{1,0:T(1,128)}', space=vmem, size = 0x9000, scoped, tag = 'internal scratch']
  %s0 = inlined_call_operand.vmem [shape: bf16[512,256], index: 0, kind: input, shape index: {}]
  %s1 = inlined_call_operand.vmem [shape: bf16[256,128], index: 1, kind: input, shape index: {}]
  %s2 = inlined_call_operand.vmem [shape: f32[1,128], index: 2, kind: input, shape index: {}]
  %s3 = inlined_call_operand.vmem [shape: bf16[512,128], index: 3, kind: output, shape index: {}]
  %s4 = sld [smem:[#allocation0]]
  $region22: #{resnet_generator_forward.10} parent=0
    _
  %s6 = ssub.s32 1, %s4
  %s7 = scalar_select 0, %s6, %s4
  // Predicated region
  $region2: #{resnet_generator_forward.10} parent=0 // pred_check
    _
  $region3: #{resnet_generator_forward.10} parent=0 // pred_check_branch
    %9 = sbr.rel (0) target = $region5
  $region4: #{resnet_generator_forward.10} parent=0 // pred_region
    _
  $region5: #{resnet_generator_forward.10} parent=0 // pred_fallthru
    _
  // Predicated region
  $region6: #{resnet_generator_forward.10} parent=0 // pred_check
    _
  $region7: #{resnet_generator_forward.10} parent=0 // pred_check_branch
    %11 = sbr.rel (0) target = $region9
  $region8: #{resnet_generator_forward.10} parent=0 // pred_region
    _
  $region9: #{resnet_generator_forward.10} parent=0 // pred_fallthru
    _
  // Predicated region
  $region10: #{resnet_generator_forward.10} parent=0 // pred_check
    _
  $region11: #{resnet_generator_forward.10} parent=0 // pred_check_branch
    %13 = sbr.rel (0) target = $region13
  $region12: #{resnet_generator_forward.10} parent=0 // pred_region
    _
  $region13: #{resnet_generator_forward.10} parent=0 // pred_fallthru
    _
  %v14 = vld [vmem:[%s0] sm:$0xff]
  %v15 = vld [vmem:[%s0 + $0x8] sm:$0xff]
  %v16 = vld [vmem:[%s0 + $0x10] sm:$0xff]
  %v17 = vld [vmem:[%s0 + $0x18] sm:$0xff]
  %v18 = vld [vmem:[%s0 + $0x20] sm:$0xff]
  %v19 = vld [vmem:[%s0 + $0x28] sm:$0xff]
  %v20 = vld [vmem:[%s0 + $0x30] sm:$0xff]
  %v21 = vld [vmem:[%s0 + $0x38] sm:$0xff]
  %v22 = vld [vmem:[%s0 + $0x40] sm:$0xff]
  %v23 = vld [vmem:[%s0 + $0x48] sm:$0xff]
  %v24 = vld [vmem:[%s0 + $0x50] sm:$0xff]
  %v25 = vld [vmem:[%s0 + $0x58] sm:$0xff]
  %v26 = vld [vmem:[%s0 + $0x60] sm:$0xff]
  %v27 = vld [vmem:[%s0 + $0x68] sm:$0xff]
  %v28 = vld [vmem:[%s0 + $0x70] sm:$0xff]
  %v29 = vld [vmem:[%s0 + $0x78] sm:$0xff]
  %v30 = vld [vmem:[%s0 + $0x80] sm:$0xff]
  %v31 = vld [vmem:[%s0 + $0x88] sm:$0xff]
  %v32 = vld [vmem:[%s0 + $0x90] sm:$0xff]
  %v33 = vld [vmem:[%s0 + $0x98] sm:$0xff]
  %v34 = vld [vmem:[%s0 + $0xa0] sm:$0xff]
  %v35 = vld [vmem:[%s0 + $0xa8] sm:$0xff]
  %v36 = vld [vmem:[%s0 + $0xb0] sm:$0xff]
  %v37 = vld [vmem:[%s0 + $0xb8] sm:$0xff]
  %v38 = vld [vmem:[%s0 + $0xc0] sm:$0xff]
  %v39 = vld [vmem:[%s0 + $0xc8] sm:$0xff]
  %v40 = vld [vmem:[%s0 + $0xd0] sm:$0xff]
  %v41 = vld [vmem:[%s0 + $0xd8] sm:$0xff]
  %v42 = vld [vmem:[%s0 + $0xe0] sm:$0xff]
  %v43 = vld [vmem:[%s0 + $0xe8] sm:$0xff]
  %v44 = vld [vmem:[%s0 + $0xf0] sm:$0xff]
  %v45 = vld [vmem:[%s0 + $0xf8] sm:$0xff]
  %v46 = vld [vmem:[%s0 + $0x100] sm:$0xff]
  %v47 = vld [vmem:[%s0 + $0x108] sm:$0xff]
  %v48 = vld [vmem:[%s0 + $0x110] sm:$0xff]
  %v49 = vld [vmem:[%s0 + $0x118] sm:$0xff]
  %v50 = vld [vmem:[%s0 + $0x120] sm:$0xff]
  %v51 = vld [vmem:[%s0 + $0x128] sm:$0xff]
  %v52 = vld [vmem:[%s0 + $0x130] sm:$0xff]
  %v53 = vld [vmem:[%s0 + $0x138] sm:$0xff]
  %v54 = vld [vmem:[%s0 + $0x140] sm:$0xff]
  %v55 = vld [vmem:[%s0 + $0x148] sm:$0xff]
  %v56 = vld [vmem:[%s0 + $0x150] sm:$0xff]
  %v57 = vld [vmem:[%s0 + $0x158] sm:$0xff]
  %v58 = vld [vmem:[%s0 + $0x160] sm:$0xff]
  %v59 = vld [vmem:[%s0 + $0x168] sm:$0xff]
  %v60 = vld [vmem:[%s0 + $0x170] sm:$0xff]
  %v61 = vld [vmem:[%s0 + $0x178] sm:$0xff]
  %v62 = vld [vmem:[%s0 + $0x180] sm:$0xff]
  %v63 = vld [vmem:[%s0 + $0x188] sm:$0xff]
  %v64 = vld [vmem:[%s0 + $0x190] sm:$0xff]
  %v65 = vld [vmem:[%s0 + $0x198] sm:$0xff]
  %v66 = vld [vmem:[%s0 + $0x1a0] sm:$0xff]
  %v67 = vld [vmem:[%s0 + $0x1a8] sm:$0xff]
  %v68 = vld [vmem:[%s0 + $0x1b0] sm:$0xff]
  %v69 = vld [vmem:[%s0 + $0x1b8] sm:$0xff]
  %v70 = vld [vmem:[%s0 + $0x1c0] sm:$0xff]
  %v71 = vld [vmem:[%s0 + $0x1c8] sm:$0xff]
  %v72 = vld [vmem:[%s0 + $0x1d0] sm:$0xff]
  %v73 = vld [vmem:[%s0 + $0x1d8] sm:$0xff]
  %v74 = vld [vmem:[%s0 + $0x1e0] sm:$0xff]
  %v75 = vld [vmem:[%s0 + $0x1e8] sm:$0xff]
  %v76 = vld [vmem:[%s0 + $0x1f0] sm:$0xff]
  %v77 = vld [vmem:[%s0 + $0x1f8] sm:$0xff]
  %v78 = vld [vmem:[%s1] sm:$0xf]
  %v79 = vld [vmem:[%s1 + $0x4] sm:$0xf]
  %v80 = vld [vmem:[%s1 + $0x8] sm:$0xf]
  %v81 = vld [vmem:[%s1 + $0xc] sm:$0xf]
  %v82 = vld [vmem:[%s1 + $0x10] sm:$0xf]
  %v83 = vld [vmem:[%s1 + $0x14] sm:$0xf]
  %v84 = vld [vmem:[%s1 + $0x18] sm:$0xf]
  %v85 = vld [vmem:[%s1 + $0x1c] sm:$0xf]
  %v86 = vld [vmem:[%s1 + $0x20] sm:$0xf]
  %v87 = vld [vmem:[%s1 + $0x24] sm:$0xf]
  %v88 = vld [vmem:[%s1 + $0x28] sm:$0xf]
  %v89 = vld [vmem:[%s1 + $0x2c] sm:$0xf]
  %v90 = vld [vmem:[%s1 + $0x30] sm:$0xf]
  %v91 = vld [vmem:[%s1 + $0x34] sm:$0xf]
  %v92 = vld [vmem:[%s1 + $0x38] sm:$0xf]
  %v93 = vld [vmem:[%s1 + $0x3c] sm:$0xf]
  %v94 = vld [vmem:[%s1 + $0x40] sm:$0xf]
  %v95 = vld [vmem:[%s1 + $0x44] sm:$0xf]
  %v96 = vld [vmem:[%s1 + $0x48] sm:$0xf]
  %v97 = vld [vmem:[%s1 + $0x4c] sm:$0xf]
  %v98 = vld [vmem:[%s1 + $0x50] sm:$0xf]
  %v99 = vld [vmem:[%s1 + $0x54] sm:$0xf]
  %v100 = vld [vmem:[%s1 + $0x58] sm:$0xf]
  %v101 = vld [vmem:[%s1 + $0x5c] sm:$0xf]
  %v102 = vld [vmem:[%s1 + $0x60] sm:$0xf]
  %v103 = vld [vmem:[%s1 + $0x64] sm:$0xf]
  %v104 = vld [vmem:[%s1 + $0x68] sm:$0xf]
  %v105 = vld [vmem:[%s1 + $0x6c] sm:$0xf]
  %v106 = vld [vmem:[%s1 + $0x70] sm:$0xf]
  %v107 = vld [vmem:[%s1 + $0x74] sm:$0xf]
  %v108 = vld [vmem:[%s1 + $0x78] sm:$0xf]
  %v109 = vld [vmem:[%s1 + $0x7c] sm:$0xf]
  %v110 = vld [vmem:[%s2] sm:$0x1]
  %v112 = vperm.slane %v110, 0
  %v178 = vunpack.c.l.b16 %v14
  %v179 = vunpack.c.h.b16 %v14
  %v180 = vunpack.c.l.b16 %v15
  %v181 = vunpack.c.h.b16 %v15
  %v182 = vunpack.c.l.b16 %v16
  %v183 = vunpack.c.h.b16 %v16
  %v184 = vunpack.c.l.b16 %v17
  %v185 = vunpack.c.h.b16 %v17
  %v186 = vunpack.c.l.b16 %v18
  %v187 = vunpack.c.h.b16 %v18
  %v188 = vunpack.c.l.b16 %v19
  %v189 = vunpack.c.h.b16 %v19
  %v190 = vunpack.c.l.b16 %v20
  %v191 = vunpack.c.h.b16 %v20
  %v192 = vunpack.c.l.b16 %v21
  %v193 = vunpack.c.h.b16 %v21
  %v194 = vunpack.c.l.b16 %v22
  %v195 = vunpack.c.h.b16 %v22
  %v196 = vunpack.c.l.b16 %v23
  %v197 = vunpack.c.h.b16 %v23
  %v198 = vunpack.c.l.b16 %v24
  %v199 = vunpack.c.h.b16 %v24
  %v200 = vunpack.c.l.b16 %v25
  %v201 = vunpack.c.h.b16 %v25
  %v202 = vunpack.c.l.b16 %v26
  %v203 = vunpack.c.h.b16 %v26
  %v204 = vunpack.c.l.b16 %v27
  %v205 = vunpack.c.h.b16 %v27
  %v206 = vunpack.c.l.b16 %v28
  %v207 = vunpack.c.h.b16 %v28
  %v208 = vunpack.c.l.b16 %v29
  %v209 = vunpack.c.h.b16 %v29
  %v210 = vunpack.c.l.b16 %v30
  %v211 = vunpack.c.h.b16 %v30
  %v212 = vunpack.c.l.b16 %v31
  %v213 = vunpack.c.h.b16 %v31
  %v214 = vunpack.c.l.b16 %v32
  %v215 = vunpack.c.h.b16 %v32
  %v216 = vunpack.c.l.b16 %v33
  %v217 = vunpack.c.h.b16 %v33
  %v218 = vunpack.c.l.b16 %v34
  %v219 = vunpack.c.h.b16 %v34
  %v220 = vunpack.c.l.b16 %v35
  %v221 = vunpack.c.h.b16 %v35
  %v222 = vunpack.c.l.b16 %v36
  %v223 = vunpack.c.h.b16 %v36
  %v224 = vunpack.c.l.b16 %v37
  %v225 = vunpack.c.h.b16 %v37
  %v226 = vunpack.c.l.b16 %v38
  %v227 = vunpack.c.h.b16 %v38
  %v228 = vunpack.c.l.b16 %v39
  %v229 = vunpack.c.h.b16 %v39
  %v230 = vunpack.c.l.b16 %v40
  %v231 = vunpack.c.h.b16 %v40
  %v232 = vunpack.c.l.b16 %v41
  %v233 = vunpack.c.h.b16 %v41
  %v234 = vunpack.c.l.b16 %v42
  %v235 = vunpack.c.h.b16 %v42
  %v236 = vunpack.c.l.b16 %v43
  %v237 = vunpack.c.h.b16 %v43
  %v238 = vunpack.c.l.b16 %v44
  %v239 = vunpack.c.h.b16 %v44
  %v240 = vunpack.c.l.b16 %v45
  %v241 = vunpack.c.h.b16 %v45
  %v242 = vunpack.c.l.b16 %v46
  %v243 = vunpack.c.h.b16 %v46
  %v244 = vunpack.c.l.b16 %v47
  %v245 = vunpack.c.h.b16 %v47
  %v246 = vunpack.c.l.b16 %v48
  %v247 = vunpack.c.h.b16 %v48
  %v248 = vunpack.c.l.b16 %v49
  %v249 = vunpack.c.h.b16 %v49
  %v250 = vunpack.c.l.b16 %v50
  %v251 = vunpack.c.h.b16 %v50
  %v252 = vunpack.c.l.b16 %v51
  %v253 = vunpack.c.h.b16 %v51
  %v254 = vunpack.c.l.b16 %v52
  %v255 = vunpack.c.h.b16 %v52
  %v256 = vunpack.c.l.b16 %v53
  %v257 = vunpack.c.h.b16 %v53
  %v258 = vunpack.c.l.b16 %v54
  %v259 = vunpack.c.h.b16 %v54
  %v260 = vunpack.c.l.b16 %v55
  %v261 = vunpack.c.h.b16 %v55
  %v262 = vunpack.c.l.b16 %v56
  %v263 = vunpack.c.h.b16 %v56
  %v264 = vunpack.c.l.b16 %v57
  %v265 = vunpack.c.h.b16 %v57
  %v266 = vunpack.c.l.b16 %v58
  %v267 = vunpack.c.h.b16 %v58
  %v268 = vunpack.c.l.b16 %v59
  %v269 = vunpack.c.h.b16 %v59
  %v270 = vunpack.c.l.b16 %v60
  %v271 = vunpack.c.h.b16 %v60
  %v272 = vunpack.c.l.b16 %v61
  %v273 = vunpack.c.h.b16 %v61
  %v274 = vunpack.c.l.b16 %v62
  %v275 = vunpack.c.h.b16 %v62
  %v276 = vunpack.c.l.b16 %v63
  %v277 = vunpack.c.h.b16 %v63
  %v278 = vunpack.c.l.b16 %v64
  %v279 = vunpack.c.h.b16 %v64
  %v280 = vunpack.c.l.b16 %v65
  %v281 = vunpack.c.h.b16 %v65
  %v282 = vunpack.c.l.b16 %v66
  %v283 = vunpack.c.h.b16 %v66
  %v284 = vunpack.c.l.b16 %v67
  %v285 = vunpack.c.h.b16 %v67
  %v286 = vunpack.c.l.b16 %v68
  %v287 = vunpack.c.h.b16 %v68
  %v288 = vunpack.c.l.b16 %v69
  %v289 = vunpack.c.h.b16 %v69
  %v290 = vunpack.c.l.b16 %v70
  %v291 = vunpack.c.h.b16 %v70
  %v292 = vunpack.c.l.b16 %v71
  %v293 = vunpack.c.h.b16 %v71
  %v294 = vunpack.c.l.b16 %v72
  %v295 = vunpack.c.h.b16 %v72
  %v296 = vunpack.c.l.b16 %v73
  %v297 = vunpack.c.h.b16 %v73
  %v298 = vunpack.c.l.b16 %v74
  %v299 = vunpack.c.h.b16 %v74
  %v300 = vunpack.c.l.b16 %v75
  %v301 = vunpack.c.h.b16 %v75
  %v302 = vunpack.c.l.b16 %v76
  %v303 = vunpack.c.h.b16 %v76
  %v304 = vunpack.c.l.b16 %v77
  %v305 = vunpack.c.h.b16 %v77
  %v306 = vpack.c.b16 %v180, %v178
  %v307 = vpack.c.b16 %v181, %v179
  %v308 = vpack.c.b16 %v184, %v182
  %v309 = vpack.c.b16 %v185, %v183
  %v310 = vpack.c.b16 %v188, %v186
  %v311 = vpack.c.b16 %v189, %v187
  %v312 = vpack.c.b16 %v192, %v190
  %v313 = vpack.c.b16 %v193, %v191
  %v314 = vpack.c.b16 %v196, %v194
  %v315 = vpack.c.b16 %v197, %v195
  %v316 = vpack.c.b16 %v200, %v198
  %v317 = vpack.c.b16 %v201, %v199
  %v318 = vpack.c.b16 %v204, %v202
  %v319 = vpack.c.b16 %v205, %v203
  %v320 = vpack.c.b16 %v208, %v206
  %v321 = vpack.c.b16 %v209, %v207
  %v322 = vpack.c.b16 %v212, %v210
  %v323 = vpack.c.b16 %v213, %v211
  %v324 = vpack.c.b16 %v216, %v214
  %v325 = vpack.c.b16 %v217, %v215
  %v326 = vpack.c.b16 %v220, %v218
  %v327 = vpack.c.b16 %v221, %v219
  %v328 = vpack.c.b16 %v224, %v222
  %v329 = vpack.c.b16 %v225, %v223
  %v330 = vpack.c.b16 %v228, %v226
  %v331 = vpack.c.b16 %v229, %v227
  %v332 = vpack.c.b16 %v232, %v230
  %v333 = vpack.c.b16 %v233, %v231
  %v334 = vpack.c.b16 %v236, %v234
  %v335 = vpack.c.b16 %v237, %v235
  %v336 = vpack.c.b16 %v240, %v238
  %v337 = vpack.c.b16 %v241, %v239
  %v338 = vpack.c.b16 %v244, %v242
  %v339 = vpack.c.b16 %v245, %v243
  %v340 = vpack.c.b16 %v248, %v246
  %v341 = vpack.c.b16 %v249, %v247
  %v342 = vpack.c.b16 %v252, %v250
  %v343 = vpack.c.b16 %v253, %v251
  %v344 = vpack.c.b16 %v256, %v254
  %v345 = vpack.c.b16 %v257, %v255
  %v346 = vpack.c.b16 %v260, %v258
  %v347 = vpack.c.b16 %v261, %v259
  %v348 = vpack.c.b16 %v264, %v262
  %v349 = vpack.c.b16 %v265, %v263
  %v350 = vpack.c.b16 %v268, %v266
  %v351 = vpack.c.b16 %v269, %v267
  %v352 = vpack.c.b16 %v272, %v270
  %v353 = vpack.c.b16 %v273, %v271
  %v354 = vpack.c.b16 %v276, %v274
  %v355 = vpack.c.b16 %v277, %v275
  %v356 = vpack.c.b16 %v280, %v278
  %v357 = vpack.c.b16 %v281, %v279
  %v358 = vpack.c.b16 %v284, %v282
  %v359 = vpack.c.b16 %v285, %v283
  %v360 = vpack.c.b16 %v288, %v286
  %v361 = vpack.c.b16 %v289, %v287
  %v362 = vpack.c.b16 %v292, %v290
  %v363 = vpack.c.b16 %v293, %v291
  %v364 = vpack.c.b16 %v296, %v294
  %v365 = vpack.c.b16 %v297, %v295
  %v366 = vpack.c.b16 %v300, %v298
  %v367 = vpack.c.b16 %v301, %v299
  %v368 = vpack.c.b16 %v304, %v302
  %v369 = vpack.c.b16 %v305, %v303
  %v466 = vunpack.c.l.b16 %v78
  %v467 = vunpack.c.l.b16 %v79
  %v468 = vunpack.c.l.b16 %v80
  %v469 = vunpack.c.l.b16 %v81
  %v470 = vunpack.c.l.b16 %v82
  %v471 = vunpack.c.l.b16 %v83
  %v472 = vunpack.c.l.b16 %v84
  %v473 = vunpack.c.l.b16 %v85
  %v474 = vunpack.c.l.b16 %v86
  %v475 = vunpack.c.l.b16 %v87
  %v476 = vunpack.c.l.b16 %v88
  %v477 = vunpack.c.l.b16 %v89
  %v478 = vunpack.c.l.b16 %v90
  %v479 = vunpack.c.l.b16 %v91
  %v480 = vunpack.c.l.b16 %v92
  %v481 = vunpack.c.l.b16 %v93
  %v482 = vunpack.c.l.b16 %v94
  %v483 = vunpack.c.l.b16 %v95
  %v484 = vunpack.c.l.b16 %v96
  %v485 = vunpack.c.l.b16 %v97
  %v486 = vunpack.c.l.b16 %v98
  %v487 = vunpack.c.l.b16 %v99
  %v488 = vunpack.c.l.b16 %v100
  %v489 = vunpack.c.l.b16 %v101
  %v490 = vunpack.c.l.b16 %v102
  %v491 = vunpack.c.l.b16 %v103
  %v492 = vunpack.c.l.b16 %v104
  %v493 = vunpack.c.l.b16 %v105
  %v494 = vunpack.c.l.b16 %v106
  %v495 = vunpack.c.l.b16 %v107
  %v496 = vunpack.c.l.b16 %v108
  %v497 = vunpack.c.l.b16 %v109
  %v498 = vpack.c.b16 %v467, %v466
  %v499 = vpack.c.b16 %v469, %v468
  %v500 = vpack.c.b16 %v471, %v470
  %v501 = vpack.c.b16 %v473, %v472
  %v502 = vpack.c.b16 %v475, %v474
  %v503 = vpack.c.b16 %v477, %v476
  %v504 = vpack.c.b16 %v479, %v478
  %v505 = vpack.c.b16 %v481, %v480
  %v506 = vpack.c.b16 %v483, %v482
  %v507 = vpack.c.b16 %v485, %v484
  %v508 = vpack.c.b16 %v487, %v486
  %v509 = vpack.c.b16 %v489, %v488
  %v510 = vpack.c.b16 %v491, %v490
  %v511 = vpack.c.b16 %v493, %v492
  %v512 = vpack.c.b16 %v495, %v494
  %v513 = vpack.c.b16 %v497, %v496
  %530 = vmatpush.bf16.msra.mxu0 %v505
  %531 = vmatpush.bf16.msra.mxu0 %v504
  %532 = vmatpush.bf16.msra.mxu0 %v503
  %533 = vmatpush.bf16.msra.mxu0 %v502
  %534 = vmatpush.bf16.msra.mxu0 %v501
  %535 = vmatpush.bf16.msra.mxu0 %v500
  %536 = vmatpush.bf16.msra.mxu0 %v499
  %537 = vmatpush.bf16.msra.mxu0 %v498
  %538 = vmatmul.bf16.gmra.mxu0 %v306
  %v539 = vpop.f32.mrf.mxu0
  %v540 = vadd.f32 %v112, %v539
  %v541 = vpop.f32.mrf.mxu0
  %v542 = vadd.f32 %v112, %v541
  %543 = vmatmul.bf16.gmra.mxu0 %v308
  %v544 = vpop.f32.mrf.mxu0
  %v545 = vadd.f32 %v112, %v544
  %v546 = vpop.f32.mrf.mxu0
  %v547 = vadd.f32 %v112, %v546
  %548 = vmatmul.bf16.gmra.mxu0 %v310
  %v549 = vpop.f32.mrf.mxu0
  %v550 = vadd.f32 %v112, %v549
  %v551 = vpop.f32.mrf.mxu0
  %v552 = vadd.f32 %v112, %v551
  %553 = vmatmul.bf16.gmra.mxu0 %v312
  %v554 = vpop.f32.mrf.mxu0
  %v555 = vadd.f32 %v112, %v554
  %v556 = vpop.f32.mrf.mxu0
  %v557 = vadd.f32 %v112, %v556
  %558 = vmatmul.bf16.gmra.mxu0 %v314
  %v559 = vpop.f32.mrf.mxu0
  %v560 = vadd.f32 %v112, %v559
  %v561 = vpop.f32.mrf.mxu0
  %v562 = vadd.f32 %v112, %v561
  %563 = vmatmul.bf16.gmra.mxu0 %v316
  %v564 = vpop.f32.mrf.mxu0
  %v565 = vadd.f32 %v112, %v564
  %v566 = vpop.f32.mrf.mxu0
  %v567 = vadd.f32 %v112, %v566
  %568 = vmatmul.bf16.gmra.mxu0 %v318
  %v569 = vpop.f32.mrf.mxu0
  %v570 = vadd.f32 %v112, %v569
  %v571 = vpop.f32.mrf.mxu0
  %v572 = vadd.f32 %v112, %v571
  %573 = vmatmul.bf16.gmra.mxu0 %v320
  %v574 = vpop.f32.mrf.mxu0
  %v575 = vadd.f32 %v112, %v574
  %v576 = vpop.f32.mrf.mxu0
  %v577 = vadd.f32 %v112, %v576
  %578 = vmatmul.bf16.gmra.mxu0 %v322
  %v579 = vpop.f32.mrf.mxu0
  %v580 = vadd.f32 %v112, %v579
  %v581 = vpop.f32.mrf.mxu0
  %v582 = vadd.f32 %v112, %v581
  %583 = vmatmul.bf16.gmra.mxu0 %v324
  %v584 = vpop.f32.mrf.mxu0
  %v585 = vadd.f32 %v112, %v584
  %v586 = vpop.f32.mrf.mxu0
  %v587 = vadd.f32 %v112, %v586
  %588 = vmatmul.bf16.gmra.mxu0 %v326
  %v589 = vpop.f32.mrf.mxu0
  %v590 = vadd.f32 %v112, %v589
  %v591 = vpop.f32.mrf.mxu0
  %v592 = vadd.f32 %v112, %v591
  %593 = vmatmul.bf16.gmra.mxu0 %v328
  %v594 = vpop.f32.mrf.mxu0
  %v595 = vadd.f32 %v112, %v594
  %v596 = vpop.f32.mrf.mxu0
  %v597 = vadd.f32 %v112, %v596
  %598 = vmatmul.bf16.gmra.mxu0 %v330
  %v599 = vpop.f32.mrf.mxu0
  %v600 = vadd.f32 %v112, %v599
  %v601 = vpop.f32.mrf.mxu0
  %v602 = vadd.f32 %v112, %v601
  %603 = vmatmul.bf16.gmra.mxu0 %v332
  %v604 = vpop.f32.mrf.mxu0
  %v605 = vadd.f32 %v112, %v604
  %v606 = vpop.f32.mrf.mxu0
  %v607 = vadd.f32 %v112, %v606
  %608 = vmatmul.bf16.gmra.mxu0 %v334
  %v609 = vpop.f32.mrf.mxu0
  %v610 = vadd.f32 %v112, %v609
  %v611 = vpop.f32.mrf.mxu0
  %v612 = vadd.f32 %v112, %v611
  %613 = vmatmul.bf16.gmra.mxu0 %v336
  %v614 = vpop.f32.mrf.mxu0
  %v615 = vadd.f32 %v112, %v614
  %v616 = vpop.f32.mrf.mxu0
  %v617 = vadd.f32 %v112, %v616
  %618 = vmatmul.bf16.gmra.mxu0 %v338
  %v619 = vpop.f32.mrf.mxu0
  %v620 = vadd.f32 %v112, %v619
  %v621 = vpop.f32.mrf.mxu0
  %v622 = vadd.f32 %v112, %v621
  %623 = vmatmul.bf16.gmra.mxu0 %v340
  %v624 = vpop.f32.mrf.mxu0
  %v625 = vadd.f32 %v112, %v624
  %v626 = vpop.f32.mrf.mxu0
  %v627 = vadd.f32 %v112, %v626
  %628 = vmatmul.bf16.gmra.mxu0 %v342
  %v629 = vpop.f32.mrf.mxu0
  %v630 = vadd.f32 %v112, %v629
  %v631 = vpop.f32.mrf.mxu0
  %v632 = vadd.f32 %v112, %v631
  %633 = vmatmul.bf16.gmra.mxu0 %v344
  %v634 = vpop.f32.mrf.mxu0
  %v635 = vadd.f32 %v112, %v634
  %v636 = vpop.f32.mrf.mxu0
  %v637 = vadd.f32 %v112, %v636
  %638 = vmatmul.bf16.gmra.mxu0 %v346
  %v639 = vpop.f32.mrf.mxu0
  %v640 = vadd.f32 %v112, %v639
  %v641 = vpop.f32.mrf.mxu0
  %v642 = vadd.f32 %v112, %v641
  %643 = vmatmul.bf16.gmra.mxu0 %v348
  %v644 = vpop.f32.mrf.mxu0
  %v645 = vadd.f32 %v112, %v644
  %v646 = vpop.f32.mrf.mxu0
  %v647 = vadd.f32 %v112, %v646
  %648 = vmatmul.bf16.gmra.mxu0 %v350
  %v649 = vpop.f32.mrf.mxu0
  %v650 = vadd.f32 %v112, %v649
  %v651 = vpop.f32.mrf.mxu0
  %v652 = vadd.f32 %v112, %v651
  %653 = vmatmul.bf16.gmra.mxu0 %v352
  %v654 = vpop.f32.mrf.mxu0
  %v655 = vadd.f32 %v112, %v654
  %v656 = vpop.f32.mrf.mxu0
  %v657 = vadd.f32 %v112, %v656
  %658 = vmatmul.bf16.gmra.mxu0 %v354
  %v659 = vpop.f32.mrf.mxu0
  %v660 = vadd.f32 %v112, %v659
  %v661 = vpop.f32.mrf.mxu0
  %v662 = vadd.f32 %v112, %v661
  %663 = vmatmul.bf16.gmra.mxu0 %v356
  %v664 = vpop.f32.mrf.mxu0
  %v665 = vadd.f32 %v112, %v664
  %v666 = vpop.f32.mrf.mxu0
  %v667 = vadd.f32 %v112, %v666
  %668 = vmatmul.bf16.gmra.mxu0 %v358
  %v669 = vpop.f32.mrf.mxu0
  %v670 = vadd.f32 %v112, %v669
  %v671 = vpop.f32.mrf.mxu0
  %v672 = vadd.f32 %v112, %v671
  %673 = vmatmul.bf16.gmra.mxu0 %v360
  %v674 = vpop.f32.mrf.mxu0
  %v675 = vadd.f32 %v112, %v674
  %v676 = vpop.f32.mrf.mxu0
  %v677 = vadd.f32 %v112, %v676
  %678 = vmatmul.bf16.gmra.mxu0 %v362
  %v679 = vpop.f32.mrf.mxu0
  %v680 = vadd.f32 %v112, %v679
  %v681 = vpop.f32.mrf.mxu0
  %v682 = vadd.f32 %v112, %v681
  %683 = vmatmul.bf16.gmra.mxu0 %v364
  %v684 = vpop.f32.mrf.mxu0
  %v685 = vadd.f32 %v112, %v684
  %v686 = vpop.f32.mrf.mxu0
  %v687 = vadd.f32 %v112, %v686
  %688 = vmatmul.bf16.gmra.mxu0 %v366
  %v689 = vpop.f32.mrf.mxu0
  %v690 = vadd.f32 %v112, %v689
  %v691 = vpop.f32.mrf.mxu0
  %v692 = vadd.f32 %v112, %v691
  %693 = vmatmul.bf16.gmra.mxu0 %v368
  %v694 = vpop.f32.mrf.mxu0
  %v695 = vadd.f32 %v112, %v694
  %v696 = vpop.f32.mrf.mxu0
  %v697 = vadd.f32 %v112, %v696
  %698 = vdwg.mxu0
  %699 = vmatpush.bf16.msra.mxu0 %v513
  %700 = vmatpush.bf16.msra.mxu0 %v512
  %701 = vmatpush.bf16.msra.mxu0 %v511
  %702 = vmatpush.bf16.msra.mxu0 %v510
  %703 = vmatpush.bf16.msra.mxu0 %v509
  %704 = vmatpush.bf16.msra.mxu0 %v508
  %705 = vmatpush.bf16.msra.mxu0 %v507
  %706 = vmatpush.bf16.msra.mxu0 %v506
  %707 = vmatmul.bf16.gmra.mxu0 %v307
  %v708 = vpop.f32.mrf.mxu0
  %v709 = vadd.f32 %v540, %v708
  %v710 = vpop.f32.mrf.mxu0
  %v711 = vadd.f32 %v542, %v710
  %712 = vmatmul.bf16.gmra.mxu0 %v309
  %v713 = vpop.f32.mrf.mxu0
  %v714 = vadd.f32 %v545, %v713
  %v715 = vpop.f32.mrf.mxu0
  %v716 = vadd.f32 %v547, %v715
  %717 = vmatmul.bf16.gmra.mxu0 %v311
  %v718 = vpop.f32.mrf.mxu0
  %v719 = vadd.f32 %v550, %v718
  %v720 = vpop.f32.mrf.mxu0
  %v721 = vadd.f32 %v552, %v720
  %722 = vmatmul.bf16.gmra.mxu0 %v313
  %v723 = vpop.f32.mrf.mxu0
  %v724 = vadd.f32 %v555, %v723
  %v725 = vpop.f32.mrf.mxu0
  %v726 = vadd.f32 %v557, %v725
  %727 = vmatmul.bf16.gmra.mxu0 %v315
  %v728 = vpop.f32.mrf.mxu0
  %v729 = vadd.f32 %v560, %v728
  %v730 = vpop.f32.mrf.mxu0
  %v731 = vadd.f32 %v562, %v730
  %732 = vmatmul.bf16.gmra.mxu0 %v317
  %v733 = vpop.f32.mrf.mxu0
  %v734 = vadd.f32 %v565, %v733
  %v735 = vpop.f32.mrf.mxu0
  %v736 = vadd.f32 %v567, %v735
  %737 = vmatmul.bf16.gmra.mxu0 %v319
  %v738 = vpop.f32.mrf.mxu0
  %v739 = vadd.f32 %v570, %v738
  %v740 = vpop.f32.mrf.mxu0
  %v741 = vadd.f32 %v572, %v740
  %742 = vmatmul.bf16.gmra.mxu0 %v321
  %v743 = vpop.f32.mrf.mxu0
  %v744 = vadd.f32 %v575, %v743
  %v745 = vpop.f32.mrf.mxu0
  %v746 = vadd.f32 %v577, %v745
  %747 = vmatmul.bf16.gmra.mxu0 %v323
  %v748 = vpop.f32.mrf.mxu0
  %v749 = vadd.f32 %v580, %v748
  %v750 = vpop.f32.mrf.mxu0
  %v751 = vadd.f32 %v582, %v750
  %752 = vmatmul.bf16.gmra.mxu0 %v325
  %v753 = vpop.f32.mrf.mxu0
  %v754 = vadd.f32 %v585, %v753
  %v755 = vpop.f32.mrf.mxu0
  %v756 = vadd.f32 %v587, %v755
  %757 = vmatmul.bf16.gmra.mxu0 %v327
  %v758 = vpop.f32.mrf.mxu0
  %v759 = vadd.f32 %v590, %v758
  %v760 = vpop.f32.mrf.mxu0
  %v761 = vadd.f32 %v592, %v760
  %762 = vmatmul.bf16.gmra.mxu0 %v329
  %v763 = vpop.f32.mrf.mxu0
  %v764 = vadd.f32 %v595, %v763
  %v765 = vpop.f32.mrf.mxu0
  %v766 = vadd.f32 %v597, %v765
  %767 = vmatmul.bf16.gmra.mxu0 %v331
  %v768 = vpop.f32.mrf.mxu0
  %v769 = vadd.f32 %v600, %v768
  %v770 = vpop.f32.mrf.mxu0
  %v771 = vadd.f32 %v602, %v770
  %772 = vmatmul.bf16.gmra.mxu0 %v333
  %v773 = vpop.f32.mrf.mxu0
  %v774 = vadd.f32 %v605, %v773
  %v775 = vpop.f32.mrf.mxu0
  %v776 = vadd.f32 %v607, %v775
  %777 = vmatmul.bf16.gmra.mxu0 %v335
  %v778 = vpop.f32.mrf.mxu0
  %v779 = vadd.f32 %v610, %v778
  %v780 = vpop.f32.mrf.mxu0
  %v781 = vadd.f32 %v612, %v780
  %782 = vmatmul.bf16.gmra.mxu0 %v337
  %v783 = vpop.f32.mrf.mxu0
  %v784 = vadd.f32 %v615, %v783
  %v785 = vpop.f32.mrf.mxu0
  %v786 = vadd.f32 %v617, %v785
  %787 = vmatmul.bf16.gmra.mxu0 %v339
  %v788 = vpop.f32.mrf.mxu0
  %v789 = vadd.f32 %v620, %v788
  %v790 = vpop.f32.mrf.mxu0
  %v791 = vadd.f32 %v622, %v790
  %792 = vmatmul.bf16.gmra.mxu0 %v341
  %v793 = vpop.f32.mrf.mxu0
  %v794 = vadd.f32 %v625, %v793
  %v795 = vpop.f32.mrf.mxu0
  %v796 = vadd.f32 %v627, %v795
  %797 = vmatmul.bf16.gmra.mxu0 %v343
  %v798 = vpop.f32.mrf.mxu0
  %v799 = vadd.f32 %v630, %v798
  %v800 = vpop.f32.mrf.mxu0
  %v801 = vadd.f32 %v632, %v800
  %802 = vmatmul.bf16.gmra.mxu0 %v345
  %v803 = vpop.f32.mrf.mxu0
  %v804 = vadd.f32 %v635, %v803
  %v805 = vpop.f32.mrf.mxu0
  %v806 = vadd.f32 %v637, %v805
  %807 = vmatmul.bf16.gmra.mxu0 %v347
  %v808 = vpop.f32.mrf.mxu0
  %v809 = vadd.f32 %v640, %v808
  %v810 = vpop.f32.mrf.mxu0
  %v811 = vadd.f32 %v642, %v810
  %812 = vmatmul.bf16.gmra.mxu0 %v349
  %v813 = vpop.f32.mrf.mxu0
  %v814 = vadd.f32 %v645, %v813
  %v815 = vpop.f32.mrf.mxu0
  %v816 = vadd.f32 %v647, %v815
  %817 = vmatmul.bf16.gmra.mxu0 %v351
  %v818 = vpop.f32.mrf.mxu0
  %v819 = vadd.f32 %v650, %v818
  %v820 = vpop.f32.mrf.mxu0
  %v821 = vadd.f32 %v652, %v820
  %822 = vmatmul.bf16.gmra.mxu0 %v353
  %v823 = vpop.f32.mrf.mxu0
  %v824 = vadd.f32 %v655, %v823
  %v825 = vpop.f32.mrf.mxu0
  %v826 = vadd.f32 %v657, %v825
  %827 = vmatmul.bf16.gmra.mxu0 %v355
  %v828 = vpop.f32.mrf.mxu0
  %v829 = vadd.f32 %v660, %v828
  %v830 = vpop.f32.mrf.mxu0
  %v831 = vadd.f32 %v662, %v830
  %832 = vmatmul.bf16.gmra.mxu0 %v357
  %v833 = vpop.f32.mrf.mxu0
  %v834 = vadd.f32 %v665, %v833
  %v835 = vpop.f32.mrf.mxu0
  %v836 = vadd.f32 %v667, %v835
  %837 = vmatmul.bf16.gmra.mxu0 %v359
  %v838 = vpop.f32.mrf.mxu0
  %v839 = vadd.f32 %v670, %v838
  %v840 = vpop.f32.mrf.mxu0
  %v841 = vadd.f32 %v672, %v840
  %842 = vmatmul.bf16.gmra.mxu0 %v361
  %v843 = vpop.f32.mrf.mxu0
  %v844 = vadd.f32 %v675, %v843
  %v845 = vpop.f32.mrf.mxu0
  %v846 = vadd.f32 %v677, %v845
  %847 = vmatmul.bf16.gmra.mxu0 %v363
  %v848 = vpop.f32.mrf.mxu0
  %v849 = vadd.f32 %v680, %v848
  %v850 = vpop.f32.mrf.mxu0
  %v851 = vadd.f32 %v682, %v850
  %852 = vmatmul.bf16.gmra.mxu0 %v365
  %v853 = vpop.f32.mrf.mxu0
  %v854 = vadd.f32 %v685, %v853
  %v855 = vpop.f32.mrf.mxu0
  %v856 = vadd.f32 %v687, %v855
  %857 = vmatmul.bf16.gmra.mxu0 %v367
  %v858 = vpop.f32.mrf.mxu0
  %v859 = vadd.f32 %v690, %v858
  %v860 = vpop.f32.mrf.mxu0
  %v861 = vadd.f32 %v692, %v860
  %862 = vmatmul.bf16.gmra.mxu0 %v369
  %v863 = vpop.f32.mrf.mxu0
  %v864 = vadd.f32 %v695, %v863
  %v865 = vpop.f32.mrf.mxu0
  %v866 = vadd.f32 %v697, %v865
  %867 = vdwg.mxu0
  %v868 = vmax.f32 %v709, 0.0
  %v869 = vmax.f32 %v711, 0.0
  %v870 = vmax.f32 %v714, 0.0
  %v871 = vmax.f32 %v716, 0.0
  %v872 = vmax.f32 %v719, 0.0
  %v873 = vmax.f32 %v721, 0.0
  %v874 = vmax.f32 %v724, 0.0
  %v875 = vmax.f32 %v726, 0.0
  %v876 = vmax.f32 %v729, 0.0
  %v877 = vmax.f32 %v731, 0.0
  %v878 = vmax.f32 %v734, 0.0
  %v879 = vmax.f32 %v736, 0.0
  %v880 = vmax.f32 %v739, 0.0
  %v881 = vmax.f32 %v741, 0.0
  %v882 = vmax.f32 %v744, 0.0
  %v883 = vmax.f32 %v746, 0.0
  %v884 = vmax.f32 %v749, 0.0
  %v885 = vmax.f32 %v751, 0.0
  %v886 = vmax.f32 %v754, 0.0
  %v887 = vmax.f32 %v756, 0.0
  %v888 = vmax.f32 %v759, 0.0
  %v889 = vmax.f32 %v761, 0.0
  %v890 = vmax.f32 %v764, 0.0
  %v891 = vmax.f32 %v766, 0.0
  %v892 = vmax.f32 %v769, 0.0
  %v893 = vmax.f32 %v771, 0.0
  %v894 = vmax.f32 %v774, 0.0
  %v895 = vmax.f32 %v776, 0.0
  %v896 = vmax.f32 %v779, 0.0
  %v897 = vmax.f32 %v781, 0.0
  %v898 = vmax.f32 %v784, 0.0
  %v899 = vmax.f32 %v786, 0.0
  %v900 = vmax.f32 %v789, 0.0
  %v901 = vmax.f32 %v791, 0.0
  %v902 = vmax.f32 %v794, 0.0
  %v903 = vmax.f32 %v796, 0.0
  %v904 = vmax.f32 %v799, 0.0
  %v905 = vmax.f32 %v801, 0.0
  %v906 = vmax.f32 %v804, 0.0
  %v907 = vmax.f32 %v806, 0.0
  %v908 = vmax.f32 %v809, 0.0
  %v909 = vmax.f32 %v811, 0.0
  %v910 = vmax.f32 %v814, 0.0
  %v911 = vmax.f32 %v816, 0.0
  %v912 = vmax.f32 %v819, 0.0
  %v913 = vmax.f32 %v821, 0.0
  %v914 = vmax.f32 %v824, 0.0
  %v915 = vmax.f32 %v826, 0.0
  %v916 = vmax.f32 %v829, 0.0
  %v917 = vmax.f32 %v831, 0.0
  %v918 = vmax.f32 %v834, 0.0
  %v919 = vmax.f32 %v836, 0.0
  %v920 = vmax.f32 %v839, 0.0
  %v921 = vmax.f32 %v841, 0.0
  %v922 = vmax.f32 %v844, 0.0
  %v923 = vmax.f32 %v846, 0.0
  %v924 = vmax.f32 %v849, 0.0
  %v925 = vmax.f32 %v851, 0.0
  %v926 = vmax.f32 %v854, 0.0
  %v927 = vmax.f32 %v856, 0.0
  %v928 = vmax.f32 %v859, 0.0
  %v929 = vmax.f32 %v861, 0.0
  %v930 = vmax.f32 %v864, 0.0
  %v931 = vmax.f32 %v866, 0.0
  %v932 = vpack.c.bf16 %v868, %v868
  %v933 = vpack.c.bf16 %v869, %v869
  %v934 = vpack.c.bf16 %v870, %v870
  %v935 = vpack.c.bf16 %v871, %v871
  %v936 = vpack.c.bf16 %v872, %v872
  %v937 = vpack.c.bf16 %v873, %v873
  %v938 = vpack.c.bf16 %v874, %v874
  %v939 = vpack.c.bf16 %v875, %v875
  %v940 = vpack.c.bf16 %v876, %v876
  %v941 = vpack.c.bf16 %v877, %v877
  %v942 = vpack.c.bf16 %v878, %v878
  %v943 = vpack.c.bf16 %v879, %v879
  %v944 = vpack.c.bf16 %v880, %v880
  %v945 = vpack.c.bf16 %v881, %v881
  %v946 = vpack.c.bf16 %v882, %v882
  %v947 = vpack.c.bf16 %v883, %v883
  %v948 = vpack.c.bf16 %v884, %v884
  %v949 = vpack.c.bf16 %v885, %v885
  %v950 = vpack.c.bf16 %v886, %v886
  %v951 = vpack.c.bf16 %v887, %v887
  %v952 = vpack.c.bf16 %v888, %v888
  %v953 = vpack.c.bf16 %v889, %v889
  %v954 = vpack.c.bf16 %v890, %v890
  %v955 = vpack.c.bf16 %v891, %v891
  %v956 = vpack.c.bf16 %v892, %v892
  %v957 = vpack.c.bf16 %v893, %v893
  %v958 = vpack.c.bf16 %v894, %v894
  %v959 = vpack.c.bf16 %v895, %v895
  %v960 = vpack.c.bf16 %v896, %v896
  %v961 = vpack.c.bf16 %v897, %v897
  %v962 = vpack.c.bf16 %v898, %v898
  %v963 = vpack.c.bf16 %v899, %v899
  %v964 = vpack.c.bf16 %v900, %v900
  %v965 = vpack.c.bf16 %v901, %v901
  %v966 = vpack.c.bf16 %v902, %v902
  %v967 = vpack.c.bf16 %v903, %v903
  %v968 = vpack.c.bf16 %v904, %v904
  %v969 = vpack.c.bf16 %v905, %v905
  %v970 = vpack.c.bf16 %v906, %v906
  %v971 = vpack.c.bf16 %v907, %v907
  %v972 = vpack.c.bf16 %v908, %v908
  %v973 = vpack.c.bf16 %v909, %v909
  %v974 = vpack.c.bf16 %v910, %v910
  %v975 = vpack.c.bf16 %v911, %v911
  %v976 = vpack.c.bf16 %v912, %v912
  %v977 = vpack.c.bf16 %v913, %v913
  %v978 = vpack.c.bf16 %v914, %v914
  %v979 = vpack.c.bf16 %v915, %v915
  %v980 = vpack.c.bf16 %v916, %v916
  %v981 = vpack.c.bf16 %v917, %v917
  %v982 = vpack.c.bf16 %v918, %v918
  %v983 = vpack.c.bf16 %v919, %v919
  %v984 = vpack.c.bf16 %v920, %v920
  %v985 = vpack.c.bf16 %v921, %v921
  %v986 = vpack.c.bf16 %v922, %v922
  %v987 = vpack.c.bf16 %v923, %v923
  %v988 = vpack.c.bf16 %v924, %v924
  %v989 = vpack.c.bf16 %v925, %v925
  %v990 = vpack.c.bf16 %v926, %v926
  %v991 = vpack.c.bf16 %v927, %v927
  %v992 = vpack.c.bf16 %v928, %v928
  %v993 = vpack.c.bf16 %v929, %v929
  %v994 = vpack.c.bf16 %v930, %v930
  %v995 = vpack.c.bf16 %v931, %v931
  %996 = vst [vmem:[%s3] sm:$0xf] %v932
  %997 = vst [vmem:[%s3 + $0x4] sm:$0xf] %v933
  %998 = vst [vmem:[%s3 + $0x8] sm:$0xf] %v934
  %999 = vst [vmem:[%s3 + $0xc] sm:$0xf] %v935
  %1000 = vst [vmem:[%s3 + $0x10] sm:$0xf] %v936
  %1001 = vst [vmem:[%s3 + $0x14] sm:$0xf] %v937
  %1002 = vst [vmem:[%s3 + $0x18] sm:$0xf] %v938
  %1003 = vst [vmem:[%s3 + $0x1c] sm:$0xf] %v939
  %1004 = vst [vmem:[%s3 + $0x20] sm:$0xf] %v940
  %1005 = vst [vmem:[%s3 + $0x24] sm:$0xf] %v941
  %1006 = vst [vmem:[%s3 + $0x28] sm:$0xf] %v942
  %1007 = vst [vmem:[%s3 + $0x2c] sm:$0xf] %v943
  %1008 = vst [vmem:[%s3 + $0x30] sm:$0xf] %v944
  %1009 = vst [vmem:[%s3 + $0x34] sm:$0xf] %v945
  %1010 = vst [vmem:[%s3 + $0x38] sm:$0xf] %v946
  %1011 = vst [vmem:[%s3 + $0x3c] sm:$0xf] %v947
  %1012 = vst [vmem:[%s3 + $0x40] sm:$0xf] %v948
  %1013 = vst [vmem:[%s3 + $0x44] sm:$0xf] %v949
  %1014 = vst [vmem:[%s3 + $0x48] sm:$0xf] %v950
  %1015 = vst [vmem:[%s3 + $0x4c] sm:$0xf] %v951
  %1016 = vst [vmem:[%s3 + $0x50] sm:$0xf] %v952
  %1017 = vst [vmem:[%s3 + $0x54] sm:$0xf] %v953
  %1018 = vst [vmem:[%s3 + $0x58] sm:$0xf] %v954
  %1019 = vst [vmem:[%s3 + $0x5c] sm:$0xf] %v955
  %1020 = vst [vmem:[%s3 + $0x60] sm:$0xf] %v956
  %1021 = vst [vmem:[%s3 + $0x64] sm:$0xf] %v957
  %1022 = vst [vmem:[%s3 + $0x68] sm:$0xf] %v958
  %1023 = vst [vmem:[%s3 + $0x6c] sm:$0xf] %v959
  %1024 = vst [vmem:[%s3 + $0x70] sm:$0xf] %v960
  %1025 = vst [vmem:[%s3 + $0x74] sm:$0xf] %v961
  %1026 = vst [vmem:[%s3 + $0x78] sm:$0xf] %v962
  %1027 = vst [vmem:[%s3 + $0x7c] sm:$0xf] %v963
  %1028 = vst [vmem:[%s3 + $0x80] sm:$0xf] %v964
  %1029 = vst [vmem:[%s3 + $0x84] sm:$0xf] %v965
  %1030 = vst [vmem:[%s3 + $0x88] sm:$0xf] %v966
  %1031 = vst [vmem:[%s3 + $0x8c] sm:$0xf] %v967
  %1032 = vst [vmem:[%s3 + $0x90] sm:$0xf] %v968
  %1033 = vst [vmem:[%s3 + $0x94] sm:$0xf] %v969
  %1034 = vst [vmem:[%s3 + $0x98] sm:$0xf] %v970
  %1035 = vst [vmem:[%s3 + $0x9c] sm:$0xf] %v971
  %1036 = vst [vmem:[%s3 + $0xa0] sm:$0xf] %v972
  %1037 = vst [vmem:[%s3 + $0xa4] sm:$0xf] %v973
  %1038 = vst [vmem:[%s3 + $0xa8] sm:$0xf] %v974
  %1039 = vst [vmem:[%s3 + $0xac] sm:$0xf] %v975
  %1040 = vst [vmem:[%s3 + $0xb0] sm:$0xf] %v976
  %1041 = vst [vmem:[%s3 + $0xb4] sm:$0xf] %v977
  %1042 = vst [vmem:[%s3 + $0xb8] sm:$0xf] %v978
  %1043 = vst [vmem:[%s3 + $0xbc] sm:$0xf] %v979
  %1044 = vst [vmem:[%s3 + $0xc0] sm:$0xf] %v980
  %1045 = vst [vmem:[%s3 + $0xc4] sm:$0xf] %v981
  %1046 = vst [vmem:[%s3 + $0xc8] sm:$0xf] %v982
  %1047 = vst [vmem:[%s3 + $0xcc] sm:$0xf] %v983
  %1048 = vst [vmem:[%s3 + $0xd0] sm:$0xf] %v984
  %1049 = vst [vmem:[%s3 + $0xd4] sm:$0xf] %v985
  %1050 = vst [vmem:[%s3 + $0xd8] sm:$0xf] %v986
  %1051 = vst [vmem:[%s3 + $0xdc] sm:$0xf] %v987
  %1052 = vst [vmem:[%s3 + $0xe0] sm:$0xf] %v988
  %1053 = vst [vmem:[%s3 + $0xe4] sm:$0xf] %v989
  %1054 = vst [vmem:[%s3 + $0xe8] sm:$0xf] %v990
  %1055 = vst [vmem:[%s3 + $0xec] sm:$0xf] %v991
  %1056 = vst [vmem:[%s3 + $0xf0] sm:$0xf] %v992
  %1057 = vst [vmem:[%s3 + $0xf4] sm:$0xf] %v993
  %1058 = vst [vmem:[%s3 + $0xf8] sm:$0xf] %v994
  %1059 = vst [vmem:[%s3 + $0xfc] sm:$0xf] %v995
  // Predicated region
  $region14: #{resnet_generator_forward.10} parent=0 // pred_check
    _
  $region15: #{resnet_generator_forward.10} parent=0 // pred_check_branch
    %1061 = sbr.rel (0) target = $region17
  $region16: #{resnet_generator_forward.10} parent=0 // pred_region
    _
  $region17: #{resnet_generator_forward.10} parent=0 // pred_fallthru
    _
  // Predicated region
  $region18: #{resnet_generator_forward.10} parent=0 // pred_check
    _
  $region19: #{resnet_generator_forward.10} parent=0 // pred_check_branch
    %1063 = sbr.rel (0) target = $region21
  $region20: #{resnet_generator_forward.10} parent=0 // pred_region
    _
  $region21: #{resnet_generator_forward.10} parent=0 // pred_fallthru
    _

// kernel: resnet_generator_forward.11
$region0: #{resnet_generator_forward.11}
  #allocation0 [shape = 'u32[]', space=smem, size = 0x4, offset = 0x4, fixed_abs, tag = 'smem constant byte address 0x4 - core index']
  #allocation1 [shape = 'u32[72,128]{1,0:T(1,128)}', space=vmem, size = 0x9000, scoped, tag = 'internal scratch']
  %s0 = inlined_call_operand.vmem [shape: bf16[128,128], index: 0, kind: input, shape index: {}]
  %s1 = inlined_call_operand.vmem [shape: bf16[128,128], index: 1, kind: input, shape index: {}]
  %s2 = inlined_call_operand.vmem [shape: f32[1,128], index: 2, kind: input, shape index: {}]
  %s3 = inlined_call_operand.vmem [shape: bf16[128,128], index: 3, kind: output, shape index: {}]
  %s4 = sld [smem:[#allocation0]]
  $region22: #{resnet_generator_forward.11} parent=0
    _
  %s6 = ssub.s32 1, %s4
  %s7 = scalar_select 0, %s6, %s4
  // Predicated region
  $region2: #{resnet_generator_forward.11} parent=0 // pred_check
    _
  $region3: #{resnet_generator_forward.11} parent=0 // pred_check_branch
    %9 = sbr.rel (0) target = $region5
  $region4: #{resnet_generator_forward.11} parent=0 // pred_region
    _
  $region5: #{resnet_generator_forward.11} parent=0 // pred_fallthru
    _
  // Predicated region
  $region6: #{resnet_generator_forward.11} parent=0 // pred_check
    _
  $region7: #{resnet_generator_forward.11} parent=0 // pred_check_branch
    %11 = sbr.rel (0) target = $region9
  $region8: #{resnet_generator_forward.11} parent=0 // pred_region
    _
  $region9: #{resnet_generator_forward.11} parent=0 // pred_fallthru
    _
  // Predicated region
  $region10: #{resnet_generator_forward.11} parent=0 // pred_check
    _
  $region11: #{resnet_generator_forward.11} parent=0 // pred_check_branch
    %13 = sbr.rel (0) target = $region13
  $region12: #{resnet_generator_forward.11} parent=0 // pred_region
    _
  $region13: #{resnet_generator_forward.11} parent=0 // pred_fallthru
    _
  %v14 = vld [vmem:[%s0] sm:$0xf]
  %v15 = vld [vmem:[%s0 + $0x4] sm:$0xf]
  %v16 = vld [vmem:[%s0 + $0x8] sm:$0xf]
  %v17 = vld [vmem:[%s0 + $0xc] sm:$0xf]
  %v18 = vld [vmem:[%s0 + $0x10] sm:$0xf]
  %v19 = vld [vmem:[%s0 + $0x14] sm:$0xf]
  %v20 = vld [vmem:[%s0 + $0x18] sm:$0xf]
  %v21 = vld [vmem:[%s0 + $0x1c] sm:$0xf]
  %v22 = vld [vmem:[%s0 + $0x20] sm:$0xf]
  %v23 = vld [vmem:[%s0 + $0x24] sm:$0xf]
  %v24 = vld [vmem:[%s0 + $0x28] sm:$0xf]
  %v25 = vld [vmem:[%s0 + $0x2c] sm:$0xf]
  %v26 = vld [vmem:[%s0 + $0x30] sm:$0xf]
  %v27 = vld [vmem:[%s0 + $0x34] sm:$0xf]
  %v28 = vld [vmem:[%s0 + $0x38] sm:$0xf]
  %v29 = vld [vmem:[%s0 + $0x3c] sm:$0xf]
  %v30 = vld [vmem:[%s1] sm:$0xf]
  %v31 = vld [vmem:[%s1 + $0x4] sm:$0xf]
  %v32 = vld [vmem:[%s1 + $0x8] sm:$0xf]
  %v33 = vld [vmem:[%s1 + $0xc] sm:$0xf]
  %v34 = vld [vmem:[%s1 + $0x10] sm:$0xf]
  %v35 = vld [vmem:[%s1 + $0x14] sm:$0xf]
  %v36 = vld [vmem:[%s1 + $0x18] sm:$0xf]
  %v37 = vld [vmem:[%s1 + $0x1c] sm:$0xf]
  %v38 = vld [vmem:[%s1 + $0x20] sm:$0xf]
  %v39 = vld [vmem:[%s1 + $0x24] sm:$0xf]
  %v40 = vld [vmem:[%s1 + $0x28] sm:$0xf]
  %v41 = vld [vmem:[%s1 + $0x2c] sm:$0xf]
  %v42 = vld [vmem:[%s1 + $0x30] sm:$0xf]
  %v43 = vld [vmem:[%s1 + $0x34] sm:$0xf]
  %v44 = vld [vmem:[%s1 + $0x38] sm:$0xf]
  %v45 = vld [vmem:[%s1 + $0x3c] sm:$0xf]
  %v46 = vld [vmem:[%s2] sm:$0x1]
  %v48 = vperm.slane %v46, 0
  %v66 = vunpack.c.l.b16 %v14
  %v67 = vunpack.c.l.b16 %v15
  %v68 = vunpack.c.l.b16 %v16
  %v69 = vunpack.c.l.b16 %v17
  %v70 = vunpack.c.l.b16 %v18
  %v71 = vunpack.c.l.b16 %v19
  %v72 = vunpack.c.l.b16 %v20
  %v73 = vunpack.c.l.b16 %v21
  %v74 = vunpack.c.l.b16 %v22
  %v75 = vunpack.c.l.b16 %v23
  %v76 = vunpack.c.l.b16 %v24
  %v77 = vunpack.c.l.b16 %v25
  %v78 = vunpack.c.l.b16 %v26
  %v79 = vunpack.c.l.b16 %v27
  %v80 = vunpack.c.l.b16 %v28
  %v81 = vunpack.c.l.b16 %v29
  %v82 = vpack.c.b16 %v67, %v66
  %v83 = vpack.c.b16 %v69, %v68
  %v84 = vpack.c.b16 %v71, %v70
  %v85 = vpack.c.b16 %v73, %v72
  %v86 = vpack.c.b16 %v75, %v74
  %v87 = vpack.c.b16 %v77, %v76
  %v88 = vpack.c.b16 %v79, %v78
  %v89 = vpack.c.b16 %v81, %v80
  %v114 = vunpack.c.l.b16 %v30
  %v115 = vunpack.c.l.b16 %v31
  %v116 = vunpack.c.l.b16 %v32
  %v117 = vunpack.c.l.b16 %v33
  %v118 = vunpack.c.l.b16 %v34
  %v119 = vunpack.c.l.b16 %v35
  %v120 = vunpack.c.l.b16 %v36
  %v121 = vunpack.c.l.b16 %v37
  %v122 = vunpack.c.l.b16 %v38
  %v123 = vunpack.c.l.b16 %v39
  %v124 = vunpack.c.l.b16 %v40
  %v125 = vunpack.c.l.b16 %v41
  %v126 = vunpack.c.l.b16 %v42
  %v127 = vunpack.c.l.b16 %v43
  %v128 = vunpack.c.l.b16 %v44
  %v129 = vunpack.c.l.b16 %v45
  %v130 = vpack.c.b16 %v115, %v114
  %v131 = vpack.c.b16 %v117, %v116
  %v132 = vpack.c.b16 %v119, %v118
  %v133 = vpack.c.b16 %v121, %v120
  %v134 = vpack.c.b16 %v123, %v122
  %v135 = vpack.c.b16 %v125, %v124
  %v136 = vpack.c.b16 %v127, %v126
  %v137 = vpack.c.b16 %v129, %v128
  %146 = vmatpush.bf16.msra.mxu0 %v137
  %147 = vmatpush.bf16.msra.mxu0 %v136
  %148 = vmatpush.bf16.msra.mxu0 %v135
  %149 = vmatpush.bf16.msra.mxu0 %v134
  %150 = vmatpush.bf16.msra.mxu0 %v133
  %151 = vmatpush.bf16.msra.mxu0 %v132
  %152 = vmatpush.bf16.msra.mxu0 %v131
  %153 = vmatpush.bf16.msra.mxu0 %v130
  %154 = vmatmul.bf16.gmra.mxu0 %v82
  %v155 = vpop.f32.mrf.mxu0
  %v156 = vadd.f32 %v48, %v155
  %v157 = vpop.f32.mrf.mxu0
  %v158 = vadd.f32 %v48, %v157
  %159 = vmatmul.bf16.gmra.mxu0 %v83
  %v160 = vpop.f32.mrf.mxu0
  %v161 = vadd.f32 %v48, %v160
  %v162 = vpop.f32.mrf.mxu0
  %v163 = vadd.f32 %v48, %v162
  %164 = vmatmul.bf16.gmra.mxu0 %v84
  %v165 = vpop.f32.mrf.mxu0
  %v166 = vadd.f32 %v48, %v165
  %v167 = vpop.f32.mrf.mxu0
  %v168 = vadd.f32 %v48, %v167
  %169 = vmatmul.bf16.gmra.mxu0 %v85
  %v170 = vpop.f32.mrf.mxu0
  %v171 = vadd.f32 %v48, %v170
  %v172 = vpop.f32.mrf.mxu0
  %v173 = vadd.f32 %v48, %v172
  %174 = vmatmul.bf16.gmra.mxu0 %v86
  %v175 = vpop.f32.mrf.mxu0
  %v176 = vadd.f32 %v48, %v175
  %v177 = vpop.f32.mrf.mxu0
  %v178 = vadd.f32 %v48, %v177
  %179 = vmatmul.bf16.gmra.mxu0 %v87
  %v180 = vpop.f32.mrf.mxu0
  %v181 = vadd.f32 %v48, %v180
  %v182 = vpop.f32.mrf.mxu0
  %v183 = vadd.f32 %v48, %v182
  %184 = vmatmul.bf16.gmra.mxu0 %v88
  %v185 = vpop.f32.mrf.mxu0
  %v186 = vadd.f32 %v48, %v185
  %v187 = vpop.f32.mrf.mxu0
  %v188 = vadd.f32 %v48, %v187
  %189 = vmatmul.bf16.gmra.mxu0 %v89
  %v190 = vpop.f32.mrf.mxu0
  %v191 = vadd.f32 %v48, %v190
  %v192 = vpop.f32.mrf.mxu0
  %v193 = vadd.f32 %v48, %v192
  %194 = vdwg.mxu0
  %v195 = vmax.f32 %v156, 0.0
  %v196 = vmax.f32 %v158, 0.0
  %v197 = vmax.f32 %v161, 0.0
  %v198 = vmax.f32 %v163, 0.0
  %v199 = vmax.f32 %v166, 0.0
  %v200 = vmax.f32 %v168, 0.0
  %v201 = vmax.f32 %v171, 0.0
  %v202 = vmax.f32 %v173, 0.0
  %v203 = vmax.f32 %v176, 0.0
  %v204 = vmax.f32 %v178, 0.0
  %v205 = vmax.f32 %v181, 0.0
  %v206 = vmax.f32 %v183, 0.0
  %v207 = vmax.f32 %v186, 0.0
  %v208 = vmax.f32 %v188, 0.0
  %v209 = vmax.f32 %v191, 0.0
  %v210 = vmax.f32 %v193, 0.0
  %v211 = vpack.c.bf16 %v195, %v195
  %v212 = vpack.c.bf16 %v196, %v196
  %v213 = vpack.c.bf16 %v197, %v197
  %v214 = vpack.c.bf16 %v198, %v198
  %v215 = vpack.c.bf16 %v199, %v199
  %v216 = vpack.c.bf16 %v200, %v200
  %v217 = vpack.c.bf16 %v201, %v201
  %v218 = vpack.c.bf16 %v202, %v202
  %v219 = vpack.c.bf16 %v203, %v203
  %v220 = vpack.c.bf16 %v204, %v204
  %v221 = vpack.c.bf16 %v205, %v205
  %v222 = vpack.c.bf16 %v206, %v206
  %v223 = vpack.c.bf16 %v207, %v207
  %v224 = vpack.c.bf16 %v208, %v208
  %v225 = vpack.c.bf16 %v209, %v209
  %v226 = vpack.c.bf16 %v210, %v210
  %227 = vst [vmem:[%s3] sm:$0xf] %v211
  %228 = vst [vmem:[%s3 + $0x4] sm:$0xf] %v212
  %229 = vst [vmem:[%s3 + $0x8] sm:$0xf] %v213
  %230 = vst [vmem:[%s3 + $0xc] sm:$0xf] %v214
  %231 = vst [vmem:[%s3 + $0x10] sm:$0xf] %v215
  %232 = vst [vmem:[%s3 + $0x14] sm:$0xf] %v216
  %233 = vst [vmem:[%s3 + $0x18] sm:$0xf] %v217
  %234 = vst [vmem:[%s3 + $0x1c] sm:$0xf] %v218
  %235 = vst [vmem:[%s3 + $0x20] sm:$0xf] %v219
  %236 = vst [vmem:[%s3 + $0x24] sm:$0xf] %v220
  %237 = vst [vmem:[%s3 + $0x28] sm:$0xf] %v221
  %238 = vst [vmem:[%s3 + $0x2c] sm:$0xf] %v222
  %239 = vst [vmem:[%s3 + $0x30] sm:$0xf] %v223
  %240 = vst [vmem:[%s3 + $0x34] sm:$0xf] %v224
  %241 = vst [vmem:[%s3 + $0x38] sm:$0xf] %v225
  %242 = vst [vmem:[%s3 + $0x3c] sm:$0xf] %v226
  // Predicated region
  $region14: #{resnet_generator_forward.11} parent=0 // pred_check
    _
  $region15: #{resnet_generator_forward.11} parent=0 // pred_check_branch
    %244 = sbr.rel (0) target = $region17
  $region16: #{resnet_generator_forward.11} parent=0 // pred_region
    _
  $region17: #{resnet_generator_forward.11} parent=0 // pred_fallthru
    _
  // Predicated region
  $region18: #{resnet_generator_forward.11} parent=0 // pred_check
    _
  $region19: #{resnet_generator_forward.11} parent=0 // pred_check_branch
    %246 = sbr.rel (0) target = $region21
  $region20: #{resnet_generator_forward.11} parent=0 // pred_region
    _
  $region21: #{resnet_generator_forward.11} parent=0 // pred_fallthru
    _

// kernel: resnet_generator_forward.12
$region0: #{resnet_generator_forward.12}
  #allocation0 [shape = 'u32[]', space=smem, size = 0x4, offset = 0x4, fixed_abs, tag = 'smem constant byte address 0x4 - core index']
  #allocation1 [shape = 'u32[72,128]{1,0:T(1,128)}', space=vmem, size = 0x9000, scoped, tag = 'internal scratch']
  %s0 = inlined_call_operand.vmem [shape: bf16[32,256], index: 0, kind: input, shape index: {}]
  %s1 = inlined_call_operand.vmem [shape: bf16[256,128], index: 1, kind: input, shape index: {}]
  %s2 = inlined_call_operand.vmem [shape: f32[1,128], index: 2, kind: input, shape index: {}]
  %s3 = inlined_call_operand.vmem [shape: bf16[32,128], index: 3, kind: output, shape index: {}]
  %s4 = sld [smem:[#allocation0]]
  $region22: #{resnet_generator_forward.12} parent=0
    _
  %s6 = ssub.s32 1, %s4
  %s7 = scalar_select 0, %s6, %s4
  // Predicated region
  $region2: #{resnet_generator_forward.12} parent=0 // pred_check
    _
  $region3: #{resnet_generator_forward.12} parent=0 // pred_check_branch
    %9 = sbr.rel (0) target = $region5
  $region4: #{resnet_generator_forward.12} parent=0 // pred_region
    _
  $region5: #{resnet_generator_forward.12} parent=0 // pred_fallthru
    _
  // Predicated region
  $region6: #{resnet_generator_forward.12} parent=0 // pred_check
    _
  $region7: #{resnet_generator_forward.12} parent=0 // pred_check_branch
    %11 = sbr.rel (0) target = $region9
  $region8: #{resnet_generator_forward.12} parent=0 // pred_region
    _
  $region9: #{resnet_generator_forward.12} parent=0 // pred_fallthru
    _
  // Predicated region
  $region10: #{resnet_generator_forward.12} parent=0 // pred_check
    _
  $region11: #{resnet_generator_forward.12} parent=0 // pred_check_branch
    %13 = sbr.rel (0) target = $region13
  $region12: #{resnet_generator_forward.12} parent=0 // pred_region
    _
  $region13: #{resnet_generator_forward.12} parent=0 // pred_fallthru
    _
  %v14 = vld [vmem:[%s0] sm:$0xff]
  %v15 = vld [vmem:[%s0 + $0x8] sm:$0xff]
  %v16 = vld [vmem:[%s0 + $0x10] sm:$0xff]
  %v17 = vld [vmem:[%s0 + $0x18] sm:$0xff]
  %v18 = vld [vmem:[%s1] sm:$0xf]
  %v19 = vld [vmem:[%s1 + $0x4] sm:$0xf]
  %v20 = vld [vmem:[%s1 + $0x8] sm:$0xf]
  %v21 = vld [vmem:[%s1 + $0xc] sm:$0xf]
  %v22 = vld [vmem:[%s1 + $0x10] sm:$0xf]
  %v23 = vld [vmem:[%s1 + $0x14] sm:$0xf]
  %v24 = vld [vmem:[%s1 + $0x18] sm:$0xf]
  %v25 = vld [vmem:[%s1 + $0x1c] sm:$0xf]
  %v26 = vld [vmem:[%s1 + $0x20] sm:$0xf]
  %v27 = vld [vmem:[%s1 + $0x24] sm:$0xf]
  %v28 = vld [vmem:[%s1 + $0x28] sm:$0xf]
  %v29 = vld [vmem:[%s1 + $0x2c] sm:$0xf]
  %v30 = vld [vmem:[%s1 + $0x30] sm:$0xf]
  %v31 = vld [vmem:[%s1 + $0x34] sm:$0xf]
  %v32 = vld [vmem:[%s1 + $0x38] sm:$0xf]
  %v33 = vld [vmem:[%s1 + $0x3c] sm:$0xf]
  %v34 = vld [vmem:[%s1 + $0x40] sm:$0xf]
  %v35 = vld [vmem:[%s1 + $0x44] sm:$0xf]
  %v36 = vld [vmem:[%s1 + $0x48] sm:$0xf]
  %v37 = vld [vmem:[%s1 + $0x4c] sm:$0xf]
  %v38 = vld [vmem:[%s1 + $0x50] sm:$0xf]
  %v39 = vld [vmem:[%s1 + $0x54] sm:$0xf]
  %v40 = vld [vmem:[%s1 + $0x58] sm:$0xf]
  %v41 = vld [vmem:[%s1 + $0x5c] sm:$0xf]
  %v42 = vld [vmem:[%s1 + $0x60] sm:$0xf]
  %v43 = vld [vmem:[%s1 + $0x64] sm:$0xf]
  %v44 = vld [vmem:[%s1 + $0x68] sm:$0xf]
  %v45 = vld [vmem:[%s1 + $0x6c] sm:$0xf]
  %v46 = vld [vmem:[%s1 + $0x70] sm:$0xf]
  %v47 = vld [vmem:[%s1 + $0x74] sm:$0xf]
  %v48 = vld [vmem:[%s1 + $0x78] sm:$0xf]
  %v49 = vld [vmem:[%s1 + $0x7c] sm:$0xf]
  %v50 = vld [vmem:[%s2] sm:$0x1]
  %v52 = vperm.slane %v50, 0
  %v58 = vunpack.c.l.b16 %v14
  %v59 = vunpack.c.h.b16 %v14
  %v60 = vunpack.c.l.b16 %v15
  %v61 = vunpack.c.h.b16 %v15
  %v62 = vunpack.c.l.b16 %v16
  %v63 = vunpack.c.h.b16 %v16
  %v64 = vunpack.c.l.b16 %v17
  %v65 = vunpack.c.h.b16 %v17
  %v66 = vpack.c.b16 %v60, %v58
  %v67 = vpack.c.b16 %v61, %v59
  %v68 = vpack.c.b16 %v64, %v62
  %v69 = vpack.c.b16 %v65, %v63
  %v106 = vunpack.c.l.b16 %v18
  %v107 = vunpack.c.l.b16 %v19
  %v108 = vunpack.c.l.b16 %v20
  %v109 = vunpack.c.l.b16 %v21
  %v110 = vunpack.c.l.b16 %v22
  %v111 = vunpack.c.l.b16 %v23
  %v112 = vunpack.c.l.b16 %v24
  %v113 = vunpack.c.l.b16 %v25
  %v114 = vunpack.c.l.b16 %v26
  %v115 = vunpack.c.l.b16 %v27
  %v116 = vunpack.c.l.b16 %v28
  %v117 = vunpack.c.l.b16 %v29
  %v118 = vunpack.c.l.b16 %v30
  %v119 = vunpack.c.l.b16 %v31
  %v120 = vunpack.c.l.b16 %v32
  %v121 = vunpack.c.l.b16 %v33
  %v122 = vunpack.c.l.b16 %v34
  %v123 = vunpack.c.l.b16 %v35
  %v124 = vunpack.c.l.b16 %v36
  %v125 = vunpack.c.l.b16 %v37
  %v126 = vunpack.c.l.b16 %v38
  %v127 = vunpack.c.l.b16 %v39
  %v128 = vunpack.c.l.b16 %v40
  %v129 = vunpack.c.l.b16 %v41
  %v130 = vunpack.c.l.b16 %v42
  %v131 = vunpack.c.l.b16 %v43
  %v132 = vunpack.c.l.b16 %v44
  %v133 = vunpack.c.l.b16 %v45
  %v134 = vunpack.c.l.b16 %v46
  %v135 = vunpack.c.l.b16 %v47
  %v136 = vunpack.c.l.b16 %v48
  %v137 = vunpack.c.l.b16 %v49
  %v138 = vpack.c.b16 %v107, %v106
  %v139 = vpack.c.b16 %v109, %v108
  %v140 = vpack.c.b16 %v111, %v110
  %v141 = vpack.c.b16 %v113, %v112
  %v142 = vpack.c.b16 %v115, %v114
  %v143 = vpack.c.b16 %v117, %v116
  %v144 = vpack.c.b16 %v119, %v118
  %v145 = vpack.c.b16 %v121, %v120
  %v146 = vpack.c.b16 %v123, %v122
  %v147 = vpack.c.b16 %v125, %v124
  %v148 = vpack.c.b16 %v127, %v126
  %v149 = vpack.c.b16 %v129, %v128
  %v150 = vpack.c.b16 %v131, %v130
  %v151 = vpack.c.b16 %v133, %v132
  %v152 = vpack.c.b16 %v135, %v134
  %v153 = vpack.c.b16 %v137, %v136
  %170 = vmatpush.bf16.msra.mxu0 %v145
  %171 = vmatpush.bf16.msra.mxu0 %v144
  %172 = vmatpush.bf16.msra.mxu0 %v143
  %173 = vmatpush.bf16.msra.mxu0 %v142
  %174 = vmatpush.bf16.msra.mxu0 %v141
  %175 = vmatpush.bf16.msra.mxu0 %v140
  %176 = vmatpush.bf16.msra.mxu0 %v139
  %177 = vmatpush.bf16.msra.mxu0 %v138
  %178 = vmatmul.bf16.gmra.mxu0 %v66
  %v179 = vpop.f32.mrf.mxu0
  %v180 = vadd.f32 %v52, %v179
  %v181 = vpop.f32.mrf.mxu0
  %v182 = vadd.f32 %v52, %v181
  %183 = vmatmul.bf16.gmra.mxu0 %v68
  %v184 = vpop.f32.mrf.mxu0
  %v185 = vadd.f32 %v52, %v184
  %v186 = vpop.f32.mrf.mxu0
  %v187 = vadd.f32 %v52, %v186
  %188 = vdwg.mxu0
  %189 = vmatpush.bf16.msra.mxu0 %v153
  %190 = vmatpush.bf16.msra.mxu0 %v152
  %191 = vmatpush.bf16.msra.mxu0 %v151
  %192 = vmatpush.bf16.msra.mxu0 %v150
  %193 = vmatpush.bf16.msra.mxu0 %v149
  %194 = vmatpush.bf16.msra.mxu0 %v148
  %195 = vmatpush.bf16.msra.mxu0 %v147
  %196 = vmatpush.bf16.msra.mxu0 %v146
  %197 = vmatmul.bf16.gmra.mxu0 %v67
  %v198 = vpop.f32.mrf.mxu0
  %v199 = vadd.f32 %v180, %v198
  %v200 = vpop.f32.mrf.mxu0
  %v201 = vadd.f32 %v182, %v200
  %202 = vmatmul.bf16.gmra.mxu0 %v69
  %v203 = vpop.f32.mrf.mxu0
  %v204 = vadd.f32 %v185, %v203
  %v205 = vpop.f32.mrf.mxu0
  %v206 = vadd.f32 %v187, %v205
  %207 = vdwg.mxu0
  %v208 = vmax.f32 %v199, 0.0
  %v209 = vmax.f32 %v201, 0.0
  %v210 = vmax.f32 %v204, 0.0
  %v211 = vmax.f32 %v206, 0.0
  %v212 = vpack.c.bf16 %v208, %v208
  %v213 = vpack.c.bf16 %v209, %v209
  %v214 = vpack.c.bf16 %v210, %v210
  %v215 = vpack.c.bf16 %v211, %v211
  %216 = vst [vmem:[%s3] sm:$0xf] %v212
  %217 = vst [vmem:[%s3 + $0x4] sm:$0xf] %v213
  %218 = vst [vmem:[%s3 + $0x8] sm:$0xf] %v214
  %219 = vst [vmem:[%s3 + $0xc] sm:$0xf] %v215
  // Predicated region
  $region14: #{resnet_generator_forward.12} parent=0 // pred_check
    _
  $region15: #{resnet_generator_forward.12} parent=0 // pred_check_branch
    %221 = sbr.rel (0) target = $region17
  $region16: #{resnet_generator_forward.12} parent=0 // pred_region
    _
  $region17: #{resnet_generator_forward.12} parent=0 // pred_fallthru
    _
  // Predicated region
  $region18: #{resnet_generator_forward.12} parent=0 // pred_check
    _
  $region19: #{resnet_generator_forward.12} parent=0 // pred_check_branch
    %223 = sbr.rel (0) target = $region21
  $region20: #{resnet_generator_forward.12} parent=0 // pred_region
    _
  $region21: #{resnet_generator_forward.12} parent=0 // pred_fallthru
    _

// kernel: resnet_generator_forward.13
$region0: #{resnet_generator_forward.13}
  #allocation0 [shape = 'u32[]', space=smem, size = 0x4, offset = 0x4, fixed_abs, tag = 'smem constant byte address 0x4 - core index']
  #allocation1 [shape = 'u32[72,128]{1,0:T(1,128)}', space=vmem, size = 0x9000, scoped, tag = 'internal scratch']
  %s0 = inlined_call_operand.vmem [shape: bf16[32,384], index: 0, kind: input, shape index: {}]
  %s1 = inlined_call_operand.vmem [shape: bf16[384,128], index: 1, kind: input, shape index: {}]
  %s2 = inlined_call_operand.vmem [shape: f32[1,128], index: 2, kind: input, shape index: {}]
  %s3 = inlined_call_operand.vmem [shape: bf16[32,128], index: 3, kind: output, shape index: {}]
  %s4 = sld [smem:[#allocation0]]
  $region22: #{resnet_generator_forward.13} parent=0
    _
  %s6 = ssub.s32 1, %s4
  %s7 = scalar_select 0, %s6, %s4
  // Predicated region
  $region2: #{resnet_generator_forward.13} parent=0 // pred_check
    _
  $region3: #{resnet_generator_forward.13} parent=0 // pred_check_branch
    %9 = sbr.rel (0) target = $region5
  $region4: #{resnet_generator_forward.13} parent=0 // pred_region
    _
  $region5: #{resnet_generator_forward.13} parent=0 // pred_fallthru
    _
  // Predicated region
  $region6: #{resnet_generator_forward.13} parent=0 // pred_check
    _
  $region7: #{resnet_generator_forward.13} parent=0 // pred_check_branch
    %11 = sbr.rel (0) target = $region9
  $region8: #{resnet_generator_forward.13} parent=0 // pred_region
    _
  $region9: #{resnet_generator_forward.13} parent=0 // pred_fallthru
    _
  // Predicated region
  $region10: #{resnet_generator_forward.13} parent=0 // pred_check
    _
  $region11: #{resnet_generator_forward.13} parent=0 // pred_check_branch
    %13 = sbr.rel (0) target = $region13
  $region12: #{resnet_generator_forward.13} parent=0 // pred_region
    _
  $region13: #{resnet_generator_forward.13} parent=0 // pred_fallthru
    _
  %v14 = vld [vmem:[%s0] sm:$0xff]
  %v15 = vld [vmem:[%s0 + $0x8] sm:$0xf]
  %v16 = vld [vmem:[%s0 + $0xc] sm:$0xff]
  %v17 = vld [vmem:[%s0 + $0x14] sm:$0xf]
  %v18 = vld [vmem:[%s0 + $0x18] sm:$0xff]
  %v19 = vld [vmem:[%s0 + $0x20] sm:$0xf]
  %v20 = vld [vmem:[%s0 + $0x24] sm:$0xff]
  %v21 = vld [vmem:[%s0 + $0x2c] sm:$0xf]
  %v22 = vld [vmem:[%s1] sm:$0xf]
  %v23 = vld [vmem:[%s1 + $0x4] sm:$0xf]
  %v24 = vld [vmem:[%s1 + $0x8] sm:$0xf]
  %v25 = vld [vmem:[%s1 + $0xc] sm:$0xf]
  %v26 = vld [vmem:[%s1 + $0x10] sm:$0xf]
  %v27 = vld [vmem:[%s1 + $0x14] sm:$0xf]
  %v28 = vld [vmem:[%s1 + $0x18] sm:$0xf]
  %v29 = vld [vmem:[%s1 + $0x1c] sm:$0xf]
  %v30 = vld [vmem:[%s1 + $0x20] sm:$0xf]
  %v31 = vld [vmem:[%s1 + $0x24] sm:$0xf]
  %v32 = vld [vmem:[%s1 + $0x28] sm:$0xf]
  %v33 = vld [vmem:[%s1 + $0x2c] sm:$0xf]
  %v34 = vld [vmem:[%s1 + $0x30] sm:$0xf]
  %v35 = vld [vmem:[%s1 + $0x34] sm:$0xf]
  %v36 = vld [vmem:[%s1 + $0x38] sm:$0xf]
  %v37 = vld [vmem:[%s1 + $0x3c] sm:$0xf]
  %v38 = vld [vmem:[%s1 + $0x40] sm:$0xf]
  %v39 = vld [vmem:[%s1 + $0x44] sm:$0xf]
  %v40 = vld [vmem:[%s1 + $0x48] sm:$0xf]
  %v41 = vld [vmem:[%s1 + $0x4c] sm:$0xf]
  %v42 = vld [vmem:[%s1 + $0x50] sm:$0xf]
  %v43 = vld [vmem:[%s1 + $0x54] sm:$0xf]
  %v44 = vld [vmem:[%s1 + $0x58] sm:$0xf]
  %v45 = vld [vmem:[%s1 + $0x5c] sm:$0xf]
  %v46 = vld [vmem:[%s1 + $0x60] sm:$0xf]
  %v47 = vld [vmem:[%s1 + $0x64] sm:$0xf]
  %v48 = vld [vmem:[%s1 + $0x68] sm:$0xf]
  %v49 = vld [vmem:[%s1 + $0x6c] sm:$0xf]
  %v50 = vld [vmem:[%s1 + $0x70] sm:$0xf]
  %v51 = vld [vmem:[%s1 + $0x74] sm:$0xf]
  %v52 = vld [vmem:[%s1 + $0x78] sm:$0xf]
  %v53 = vld [vmem:[%s1 + $0x7c] sm:$0xf]
  %v54 = vld [vmem:[%s1 + $0x80] sm:$0xf]
  %v55 = vld [vmem:[%s1 + $0x84] sm:$0xf]
  %v56 = vld [vmem:[%s1 + $0x88] sm:$0xf]
  %v57 = vld [vmem:[%s1 + $0x8c] sm:$0xf]
  %v58 = vld [vmem:[%s1 + $0x90] sm:$0xf]
  %v59 = vld [vmem:[%s1 + $0x94] sm:$0xf]
  %v60 = vld [vmem:[%s1 + $0x98] sm:$0xf]
  %v61 = vld [vmem:[%s1 + $0x9c] sm:$0xf]
  %v62 = vld [vmem:[%s1 + $0xa0] sm:$0xf]
  %v63 = vld [vmem:[%s1 + $0xa4] sm:$0xf]
  %v64 = vld [vmem:[%s1 + $0xa8] sm:$0xf]
  %v65 = vld [vmem:[%s1 + $0xac] sm:$0xf]
  %v66 = vld [vmem:[%s1 + $0xb0] sm:$0xf]
  %v67 = vld [vmem:[%s1 + $0xb4] sm:$0xf]
  %v68 = vld [vmem:[%s1 + $0xb8] sm:$0xf]
  %v69 = vld [vmem:[%s1 + $0xbc] sm:$0xf]
  %v70 = vld [vmem:[%s2] sm:$0x1]
  %v72 = vperm.slane %v70, 0
  %v82 = vunpack.c.l.b16 %v14
  %v83 = vunpack.c.h.b16 %v14
  %v84 = vunpack.c.l.b16 %v15
  %v85 = vunpack.c.l.b16 %v16
  %v86 = vunpack.c.h.b16 %v16
  %v87 = vunpack.c.l.b16 %v17
  %v88 = vunpack.c.l.b16 %v18
  %v89 = vunpack.c.h.b16 %v18
  %v90 = vunpack.c.l.b16 %v19
  %v91 = vunpack.c.l.b16 %v20
  %v92 = vunpack.c.h.b16 %v20
  %v93 = vunpack.c.l.b16 %v21
  %v94 = vpack.c.b16 %v85, %v82
  %v95 = vpack.c.b16 %v86, %v83
  %v96 = vpack.c.b16 %v87, %v84
  %v97 = vpack.c.b16 %v91, %v88
  %v98 = vpack.c.b16 %v92, %v89
  %v99 = vpack.c.b16 %v93, %v90
  %v154 = vunpack.c.l.b16 %v22
  %v155 = vunpack.c.l.b16 %v23
  %v156 = vunpack.c.l.b16 %v24
  %v157 = vunpack.c.l.b16 %v25
  %v158 = vunpack.c.l.b16 %v26
  %v159 = vunpack.c.l.b16 %v27
  %v160 = vunpack.c.l.b16 %v28
  %v161 = vunpack.c.l.b16 %v29
  %v162 = vunpack.c.l.b16 %v30
  %v163 = vunpack.c.l.b16 %v31
  %v164 = vunpack.c.l.b16 %v32
  %v165 = vunpack.c.l.b16 %v33
  %v166 = vunpack.c.l.b16 %v34
  %v167 = vunpack.c.l.b16 %v35
  %v168 = vunpack.c.l.b16 %v36
  %v169 = vunpack.c.l.b16 %v37
  %v170 = vunpack.c.l.b16 %v38
  %v171 = vunpack.c.l.b16 %v39
  %v172 = vunpack.c.l.b16 %v40
  %v173 = vunpack.c.l.b16 %v41
  %v174 = vunpack.c.l.b16 %v42
  %v175 = vunpack.c.l.b16 %v43
  %v176 = vunpack.c.l.b16 %v44
  %v177 = vunpack.c.l.b16 %v45
  %v178 = vunpack.c.l.b16 %v46
  %v179 = vunpack.c.l.b16 %v47
  %v180 = vunpack.c.l.b16 %v48
  %v181 = vunpack.c.l.b16 %v49
  %v182 = vunpack.c.l.b16 %v50
  %v183 = vunpack.c.l.b16 %v51
  %v184 = vunpack.c.l.b16 %v52
  %v185 = vunpack.c.l.b16 %v53
  %v186 = vunpack.c.l.b16 %v54
  %v187 = vunpack.c.l.b16 %v55
  %v188 = vunpack.c.l.b16 %v56
  %v189 = vunpack.c.l.b16 %v57
  %v190 = vunpack.c.l.b16 %v58
  %v191 = vunpack.c.l.b16 %v59
  %v192 = vunpack.c.l.b16 %v60
  %v193 = vunpack.c.l.b16 %v61
  %v194 = vunpack.c.l.b16 %v62
  %v195 = vunpack.c.l.b16 %v63
  %v196 = vunpack.c.l.b16 %v64
  %v197 = vunpack.c.l.b16 %v65
  %v198 = vunpack.c.l.b16 %v66
  %v199 = vunpack.c.l.b16 %v67
  %v200 = vunpack.c.l.b16 %v68
  %v201 = vunpack.c.l.b16 %v69
  %v202 = vpack.c.b16 %v155, %v154
  %v203 = vpack.c.b16 %v157, %v156
  %v204 = vpack.c.b16 %v159, %v158
  %v205 = vpack.c.b16 %v161, %v160
  %v206 = vpack.c.b16 %v163, %v162
  %v207 = vpack.c.b16 %v165, %v164
  %v208 = vpack.c.b16 %v167, %v166
  %v209 = vpack.c.b16 %v169, %v168
  %v210 = vpack.c.b16 %v171, %v170
  %v211 = vpack.c.b16 %v173, %v172
  %v212 = vpack.c.b16 %v175, %v174
  %v213 = vpack.c.b16 %v177, %v176
  %v214 = vpack.c.b16 %v179, %v178
  %v215 = vpack.c.b16 %v181, %v180
  %v216 = vpack.c.b16 %v183, %v182
  %v217 = vpack.c.b16 %v185, %v184
  %v218 = vpack.c.b16 %v187, %v186
  %v219 = vpack.c.b16 %v189, %v188
  %v220 = vpack.c.b16 %v191, %v190
  %v221 = vpack.c.b16 %v193, %v192
  %v222 = vpack.c.b16 %v195, %v194
  %v223 = vpack.c.b16 %v197, %v196
  %v224 = vpack.c.b16 %v199, %v198
  %v225 = vpack.c.b16 %v201, %v200
  %250 = vmatpush.bf16.msra.mxu0 %v209
  %251 = vmatpush.bf16.msra.mxu0 %v208
  %252 = vmatpush.bf16.msra.mxu0 %v207
  %253 = vmatpush.bf16.msra.mxu0 %v206
  %254 = vmatpush.bf16.msra.mxu0 %v205
  %255 = vmatpush.bf16.msra.mxu0 %v204
  %256 = vmatpush.bf16.msra.mxu0 %v203
  %257 = vmatpush.bf16.msra.mxu0 %v202
  %258 = vmatmul.bf16.gmra.mxu0 %v94
  %v259 = vpop.f32.mrf.mxu0
  %v260 = vadd.f32 %v72, %v259
  %v261 = vpop.f32.mrf.mxu0
  %v262 = vadd.f32 %v72, %v261
  %263 = vmatmul.bf16.gmra.mxu0 %v97
  %v264 = vpop.f32.mrf.mxu0
  %v265 = vadd.f32 %v72, %v264
  %v266 = vpop.f32.mrf.mxu0
  %v267 = vadd.f32 %v72, %v266
  %268 = vdwg.mxu0
  %269 = vmatpush.bf16.msra.mxu0 %v217
  %270 = vmatpush.bf16.msra.mxu0 %v216
  %271 = vmatpush.bf16.msra.mxu0 %v215
  %272 = vmatpush.bf16.msra.mxu0 %v214
  %273 = vmatpush.bf16.msra.mxu0 %v213
  %274 = vmatpush.bf16.msra.mxu0 %v212
  %275 = vmatpush.bf16.msra.mxu0 %v211
  %276 = vmatpush.bf16.msra.mxu0 %v210
  %277 = vmatmul.bf16.gmra.mxu0 %v95
  %v278 = vpop.f32.mrf.mxu0
  %v279 = vadd.f32 %v260, %v278
  %v280 = vpop.f32.mrf.mxu0
  %v281 = vadd.f32 %v262, %v280
  %282 = vmatmul.bf16.gmra.mxu0 %v98
  %v283 = vpop.f32.mrf.mxu0
  %v284 = vadd.f32 %v265, %v283
  %v285 = vpop.f32.mrf.mxu0
  %v286 = vadd.f32 %v267, %v285
  %287 = vdwg.mxu0
  %288 = vmatpush.bf16.msra.mxu0 %v225
  %289 = vmatpush.bf16.msra.mxu0 %v224
  %290 = vmatpush.bf16.msra.mxu0 %v223
  %291 = vmatpush.bf16.msra.mxu0 %v222
  %292 = vmatpush.bf16.msra.mxu0 %v221
  %293 = vmatpush.bf16.msra.mxu0 %v220
  %294 = vmatpush.bf16.msra.mxu0 %v219
  %295 = vmatpush.bf16.msra.mxu0 %v218
  %296 = vmatmul.bf16.gmra.mxu0 %v96
  %v297 = vpop.f32.mrf.mxu0
  %v298 = vadd.f32 %v279, %v297
  %v299 = vpop.f32.mrf.mxu0
  %v300 = vadd.f32 %v281, %v299
  %301 = vmatmul.bf16.gmra.mxu0 %v99
  %v302 = vpop.f32.mrf.mxu0
  %v303 = vadd.f32 %v284, %v302
  %v304 = vpop.f32.mrf.mxu0
  %v305 = vadd.f32 %v286, %v304
  %306 = vdwg.mxu0
  %v307 = vmax.f32 %v298, 0.0
  %v308 = vmax.f32 %v300, 0.0
  %v309 = vmax.f32 %v303, 0.0
  %v310 = vmax.f32 %v305, 0.0
  %v311 = vpack.c.bf16 %v307, %v307
  %v312 = vpack.c.bf16 %v308, %v308
  %v313 = vpack.c.bf16 %v309, %v309
  %v314 = vpack.c.bf16 %v310, %v310
  %315 = vst [vmem:[%s3] sm:$0xf] %v311
  %316 = vst [vmem:[%s3 + $0x4] sm:$0xf] %v312
  %317 = vst [vmem:[%s3 + $0x8] sm:$0xf] %v313
  %318 = vst [vmem:[%s3 + $0xc] sm:$0xf] %v314
  // Predicated region
  $region14: #{resnet_generator_forward.13} parent=0 // pred_check
    _
  $region15: #{resnet_generator_forward.13} parent=0 // pred_check_branch
    %320 = sbr.rel (0) target = $region17
  $region16: #{resnet_generator_forward.13} parent=0 // pred_region
    _
  $region17: #{resnet_generator_forward.13} parent=0 // pred_fallthru
    _
  // Predicated region
  $region18: #{resnet_generator_forward.13} parent=0 // pred_check
    _
  $region19: #{resnet_generator_forward.13} parent=0 // pred_check_branch
    %322 = sbr.rel (0) target = $region21
  $region20: #{resnet_generator_forward.13} parent=0 // pred_region
    _
  $region21: #{resnet_generator_forward.13} parent=0 // pred_fallthru
    _

// kernel: resnet_generator_forward.14
$region0: #{resnet_generator_forward.14}
  #allocation0 [shape = 'u32[]', space=smem, size = 0x4, offset = 0x4, fixed_abs, tag = 'smem constant byte address 0x4 - core index']
  #allocation1 [shape = 'u32[72,128]{1,0:T(1,128)}', space=vmem, size = 0x9000, scoped, tag = 'internal scratch']
  %s0 = inlined_call_operand.vmem [shape: bf16[32,384], index: 0, kind: input, shape index: {}]
  %s1 = inlined_call_operand.vmem [shape: bf16[384,128], index: 1, kind: input, shape index: {}]
  %s2 = inlined_call_operand.vmem [shape: f32[1,128], index: 2, kind: input, shape index: {}]
  %s3 = inlined_call_operand.vmem [shape: bf16[32,128], index: 3, kind: input, shape index: {}]
  %s4 = inlined_call_operand.vmem [shape: bf16[32,128], index: 4, kind: output, shape index: {}]
  %s5 = sld [smem:[#allocation0]]
  $region26: #{resnet_generator_forward.14} parent=0
    _
  %s7 = ssub.s32 1, %s5
  %s8 = scalar_select 0, %s7, %s5
  // Predicated region
  $region2: #{resnet_generator_forward.14} parent=0 // pred_check
    _
  $region3: #{resnet_generator_forward.14} parent=0 // pred_check_branch
    %10 = sbr.rel (0) target = $region5
  $region4: #{resnet_generator_forward.14} parent=0 // pred_region
    _
  $region5: #{resnet_generator_forward.14} parent=0 // pred_fallthru
    _
  // Predicated region
  $region6: #{resnet_generator_forward.14} parent=0 // pred_check
    _
  $region7: #{resnet_generator_forward.14} parent=0 // pred_check_branch
    %12 = sbr.rel (0) target = $region9
  $region8: #{resnet_generator_forward.14} parent=0 // pred_region
    _
  $region9: #{resnet_generator_forward.14} parent=0 // pred_fallthru
    _
  // Predicated region
  $region10: #{resnet_generator_forward.14} parent=0 // pred_check
    _
  $region11: #{resnet_generator_forward.14} parent=0 // pred_check_branch
    %14 = sbr.rel (0) target = $region13
  $region12: #{resnet_generator_forward.14} parent=0 // pred_region
    _
  $region13: #{resnet_generator_forward.14} parent=0 // pred_fallthru
    _
  // Predicated region
  $region14: #{resnet_generator_forward.14} parent=0 // pred_check
    _
  $region15: #{resnet_generator_forward.14} parent=0 // pred_check_branch
    %16 = sbr.rel (0) target = $region17
  $region16: #{resnet_generator_forward.14} parent=0 // pred_region
    _
  $region17: #{resnet_generator_forward.14} parent=0 // pred_fallthru
    _
  %v17 = vld [vmem:[%s0] sm:$0xff]
  %v18 = vld [vmem:[%s0 + $0x8] sm:$0xf]
  %v19 = vld [vmem:[%s0 + $0xc] sm:$0xff]
  %v20 = vld [vmem:[%s0 + $0x14] sm:$0xf]
  %v21 = vld [vmem:[%s0 + $0x18] sm:$0xff]
  %v22 = vld [vmem:[%s0 + $0x20] sm:$0xf]
  %v23 = vld [vmem:[%s0 + $0x24] sm:$0xff]
  %v24 = vld [vmem:[%s0 + $0x2c] sm:$0xf]
  %v25 = vld [vmem:[%s1] sm:$0xf]
  %v26 = vld [vmem:[%s1 + $0x4] sm:$0xf]
  %v27 = vld [vmem:[%s1 + $0x8] sm:$0xf]
  %v28 = vld [vmem:[%s1 + $0xc] sm:$0xf]
  %v29 = vld [vmem:[%s1 + $0x10] sm:$0xf]
  %v30 = vld [vmem:[%s1 + $0x14] sm:$0xf]
  %v31 = vld [vmem:[%s1 + $0x18] sm:$0xf]
  %v32 = vld [vmem:[%s1 + $0x1c] sm:$0xf]
  %v33 = vld [vmem:[%s1 + $0x20] sm:$0xf]
  %v34 = vld [vmem:[%s1 + $0x24] sm:$0xf]
  %v35 = vld [vmem:[%s1 + $0x28] sm:$0xf]
  %v36 = vld [vmem:[%s1 + $0x2c] sm:$0xf]
  %v37 = vld [vmem:[%s1 + $0x30] sm:$0xf]
  %v38 = vld [vmem:[%s1 + $0x34] sm:$0xf]
  %v39 = vld [vmem:[%s1 + $0x38] sm:$0xf]
  %v40 = vld [vmem:[%s1 + $0x3c] sm:$0xf]
  %v41 = vld [vmem:[%s1 + $0x40] sm:$0xf]
  %v42 = vld [vmem:[%s1 + $0x44] sm:$0xf]
  %v43 = vld [vmem:[%s1 + $0x48] sm:$0xf]
  %v44 = vld [vmem:[%s1 + $0x4c] sm:$0xf]
  %v45 = vld [vmem:[%s1 + $0x50] sm:$0xf]
  %v46 = vld [vmem:[%s1 + $0x54] sm:$0xf]
  %v47 = vld [vmem:[%s1 + $0x58] sm:$0xf]
  %v48 = vld [vmem:[%s1 + $0x5c] sm:$0xf]
  %v49 = vld [vmem:[%s1 + $0x60] sm:$0xf]
  %v50 = vld [vmem:[%s1 + $0x64] sm:$0xf]
  %v51 = vld [vmem:[%s1 + $0x68] sm:$0xf]
  %v52 = vld [vmem:[%s1 + $0x6c] sm:$0xf]
  %v53 = vld [vmem:[%s1 + $0x70] sm:$0xf]
  %v54 = vld [vmem:[%s1 + $0x74] sm:$0xf]
  %v55 = vld [vmem:[%s1 + $0x78] sm:$0xf]
  %v56 = vld [vmem:[%s1 + $0x7c] sm:$0xf]
  %v57 = vld [vmem:[%s1 + $0x80] sm:$0xf]
  %v58 = vld [vmem:[%s1 + $0x84] sm:$0xf]
  %v59 = vld [vmem:[%s1 + $0x88] sm:$0xf]
  %v60 = vld [vmem:[%s1 + $0x8c] sm:$0xf]
  %v61 = vld [vmem:[%s1 + $0x90] sm:$0xf]
  %v62 = vld [vmem:[%s1 + $0x94] sm:$0xf]
  %v63 = vld [vmem:[%s1 + $0x98] sm:$0xf]
  %v64 = vld [vmem:[%s1 + $0x9c] sm:$0xf]
  %v65 = vld [vmem:[%s1 + $0xa0] sm:$0xf]
  %v66 = vld [vmem:[%s1 + $0xa4] sm:$0xf]
  %v67 = vld [vmem:[%s1 + $0xa8] sm:$0xf]
  %v68 = vld [vmem:[%s1 + $0xac] sm:$0xf]
  %v69 = vld [vmem:[%s1 + $0xb0] sm:$0xf]
  %v70 = vld [vmem:[%s1 + $0xb4] sm:$0xf]
  %v71 = vld [vmem:[%s1 + $0xb8] sm:$0xf]
  %v72 = vld [vmem:[%s1 + $0xbc] sm:$0xf]
  %v73 = vld [vmem:[%s2] sm:$0x1]
  %v75 = vperm.slane %v73, 0
  %v85 = vunpack.c.l.b16 %v17
  %v86 = vunpack.c.h.b16 %v17
  %v87 = vunpack.c.l.b16 %v18
  %v88 = vunpack.c.l.b16 %v19
  %v89 = vunpack.c.h.b16 %v19
  %v90 = vunpack.c.l.b16 %v20
  %v91 = vunpack.c.l.b16 %v21
  %v92 = vunpack.c.h.b16 %v21
  %v93 = vunpack.c.l.b16 %v22
  %v94 = vunpack.c.l.b16 %v23
  %v95 = vunpack.c.h.b16 %v23
  %v96 = vunpack.c.l.b16 %v24
  %v97 = vpack.c.b16 %v88, %v85
  %v98 = vpack.c.b16 %v89, %v86
  %v99 = vpack.c.b16 %v90, %v87
  %v100 = vpack.c.b16 %v94, %v91
  %v101 = vpack.c.b16 %v95, %v92
  %v102 = vpack.c.b16 %v96, %v93
  %v157 = vunpack.c.l.b16 %v25
  %v158 = vunpack.c.l.b16 %v26
  %v159 = vunpack.c.l.b16 %v27
  %v160 = vunpack.c.l.b16 %v28
  %v161 = vunpack.c.l.b16 %v29
  %v162 = vunpack.c.l.b16 %v30
  %v163 = vunpack.c.l.b16 %v31
  %v164 = vunpack.c.l.b16 %v32
  %v165 = vunpack.c.l.b16 %v33
  %v166 = vunpack.c.l.b16 %v34
  %v167 = vunpack.c.l.b16 %v35
  %v168 = vunpack.c.l.b16 %v36
  %v169 = vunpack.c.l.b16 %v37
  %v170 = vunpack.c.l.b16 %v38
  %v171 = vunpack.c.l.b16 %v39
  %v172 = vunpack.c.l.b16 %v40
  %v173 = vunpack.c.l.b16 %v41
  %v174 = vunpack.c.l.b16 %v42
  %v175 = vunpack.c.l.b16 %v43
  %v176 = vunpack.c.l.b16 %v44
  %v177 = vunpack.c.l.b16 %v45
  %v178 = vunpack.c.l.b16 %v46
  %v179 = vunpack.c.l.b16 %v47
  %v180 = vunpack.c.l.b16 %v48
  %v181 = vunpack.c.l.b16 %v49
  %v182 = vunpack.c.l.b16 %v50
  %v183 = vunpack.c.l.b16 %v51
  %v184 = vunpack.c.l.b16 %v52
  %v185 = vunpack.c.l.b16 %v53
  %v186 = vunpack.c.l.b16 %v54
  %v187 = vunpack.c.l.b16 %v55
  %v188 = vunpack.c.l.b16 %v56
  %v189 = vunpack.c.l.b16 %v57
  %v190 = vunpack.c.l.b16 %v58
  %v191 = vunpack.c.l.b16 %v59
  %v192 = vunpack.c.l.b16 %v60
  %v193 = vunpack.c.l.b16 %v61
  %v194 = vunpack.c.l.b16 %v62
  %v195 = vunpack.c.l.b16 %v63
  %v196 = vunpack.c.l.b16 %v64
  %v197 = vunpack.c.l.b16 %v65
  %v198 = vunpack.c.l.b16 %v66
  %v199 = vunpack.c.l.b16 %v67
  %v200 = vunpack.c.l.b16 %v68
  %v201 = vunpack.c.l.b16 %v69
  %v202 = vunpack.c.l.b16 %v70
  %v203 = vunpack.c.l.b16 %v71
  %v204 = vunpack.c.l.b16 %v72
  %v205 = vpack.c.b16 %v158, %v157
  %v206 = vpack.c.b16 %v160, %v159
  %v207 = vpack.c.b16 %v162, %v161
  %v208 = vpack.c.b16 %v164, %v163
  %v209 = vpack.c.b16 %v166, %v165
  %v210 = vpack.c.b16 %v168, %v167
  %v211 = vpack.c.b16 %v170, %v169
  %v212 = vpack.c.b16 %v172, %v171
  %v213 = vpack.c.b16 %v174, %v173
  %v214 = vpack.c.b16 %v176, %v175
  %v215 = vpack.c.b16 %v178, %v177
  %v216 = vpack.c.b16 %v180, %v179
  %v217 = vpack.c.b16 %v182, %v181
  %v218 = vpack.c.b16 %v184, %v183
  %v219 = vpack.c.b16 %v186, %v185
  %v220 = vpack.c.b16 %v188, %v187
  %v221 = vpack.c.b16 %v190, %v189
  %v222 = vpack.c.b16 %v192, %v191
  %v223 = vpack.c.b16 %v194, %v193
  %v224 = vpack.c.b16 %v196, %v195
  %v225 = vpack.c.b16 %v198, %v197
  %v226 = vpack.c.b16 %v200, %v199
  %v227 = vpack.c.b16 %v202, %v201
  %v228 = vpack.c.b16 %v204, %v203
  %253 = vmatpush.bf16.msra.mxu0 %v212
  %254 = vmatpush.bf16.msra.mxu0 %v211
  %255 = vmatpush.bf16.msra.mxu0 %v210
  %256 = vmatpush.bf16.msra.mxu0 %v209
  %257 = vmatpush.bf16.msra.mxu0 %v208
  %258 = vmatpush.bf16.msra.mxu0 %v207
  %259 = vmatpush.bf16.msra.mxu0 %v206
  %260 = vmatpush.bf16.msra.mxu0 %v205
  %261 = vmatmul.bf16.gmra.mxu0 %v97
  %v262 = vpop.f32.mrf.mxu0
  %v263 = vadd.f32 %v75, %v262
  %v264 = vpop.f32.mrf.mxu0
  %v265 = vadd.f32 %v75, %v264
  %266 = vmatmul.bf16.gmra.mxu0 %v100
  %v267 = vpop.f32.mrf.mxu0
  %v268 = vadd.f32 %v75, %v267
  %v269 = vpop.f32.mrf.mxu0
  %v270 = vadd.f32 %v75, %v269
  %271 = vdwg.mxu0
  %272 = vmatpush.bf16.msra.mxu0 %v220
  %273 = vmatpush.bf16.msra.mxu0 %v219
  %274 = vmatpush.bf16.msra.mxu0 %v218
  %275 = vmatpush.bf16.msra.mxu0 %v217
  %276 = vmatpush.bf16.msra.mxu0 %v216
  %277 = vmatpush.bf16.msra.mxu0 %v215
  %278 = vmatpush.bf16.msra.mxu0 %v214
  %279 = vmatpush.bf16.msra.mxu0 %v213
  %280 = vmatmul.bf16.gmra.mxu0 %v98
  %v281 = vpop.f32.mrf.mxu0
  %v282 = vadd.f32 %v263, %v281
  %v283 = vpop.f32.mrf.mxu0
  %v284 = vadd.f32 %v265, %v283
  %285 = vmatmul.bf16.gmra.mxu0 %v101
  %v286 = vpop.f32.mrf.mxu0
  %v287 = vadd.f32 %v268, %v286
  %v288 = vpop.f32.mrf.mxu0
  %v289 = vadd.f32 %v270, %v288
  %290 = vdwg.mxu0
  %291 = vmatpush.bf16.msra.mxu0 %v228
  %292 = vmatpush.bf16.msra.mxu0 %v227
  %293 = vmatpush.bf16.msra.mxu0 %v226
  %294 = vmatpush.bf16.msra.mxu0 %v225
  %295 = vmatpush.bf16.msra.mxu0 %v224
  %296 = vmatpush.bf16.msra.mxu0 %v223
  %297 = vmatpush.bf16.msra.mxu0 %v222
  %298 = vmatpush.bf16.msra.mxu0 %v221
  %299 = vmatmul.bf16.gmra.mxu0 %v99
  %v300 = vpop.f32.mrf.mxu0
  %v301 = vadd.f32 %v282, %v300
  %v302 = vpop.f32.mrf.mxu0
  %v303 = vadd.f32 %v284, %v302
  %304 = vmatmul.bf16.gmra.mxu0 %v102
  %v305 = vpop.f32.mrf.mxu0
  %v306 = vadd.f32 %v287, %v305
  %v307 = vpop.f32.mrf.mxu0
  %v308 = vadd.f32 %v289, %v307
  %309 = vdwg.mxu0
  %v310 = vld [vmem:[%s3] sm:$0xf]
  %v311 = vld [vmem:[%s3 + $0x4] sm:$0xf]
  %v312 = vld [vmem:[%s3 + $0x8] sm:$0xf]
  %v313 = vld [vmem:[%s3 + $0xc] sm:$0xf]
  %v314 = vunpack.c.l.bf16 %v310
  %v315 = vunpack.c.l.bf16 %v311
  %v316 = vunpack.c.l.bf16 %v312
  %v317 = vunpack.c.l.bf16 %v313
  %v318 = vadd.f32 %v301, %v314
  %v319 = vadd.f32 %v303, %v315
  %v320 = vadd.f32 %v306, %v316
  %v321 = vadd.f32 %v308, %v317
  %v322 = vpack.c.bf16 %v318, %v318
  %v323 = vpack.c.bf16 %v319, %v319
  %v324 = vpack.c.bf16 %v320, %v320
  %v325 = vpack.c.bf16 %v321, %v321
  %326 = vst [vmem:[%s4] sm:$0xf] %v322
  %327 = vst [vmem:[%s4 + $0x4] sm:$0xf] %v323
  %328 = vst [vmem:[%s4 + $0x8] sm:$0xf] %v324
  %329 = vst [vmem:[%s4 + $0xc] sm:$0xf] %v325
  // Predicated region
  $region18: #{resnet_generator_forward.14} parent=0 // pred_check
    _
  $region19: #{resnet_generator_forward.14} parent=0 // pred_check_branch
    %331 = sbr.rel (0) target = $region21
  $region20: #{resnet_generator_forward.14} parent=0 // pred_region
    _
  $region21: #{resnet_generator_forward.14} parent=0 // pred_fallthru
    _
  // Predicated region
  $region22: #{resnet_generator_forward.14} parent=0 // pred_check
    _
  $region23: #{resnet_generator_forward.14} parent=0 // pred_check_branch
    %333 = sbr.rel (0) target = $region25
  $region24: #{resnet_generator_forward.14} parent=0 // pred_region
    _
  $region25: #{resnet_generator_forward.14} parent=0 // pred_fallthru
    _

// kernel: resnet_generator_forward.17
$region0: #{resnet_generator_forward.17}
  #allocation0 [shape = 'u32[]', space=smem, size = 0x4, offset = 0x4, fixed_abs, tag = 'smem constant byte address 0x4 - core index']
  #allocation1 [shape = 'u32[72,128]{1,0:T(1,128)}', space=vmem, size = 0x9000, scoped, tag = 'internal scratch']
  %s0 = inlined_call_operand.vmem [shape: bf16[32,128], index: 0, kind: input, shape index: {}]
  %s1 = inlined_call_operand.vmem [shape: bf16[128,128], index: 1, kind: input, shape index: {}]
  %s2 = inlined_call_operand.vmem [shape: f32[1,128], index: 2, kind: input, shape index: {}]
  %s3 = inlined_call_operand.vmem [shape: bf16[32,128], index: 3, kind: output, shape index: {}]
  %s4 = sld [smem:[#allocation0]]
  $region22: #{resnet_generator_forward.17} parent=0
    _
  %s6 = ssub.s32 1, %s4
  %s7 = scalar_select 0, %s6, %s4
  // Predicated region
  $region2: #{resnet_generator_forward.17} parent=0 // pred_check
    _
  $region3: #{resnet_generator_forward.17} parent=0 // pred_check_branch
    %9 = sbr.rel (0) target = $region5
  $region4: #{resnet_generator_forward.17} parent=0 // pred_region
    _
  $region5: #{resnet_generator_forward.17} parent=0 // pred_fallthru
    _
  // Predicated region
  $region6: #{resnet_generator_forward.17} parent=0 // pred_check
    _
  $region7: #{resnet_generator_forward.17} parent=0 // pred_check_branch
    %11 = sbr.rel (0) target = $region9
  $region8: #{resnet_generator_forward.17} parent=0 // pred_region
    _
  $region9: #{resnet_generator_forward.17} parent=0 // pred_fallthru
    _
  // Predicated region
  $region10: #{resnet_generator_forward.17} parent=0 // pred_check
    _
  $region11: #{resnet_generator_forward.17} parent=0 // pred_check_branch
    %13 = sbr.rel (0) target = $region13
  $region12: #{resnet_generator_forward.17} parent=0 // pred_region
    _
  $region13: #{resnet_generator_forward.17} parent=0 // pred_fallthru
    _
  %v14 = vld [vmem:[%s0] sm:$0xf]
  %v15 = vld [vmem:[%s0 + $0x4] sm:$0xf]
  %v16 = vld [vmem:[%s0 + $0x8] sm:$0xf]
  %v17 = vld [vmem:[%s0 + $0xc] sm:$0xf]
  %v18 = vld [vmem:[%s1] sm:$0xf]
  %v19 = vld [vmem:[%s1 + $0x4] sm:$0xf]
  %v20 = vld [vmem:[%s1 + $0x8] sm:$0xf]
  %v21 = vld [vmem:[%s1 + $0xc] sm:$0xf]
  %v22 = vld [vmem:[%s1 + $0x10] sm:$0xf]
  %v23 = vld [vmem:[%s1 + $0x14] sm:$0xf]
  %v24 = vld [vmem:[%s1 + $0x18] sm:$0xf]
  %v25 = vld [vmem:[%s1 + $0x1c] sm:$0xf]
  %v26 = vld [vmem:[%s1 + $0x20] sm:$0xf]
  %v27 = vld [vmem:[%s1 + $0x24] sm:$0xf]
  %v28 = vld [vmem:[%s1 + $0x28] sm:$0xf]
  %v29 = vld [vmem:[%s1 + $0x2c] sm:$0xf]
  %v30 = vld [vmem:[%s1 + $0x30] sm:$0xf]
  %v31 = vld [vmem:[%s1 + $0x34] sm:$0xf]
  %v32 = vld [vmem:[%s1 + $0x38] sm:$0xf]
  %v33 = vld [vmem:[%s1 + $0x3c] sm:$0xf]
  %v34 = vld [vmem:[%s2] sm:$0x1]
  %v36 = vperm.slane %v34, 0
  %v42 = vunpack.c.l.b16 %v14
  %v43 = vunpack.c.l.b16 %v15
  %v44 = vunpack.c.l.b16 %v16
  %v45 = vunpack.c.l.b16 %v17
  %v46 = vpack.c.b16 %v43, %v42
  %v47 = vpack.c.b16 %v45, %v44
  %v66 = vunpack.c.l.b16 %v18
  %v67 = vunpack.c.l.b16 %v19
  %v68 = vunpack.c.l.b16 %v20
  %v69 = vunpack.c.l.b16 %v21
  %v70 = vunpack.c.l.b16 %v22
  %v71 = vunpack.c.l.b16 %v23
  %v72 = vunpack.c.l.b16 %v24
  %v73 = vunpack.c.l.b16 %v25
  %v74 = vunpack.c.l.b16 %v26
  %v75 = vunpack.c.l.b16 %v27
  %v76 = vunpack.c.l.b16 %v28
  %v77 = vunpack.c.l.b16 %v29
  %v78 = vunpack.c.l.b16 %v30
  %v79 = vunpack.c.l.b16 %v31
  %v80 = vunpack.c.l.b16 %v32
  %v81 = vunpack.c.l.b16 %v33
  %v82 = vpack.c.b16 %v67, %v66
  %v83 = vpack.c.b16 %v69, %v68
  %v84 = vpack.c.b16 %v71, %v70
  %v85 = vpack.c.b16 %v73, %v72
  %v86 = vpack.c.b16 %v75, %v74
  %v87 = vpack.c.b16 %v77, %v76
  %v88 = vpack.c.b16 %v79, %v78
  %v89 = vpack.c.b16 %v81, %v80
  %98 = vmatpush.bf16.msra.mxu0 %v89
  %99 = vmatpush.bf16.msra.mxu0 %v88
  %100 = vmatpush.bf16.msra.mxu0 %v87
  %101 = vmatpush.bf16.msra.mxu0 %v86
  %102 = vmatpush.bf16.msra.mxu0 %v85
  %103 = vmatpush.bf16.msra.mxu0 %v84
  %104 = vmatpush.bf16.msra.mxu0 %v83
  %105 = vmatpush.bf16.msra.mxu0 %v82
  %106 = vmatmul.bf16.gmra.mxu0 %v46
  %v107 = vpop.f32.mrf.mxu0
  %v108 = vadd.f32 %v36, %v107
  %v109 = vpop.f32.mrf.mxu0
  %v110 = vadd.f32 %v36, %v109
  %111 = vmatmul.bf16.gmra.mxu0 %v47
  %v112 = vpop.f32.mrf.mxu0
  %v113 = vadd.f32 %v36, %v112
  %v114 = vpop.f32.mrf.mxu0
  %v115 = vadd.f32 %v36, %v114
  %116 = vdwg.mxu0
  %v117 = vmax.f32 %v108, 0.0
  %v118 = vmax.f32 %v110, 0.0
  %v119 = vmax.f32 %v113, 0.0
  %v120 = vmax.f32 %v115, 0.0
  %v121 = vpack.c.bf16 %v117, %v117
  %v122 = vpack.c.bf16 %v118, %v118
  %v123 = vpack.c.bf16 %v119, %v119
  %v124 = vpack.c.bf16 %v120, %v120
  %125 = vst [vmem:[%s3] sm:$0xf] %v121
  %126 = vst [vmem:[%s3 + $0x4] sm:$0xf] %v122
  %127 = vst [vmem:[%s3 + $0x8] sm:$0xf] %v123
  %128 = vst [vmem:[%s3 + $0xc] sm:$0xf] %v124
  // Predicated region
  $region14: #{resnet_generator_forward.17} parent=0 // pred_check
    _
  $region15: #{resnet_generator_forward.17} parent=0 // pred_check_branch
    %130 = sbr.rel (0) target = $region17
  $region16: #{resnet_generator_forward.17} parent=0 // pred_region
    _
  $region17: #{resnet_generator_forward.17} parent=0 // pred_fallthru
    _
  // Predicated region
  $region18: #{resnet_generator_forward.17} parent=0 // pred_check
    _
  $region19: #{resnet_generator_forward.17} parent=0 // pred_check_branch
    %132 = sbr.rel (0) target = $region21
  $region20: #{resnet_generator_forward.17} parent=0 // pred_region
    _
  $region21: #{resnet_generator_forward.17} parent=0 // pred_fallthru
    _

// kernel: resnet_generator_forward.19
$region0: #{resnet_generator_forward.19}
  #allocation0 [shape = 'u32[]', space=smem, size = 0x4, offset = 0x4, fixed_abs, tag = 'smem constant byte address 0x4 - core index']
  #allocation1 [shape = 'u32[72,128]{1,0:T(1,128)}', space=vmem, size = 0x9000, scoped, tag = 'internal scratch']
  %s0 = inlined_call_operand.vmem [shape: bf16[512,512], index: 0, kind: input, shape index: {}]
  %s1 = inlined_call_operand.vmem [shape: bf16[512,128], index: 1, kind: input, shape index: {}]
  %s2 = inlined_call_operand.vmem [shape: f32[1,128], index: 2, kind: input, shape index: {}]
  %s3 = inlined_call_operand.vmem [shape: bf16[512,128], index: 3, kind: output, shape index: {}]
  %s4 = sld [smem:[#allocation0]]
  $region22: #{resnet_generator_forward.19} parent=0
    _
  %s6 = ssub.s32 1, %s4
  %s7 = scalar_select 0, %s6, %s4
  // Predicated region
  $region2: #{resnet_generator_forward.19} parent=0 // pred_check
    _
  $region3: #{resnet_generator_forward.19} parent=0 // pred_check_branch
    %9 = sbr.rel (0) target = $region5
  $region4: #{resnet_generator_forward.19} parent=0 // pred_region
    _
  $region5: #{resnet_generator_forward.19} parent=0 // pred_fallthru
    _
  // Predicated region
  $region6: #{resnet_generator_forward.19} parent=0 // pred_check
    _
  $region7: #{resnet_generator_forward.19} parent=0 // pred_check_branch
    %11 = sbr.rel (0) target = $region9
  $region8: #{resnet_generator_forward.19} parent=0 // pred_region
    _
  $region9: #{resnet_generator_forward.19} parent=0 // pred_fallthru
    _
  // Predicated region
  $region10: #{resnet_generator_forward.19} parent=0 // pred_check
    _
  $region11: #{resnet_generator_forward.19} parent=0 // pred_check_branch
    %13 = sbr.rel (0) target = $region13
  $region12: #{resnet_generator_forward.19} parent=0 // pred_region
    _
  $region13: #{resnet_generator_forward.19} parent=0 // pred_fallthru
    _
  %v14 = vld [vmem:[%s0] sm:$0xff]
  %v15 = vld [vmem:[%s0 + $0x8] sm:$0xff]
  %v16 = vld [vmem:[%s0 + $0x10] sm:$0xff]
  %v17 = vld [vmem:[%s0 + $0x18] sm:$0xff]
  %v18 = vld [vmem:[%s0 + $0x20] sm:$0xff]
  %v19 = vld [vmem:[%s0 + $0x28] sm:$0xff]
  %v20 = vld [vmem:[%s0 + $0x30] sm:$0xff]
  %v21 = vld [vmem:[%s0 + $0x38] sm:$0xff]
  %v22 = vld [vmem:[%s0 + $0x40] sm:$0xff]
  %v23 = vld [vmem:[%s0 + $0x48] sm:$0xff]
  %v24 = vld [vmem:[%s0 + $0x50] sm:$0xff]
  %v25 = vld [vmem:[%s0 + $0x58] sm:$0xff]
  %v26 = vld [vmem:[%s0 + $0x60] sm:$0xff]
  %v27 = vld [vmem:[%s0 + $0x68] sm:$0xff]
  %v28 = vld [vmem:[%s0 + $0x70] sm:$0xff]
  %v29 = vld [vmem:[%s0 + $0x78] sm:$0xff]
  %v30 = vld [vmem:[%s0 + $0x80] sm:$0xff]
  %v31 = vld [vmem:[%s0 + $0x88] sm:$0xff]
  %v32 = vld [vmem:[%s0 + $0x90] sm:$0xff]
  %v33 = vld [vmem:[%s0 + $0x98] sm:$0xff]
  %v34 = vld [vmem:[%s0 + $0xa0] sm:$0xff]
  %v35 = vld [vmem:[%s0 + $0xa8] sm:$0xff]
  %v36 = vld [vmem:[%s0 + $0xb0] sm:$0xff]
  %v37 = vld [vmem:[%s0 + $0xb8] sm:$0xff]
  %v38 = vld [vmem:[%s0 + $0xc0] sm:$0xff]
  %v39 = vld [vmem:[%s0 + $0xc8] sm:$0xff]
  %v40 = vld [vmem:[%s0 + $0xd0] sm:$0xff]
  %v41 = vld [vmem:[%s0 + $0xd8] sm:$0xff]
  %v42 = vld [vmem:[%s0 + $0xe0] sm:$0xff]
  %v43 = vld [vmem:[%s0 + $0xe8] sm:$0xff]
  %v44 = vld [vmem:[%s0 + $0xf0] sm:$0xff]
  %v45 = vld [vmem:[%s0 + $0xf8] sm:$0xff]
  %v46 = vld [vmem:[%s0 + $0x100] sm:$0xff]
  %v47 = vld [vmem:[%s0 + $0x108] sm:$0xff]
  %v48 = vld [vmem:[%s0 + $0x110] sm:$0xff]
  %v49 = vld [vmem:[%s0 + $0x118] sm:$0xff]
  %v50 = vld [vmem:[%s0 + $0x120] sm:$0xff]
  %v51 = vld [vmem:[%s0 + $0x128] sm:$0xff]
  %v52 = vld [vmem:[%s0 + $0x130] sm:$0xff]
  %v53 = vld [vmem:[%s0 + $0x138] sm:$0xff]
  %v54 = vld [vmem:[%s0 + $0x140] sm:$0xff]
  %v55 = vld [vmem:[%s0 + $0x148] sm:$0xff]
  %v56 = vld [vmem:[%s0 + $0x150] sm:$0xff]
  %v57 = vld [vmem:[%s0 + $0x158] sm:$0xff]
  %v58 = vld [vmem:[%s0 + $0x160] sm:$0xff]
  %v59 = vld [vmem:[%s0 + $0x168] sm:$0xff]
  %v60 = vld [vmem:[%s0 + $0x170] sm:$0xff]
  %v61 = vld [vmem:[%s0 + $0x178] sm:$0xff]
  %v62 = vld [vmem:[%s0 + $0x180] sm:$0xff]
  %v63 = vld [vmem:[%s0 + $0x188] sm:$0xff]
  %v64 = vld [vmem:[%s0 + $0x190] sm:$0xff]
  %v65 = vld [vmem:[%s0 + $0x198] sm:$0xff]
  %v66 = vld [vmem:[%s0 + $0x1a0] sm:$0xff]
  %v67 = vld [vmem:[%s0 + $0x1a8] sm:$0xff]
  %v68 = vld [vmem:[%s0 + $0x1b0] sm:$0xff]
  %v69 = vld [vmem:[%s0 + $0x1b8] sm:$0xff]
  %v70 = vld [vmem:[%s0 + $0x1c0] sm:$0xff]
  %v71 = vld [vmem:[%s0 + $0x1c8] sm:$0xff]
  %v72 = vld [vmem:[%s0 + $0x1d0] sm:$0xff]
  %v73 = vld [vmem:[%s0 + $0x1d8] sm:$0xff]
  %v74 = vld [vmem:[%s0 + $0x1e0] sm:$0xff]
  %v75 = vld [vmem:[%s0 + $0x1e8] sm:$0xff]
  %v76 = vld [vmem:[%s0 + $0x1f0] sm:$0xff]
  %v77 = vld [vmem:[%s0 + $0x1f8] sm:$0xff]
  %v78 = vld [vmem:[%s0 + $0x200] sm:$0xff]
  %v79 = vld [vmem:[%s0 + $0x208] sm:$0xff]
  %v80 = vld [vmem:[%s0 + $0x210] sm:$0xff]
  %v81 = vld [vmem:[%s0 + $0x218] sm:$0xff]
  %v82 = vld [vmem:[%s0 + $0x220] sm:$0xff]
  %v83 = vld [vmem:[%s0 + $0x228] sm:$0xff]
  %v84 = vld [vmem:[%s0 + $0x230] sm:$0xff]
  %v85 = vld [vmem:[%s0 + $0x238] sm:$0xff]
  %v86 = vld [vmem:[%s0 + $0x240] sm:$0xff]
  %v87 = vld [vmem:[%s0 + $0x248] sm:$0xff]
  %v88 = vld [vmem:[%s0 + $0x250] sm:$0xff]
  %v89 = vld [vmem:[%s0 + $0x258] sm:$0xff]
  %v90 = vld [vmem:[%s0 + $0x260] sm:$0xff]
  %v91 = vld [vmem:[%s0 + $0x268] sm:$0xff]
  %v92 = vld [vmem:[%s0 + $0x270] sm:$0xff]
  %v93 = vld [vmem:[%s0 + $0x278] sm:$0xff]
  %v94 = vld [vmem:[%s0 + $0x280] sm:$0xff]
  %v95 = vld [vmem:[%s0 + $0x288] sm:$0xff]
  %v96 = vld [vmem:[%s0 + $0x290] sm:$0xff]
  %v97 = vld [vmem:[%s0 + $0x298] sm:$0xff]
  %v98 = vld [vmem:[%s0 + $0x2a0] sm:$0xff]
  %v99 = vld [vmem:[%s0 + $0x2a8] sm:$0xff]
  %v100 = vld [vmem:[%s0 + $0x2b0] sm:$0xff]
  %v101 = vld [vmem:[%s0 + $0x2b8] sm:$0xff]
  %v102 = vld [vmem:[%s0 + $0x2c0] sm:$0xff]
  %v103 = vld [vmem:[%s0 + $0x2c8] sm:$0xff]
  %v104 = vld [vmem:[%s0 + $0x2d0] sm:$0xff]
  %v105 = vld [vmem:[%s0 + $0x2d8] sm:$0xff]
  %v106 = vld [vmem:[%s0 + $0x2e0] sm:$0xff]
  %v107 = vld [vmem:[%s0 + $0x2e8] sm:$0xff]
  %v108 = vld [vmem:[%s0 + $0x2f0] sm:$0xff]
  %v109 = vld [vmem:[%s0 + $0x2f8] sm:$0xff]
  %v110 = vld [vmem:[%s0 + $0x300] sm:$0xff]
  %v111 = vld [vmem:[%s0 + $0x308] sm:$0xff]
  %v112 = vld [vmem:[%s0 + $0x310] sm:$0xff]
  %v113 = vld [vmem:[%s0 + $0x318] sm:$0xff]
  %v114 = vld [vmem:[%s0 + $0x320] sm:$0xff]
  %v115 = vld [vmem:[%s0 + $0x328] sm:$0xff]
  %v116 = vld [vmem:[%s0 + $0x330] sm:$0xff]
  %v117 = vld [vmem:[%s0 + $0x338] sm:$0xff]
  %v118 = vld [vmem:[%s0 + $0x340] sm:$0xff]
  %v119 = vld [vmem:[%s0 + $0x348] sm:$0xff]
  %v120 = vld [vmem:[%s0 + $0x350] sm:$0xff]
  %v121 = vld [vmem:[%s0 + $0x358] sm:$0xff]
  %v122 = vld [vmem:[%s0 + $0x360] sm:$0xff]
  %v123 = vld [vmem:[%s0 + $0x368] sm:$0xff]
  %v124 = vld [vmem:[%s0 + $0x370] sm:$0xff]
  %v125 = vld [vmem:[%s0 + $0x378] sm:$0xff]
  %v126 = vld [vmem:[%s0 + $0x380] sm:$0xff]
  %v127 = vld [vmem:[%s0 + $0x388] sm:$0xff]
  %v128 = vld [vmem:[%s0 + $0x390] sm:$0xff]
  %v129 = vld [vmem:[%s0 + $0x398] sm:$0xff]
  %v130 = vld [vmem:[%s0 + $0x3a0] sm:$0xff]
  %v131 = vld [vmem:[%s0 + $0x3a8] sm:$0xff]
  %v132 = vld [vmem:[%s0 + $0x3b0] sm:$0xff]
  %v133 = vld [vmem:[%s0 + $0x3b8] sm:$0xff]
  %v134 = vld [vmem:[%s0 + $0x3c0] sm:$0xff]
  %v135 = vld [vmem:[%s0 + $0x3c8] sm:$0xff]
  %v136 = vld [vmem:[%s0 + $0x3d0] sm:$0xff]
  %v137 = vld [vmem:[%s0 + $0x3d8] sm:$0xff]
  %v138 = vld [vmem:[%s0 + $0x3e0] sm:$0xff]
  %v139 = vld [vmem:[%s0 + $0x3e8] sm:$0xff]
  %v140 = vld [vmem:[%s0 + $0x3f0] sm:$0xff]
  %v141 = vld [vmem:[%s0 + $0x3f8] sm:$0xff]
  %v142 = vld [vmem:[%s1] sm:$0xf]
  %v143 = vld [vmem:[%s1 + $0x4] sm:$0xf]
  %v144 = vld [vmem:[%s1 + $0x8] sm:$0xf]
  %v145 = vld [vmem:[%s1 + $0xc] sm:$0xf]
  %v146 = vld [vmem:[%s1 + $0x10] sm:$0xf]
  %v147 = vld [vmem:[%s1 + $0x14] sm:$0xf]
  %v148 = vld [vmem:[%s1 + $0x18] sm:$0xf]
  %v149 = vld [vmem:[%s1 + $0x1c] sm:$0xf]
  %v150 = vld [vmem:[%s1 + $0x20] sm:$0xf]
  %v151 = vld [vmem:[%s1 + $0x24] sm:$0xf]
  %v152 = vld [vmem:[%s1 + $0x28] sm:$0xf]
  %v153 = vld [vmem:[%s1 + $0x2c] sm:$0xf]
  %v154 = vld [vmem:[%s1 + $0x30] sm:$0xf]
  %v155 = vld [vmem:[%s1 + $0x34] sm:$0xf]
  %v156 = vld [vmem:[%s1 + $0x38] sm:$0xf]
  %v157 = vld [vmem:[%s1 + $0x3c] sm:$0xf]
  %v158 = vld [vmem:[%s1 + $0x40] sm:$0xf]
  %v159 = vld [vmem:[%s1 + $0x44] sm:$0xf]
  %v160 = vld [vmem:[%s1 + $0x48] sm:$0xf]
  %v161 = vld [vmem:[%s1 + $0x4c] sm:$0xf]
  %v162 = vld [vmem:[%s1 + $0x50] sm:$0xf]
  %v163 = vld [vmem:[%s1 + $0x54] sm:$0xf]
  %v164 = vld [vmem:[%s1 + $0x58] sm:$0xf]
  %v165 = vld [vmem:[%s1 + $0x5c] sm:$0xf]
  %v166 = vld [vmem:[%s1 + $0x60] sm:$0xf]
  %v167 = vld [vmem:[%s1 + $0x64] sm:$0xf]
  %v168 = vld [vmem:[%s1 + $0x68] sm:$0xf]
  %v169 = vld [vmem:[%s1 + $0x6c] sm:$0xf]
  %v170 = vld [vmem:[%s1 + $0x70] sm:$0xf]
  %v171 = vld [vmem:[%s1 + $0x74] sm:$0xf]
  %v172 = vld [vmem:[%s1 + $0x78] sm:$0xf]
  %v173 = vld [vmem:[%s1 + $0x7c] sm:$0xf]
  %v174 = vld [vmem:[%s1 + $0x80] sm:$0xf]
  %v175 = vld [vmem:[%s1 + $0x84] sm:$0xf]
  %v176 = vld [vmem:[%s1 + $0x88] sm:$0xf]
  %v177 = vld [vmem:[%s1 + $0x8c] sm:$0xf]
  %v178 = vld [vmem:[%s1 + $0x90] sm:$0xf]
  %v179 = vld [vmem:[%s1 + $0x94] sm:$0xf]
  %v180 = vld [vmem:[%s1 + $0x98] sm:$0xf]
  %v181 = vld [vmem:[%s1 + $0x9c] sm:$0xf]
  %v182 = vld [vmem:[%s1 + $0xa0] sm:$0xf]
  %v183 = vld [vmem:[%s1 + $0xa4] sm:$0xf]
  %v184 = vld [vmem:[%s1 + $0xa8] sm:$0xf]
  %v185 = vld [vmem:[%s1 + $0xac] sm:$0xf]
  %v186 = vld [vmem:[%s1 + $0xb0] sm:$0xf]
  %v187 = vld [vmem:[%s1 + $0xb4] sm:$0xf]
  %v188 = vld [vmem:[%s1 + $0xb8] sm:$0xf]
  %v189 = vld [vmem:[%s1 + $0xbc] sm:$0xf]
  %v190 = vld [vmem:[%s1 + $0xc0] sm:$0xf]
  %v191 = vld [vmem:[%s1 + $0xc4] sm:$0xf]
  %v192 = vld [vmem:[%s1 + $0xc8] sm:$0xf]
  %v193 = vld [vmem:[%s1 + $0xcc] sm:$0xf]
  %v194 = vld [vmem:[%s1 + $0xd0] sm:$0xf]
  %v195 = vld [vmem:[%s1 + $0xd4] sm:$0xf]
  %v196 = vld [vmem:[%s1 + $0xd8] sm:$0xf]
  %v197 = vld [vmem:[%s1 + $0xdc] sm:$0xf]
  %v198 = vld [vmem:[%s1 + $0xe0] sm:$0xf]
  %v199 = vld [vmem:[%s1 + $0xe4] sm:$0xf]
  %v200 = vld [vmem:[%s1 + $0xe8] sm:$0xf]
  %v201 = vld [vmem:[%s1 + $0xec] sm:$0xf]
  %v202 = vld [vmem:[%s1 + $0xf0] sm:$0xf]
  %v203 = vld [vmem:[%s1 + $0xf4] sm:$0xf]
  %v204 = vld [vmem:[%s1 + $0xf8] sm:$0xf]
  %v205 = vld [vmem:[%s1 + $0xfc] sm:$0xf]
  %v206 = vld [vmem:[%s2] sm:$0x1]
  %v208 = vperm.slane %v206, 0
  %v338 = vunpack.c.l.b16 %v14
  %v339 = vunpack.c.h.b16 %v14
  %v340 = vunpack.c.l.b16 %v15
  %v341 = vunpack.c.h.b16 %v15
  %v342 = vunpack.c.l.b16 %v16
  %v343 = vunpack.c.h.b16 %v16
  %v344 = vunpack.c.l.b16 %v17
  %v345 = vunpack.c.h.b16 %v17
  %v346 = vunpack.c.l.b16 %v18
  %v347 = vunpack.c.h.b16 %v18
  %v348 = vunpack.c.l.b16 %v19
  %v349 = vunpack.c.h.b16 %v19
  %v350 = vunpack.c.l.b16 %v20
  %v351 = vunpack.c.h.b16 %v20
  %v352 = vunpack.c.l.b16 %v21
  %v353 = vunpack.c.h.b16 %v21
  %v354 = vunpack.c.l.b16 %v22
  %v355 = vunpack.c.h.b16 %v22
  %v356 = vunpack.c.l.b16 %v23
  %v357 = vunpack.c.h.b16 %v23
  %v358 = vunpack.c.l.b16 %v24
  %v359 = vunpack.c.h.b16 %v24
  %v360 = vunpack.c.l.b16 %v25
  %v361 = vunpack.c.h.b16 %v25
  %v362 = vunpack.c.l.b16 %v26
  %v363 = vunpack.c.h.b16 %v26
  %v364 = vunpack.c.l.b16 %v27
  %v365 = vunpack.c.h.b16 %v27
  %v366 = vunpack.c.l.b16 %v28
  %v367 = vunpack.c.h.b16 %v28
  %v368 = vunpack.c.l.b16 %v29
  %v369 = vunpack.c.h.b16 %v29
  %v370 = vunpack.c.l.b16 %v30
  %v371 = vunpack.c.h.b16 %v30
  %v372 = vunpack.c.l.b16 %v31
  %v373 = vunpack.c.h.b16 %v31
  %v374 = vunpack.c.l.b16 %v32
  %v375 = vunpack.c.h.b16 %v32
  %v376 = vunpack.c.l.b16 %v33
  %v377 = vunpack.c.h.b16 %v33
  %v378 = vunpack.c.l.b16 %v34
  %v379 = vunpack.c.h.b16 %v34
  %v380 = vunpack.c.l.b16 %v35
  %v381 = vunpack.c.h.b16 %v35
  %v382 = vunpack.c.l.b16 %v36
  %v383 = vunpack.c.h.b16 %v36
  %v384 = vunpack.c.l.b16 %v37
  %v385 = vunpack.c.h.b16 %v37
  %v386 = vunpack.c.l.b16 %v38
  %v387 = vunpack.c.h.b16 %v38
  %v388 = vunpack.c.l.b16 %v39
  %v389 = vunpack.c.h.b16 %v39
  %v390 = vunpack.c.l.b16 %v40
  %v391 = vunpack.c.h.b16 %v40
  %v392 = vunpack.c.l.b16 %v41
  %v393 = vunpack.c.h.b16 %v41
  %v394 = vunpack.c.l.b16 %v42
  %v395 = vunpack.c.h.b16 %v42
  %v396 = vunpack.c.l.b16 %v43
  %v397 = vunpack.c.h.b16 %v43
  %v398 = vunpack.c.l.b16 %v44
  %v399 = vunpack.c.h.b16 %v44
  %v400 = vunpack.c.l.b16 %v45
  %v401 = vunpack.c.h.b16 %v45
  %v402 = vunpack.c.l.b16 %v46
  %v403 = vunpack.c.h.b16 %v46
  %v404 = vunpack.c.l.b16 %v47
  %v405 = vunpack.c.h.b16 %v47
  %v406 = vunpack.c.l.b16 %v48
  %v407 = vunpack.c.h.b16 %v48
  %v408 = vunpack.c.l.b16 %v49
  %v409 = vunpack.c.h.b16 %v49
  %v410 = vunpack.c.l.b16 %v50
  %v411 = vunpack.c.h.b16 %v50
  %v412 = vunpack.c.l.b16 %v51
  %v413 = vunpack.c.h.b16 %v51
  %v414 = vunpack.c.l.b16 %v52
  %v415 = vunpack.c.h.b16 %v52
  %v416 = vunpack.c.l.b16 %v53
  %v417 = vunpack.c.h.b16 %v53
  %v418 = vunpack.c.l.b16 %v54
  %v419 = vunpack.c.h.b16 %v54
  %v420 = vunpack.c.l.b16 %v55
  %v421 = vunpack.c.h.b16 %v55
  %v422 = vunpack.c.l.b16 %v56
  %v423 = vunpack.c.h.b16 %v56
  %v424 = vunpack.c.l.b16 %v57
  %v425 = vunpack.c.h.b16 %v57
  %v426 = vunpack.c.l.b16 %v58
  %v427 = vunpack.c.h.b16 %v58
  %v428 = vunpack.c.l.b16 %v59
  %v429 = vunpack.c.h.b16 %v59
  %v430 = vunpack.c.l.b16 %v60
  %v431 = vunpack.c.h.b16 %v60
  %v432 = vunpack.c.l.b16 %v61
  %v433 = vunpack.c.h.b16 %v61
  %v434 = vunpack.c.l.b16 %v62
  %v435 = vunpack.c.h.b16 %v62
  %v436 = vunpack.c.l.b16 %v63
  %v437 = vunpack.c.h.b16 %v63
  %v438 = vunpack.c.l.b16 %v64
  %v439 = vunpack.c.h.b16 %v64
  %v440 = vunpack.c.l.b16 %v65
  %v441 = vunpack.c.h.b16 %v65
  %v442 = vunpack.c.l.b16 %v66
  %v443 = vunpack.c.h.b16 %v66
  %v444 = vunpack.c.l.b16 %v67
  %v445 = vunpack.c.h.b16 %v67
  %v446 = vunpack.c.l.b16 %v68
  %v447 = vunpack.c.h.b16 %v68
  %v448 = vunpack.c.l.b16 %v69
  %v449 = vunpack.c.h.b16 %v69
  %v450 = vunpack.c.l.b16 %v70
  %v451 = vunpack.c.h.b16 %v70
  %v452 = vunpack.c.l.b16 %v71
  %v453 = vunpack.c.h.b16 %v71
  %v454 = vunpack.c.l.b16 %v72
  %v455 = vunpack.c.h.b16 %v72
  %v456 = vunpack.c.l.b16 %v73
  %v457 = vunpack.c.h.b16 %v73
  %v458 = vunpack.c.l.b16 %v74
  %v459 = vunpack.c.h.b16 %v74
  %v460 = vunpack.c.l.b16 %v75
  %v461 = vunpack.c.h.b16 %v75
  %v462 = vunpack.c.l.b16 %v76
  %v463 = vunpack.c.h.b16 %v76
  %v464 = vunpack.c.l.b16 %v77
  %v465 = vunpack.c.h.b16 %v77
  %v466 = vunpack.c.l.b16 %v78
  %v467 = vunpack.c.h.b16 %v78
  %v468 = vunpack.c.l.b16 %v79
  %v469 = vunpack.c.h.b16 %v79
  %v470 = vunpack.c.l.b16 %v80
  %v471 = vunpack.c.h.b16 %v80
  %v472 = vunpack.c.l.b16 %v81
  %v473 = vunpack.c.h.b16 %v81
  %v474 = vunpack.c.l.b16 %v82
  %v475 = vunpack.c.h.b16 %v82
  %v476 = vunpack.c.l.b16 %v83
  %v477 = vunpack.c.h.b16 %v83
  %v478 = vunpack.c.l.b16 %v84
  %v479 = vunpack.c.h.b16 %v84
  %v480 = vunpack.c.l.b16 %v85
  %v481 = vunpack.c.h.b16 %v85
  %v482 = vunpack.c.l.b16 %v86
  %v483 = vunpack.c.h.b16 %v86
  %v484 = vunpack.c.l.b16 %v87
  %v485 = vunpack.c.h.b16 %v87
  %v486 = vunpack.c.l.b16 %v88
  %v487 = vunpack.c.h.b16 %v88
  %v488 = vunpack.c.l.b16 %v89
  %v489 = vunpack.c.h.b16 %v89
  %v490 = vunpack.c.l.b16 %v90
  %v491 = vunpack.c.h.b16 %v90
  %v492 = vunpack.c.l.b16 %v91
  %v493 = vunpack.c.h.b16 %v91
  %v494 = vunpack.c.l.b16 %v92
  %v495 = vunpack.c.h.b16 %v92
  %v496 = vunpack.c.l.b16 %v93
  %v497 = vunpack.c.h.b16 %v93
  %v498 = vunpack.c.l.b16 %v94
  %v499 = vunpack.c.h.b16 %v94
  %v500 = vunpack.c.l.b16 %v95
  %v501 = vunpack.c.h.b16 %v95
  %v502 = vunpack.c.l.b16 %v96
  %v503 = vunpack.c.h.b16 %v96
  %v504 = vunpack.c.l.b16 %v97
  %v505 = vunpack.c.h.b16 %v97
  %v506 = vunpack.c.l.b16 %v98
  %v507 = vunpack.c.h.b16 %v98
  %v508 = vunpack.c.l.b16 %v99
  %v509 = vunpack.c.h.b16 %v99
  %v510 = vunpack.c.l.b16 %v100
  %v511 = vunpack.c.h.b16 %v100
  %v512 = vunpack.c.l.b16 %v101
  %v513 = vunpack.c.h.b16 %v101
  %v514 = vunpack.c.l.b16 %v102
  %v515 = vunpack.c.h.b16 %v102
  %v516 = vunpack.c.l.b16 %v103
  %v517 = vunpack.c.h.b16 %v103
  %v518 = vunpack.c.l.b16 %v104
  %v519 = vunpack.c.h.b16 %v104
  %v520 = vunpack.c.l.b16 %v105
  %v521 = vunpack.c.h.b16 %v105
  %v522 = vunpack.c.l.b16 %v106
  %v523 = vunpack.c.h.b16 %v106
  %v524 = vunpack.c.l.b16 %v107
  %v525 = vunpack.c.h.b16 %v107
  %v526 = vunpack.c.l.b16 %v108
  %v527 = vunpack.c.h.b16 %v108
  %v528 = vunpack.c.l.b16 %v109
  %v529 = vunpack.c.h.b16 %v109
  %v530 = vunpack.c.l.b16 %v110
  %v531 = vunpack.c.h.b16 %v110
  %v532 = vunpack.c.l.b16 %v111
  %v533 = vunpack.c.h.b16 %v111
  %v534 = vunpack.c.l.b16 %v112
  %v535 = vunpack.c.h.b16 %v112
  %v536 = vunpack.c.l.b16 %v113
  %v537 = vunpack.c.h.b16 %v113
  %v538 = vunpack.c.l.b16 %v114
  %v539 = vunpack.c.h.b16 %v114
  %v540 = vunpack.c.l.b16 %v115
  %v541 = vunpack.c.h.b16 %v115
  %v542 = vunpack.c.l.b16 %v116
  %v543 = vunpack.c.h.b16 %v116
  %v544 = vunpack.c.l.b16 %v117
  %v545 = vunpack.c.h.b16 %v117
  %v546 = vunpack.c.l.b16 %v118
  %v547 = vunpack.c.h.b16 %v118
  %v548 = vunpack.c.l.b16 %v119
  %v549 = vunpack.c.h.b16 %v119
  %v550 = vunpack.c.l.b16 %v120
  %v551 = vunpack.c.h.b16 %v120
  %v552 = vunpack.c.l.b16 %v121
  %v553 = vunpack.c.h.b16 %v121
  %v554 = vunpack.c.l.b16 %v122
  %v555 = vunpack.c.h.b16 %v122
  %v556 = vunpack.c.l.b16 %v123
  %v557 = vunpack.c.h.b16 %v123
  %v558 = vunpack.c.l.b16 %v124
  %v559 = vunpack.c.h.b16 %v124
  %v560 = vunpack.c.l.b16 %v125
  %v561 = vunpack.c.h.b16 %v125
  %v562 = vunpack.c.l.b16 %v126
  %v563 = vunpack.c.h.b16 %v126
  %v564 = vunpack.c.l.b16 %v127
  %v565 = vunpack.c.h.b16 %v127
  %v566 = vunpack.c.l.b16 %v128
  %v567 = vunpack.c.h.b16 %v128
  %v568 = vunpack.c.l.b16 %v129
  %v569 = vunpack.c.h.b16 %v129
  %v570 = vunpack.c.l.b16 %v130
  %v571 = vunpack.c.h.b16 %v130
  %v572 = vunpack.c.l.b16 %v131
  %v573 = vunpack.c.h.b16 %v131
  %v574 = vunpack.c.l.b16 %v132
  %v575 = vunpack.c.h.b16 %v132
  %v576 = vunpack.c.l.b16 %v133
  %v577 = vunpack.c.h.b16 %v133
  %v578 = vunpack.c.l.b16 %v134
  %v579 = vunpack.c.h.b16 %v134
  %v580 = vunpack.c.l.b16 %v135
  %v581 = vunpack.c.h.b16 %v135
  %v582 = vunpack.c.l.b16 %v136
  %v583 = vunpack.c.h.b16 %v136
  %v584 = vunpack.c.l.b16 %v137
  %v585 = vunpack.c.h.b16 %v137
  %v586 = vunpack.c.l.b16 %v138
  %v587 = vunpack.c.h.b16 %v138
  %v588 = vunpack.c.l.b16 %v139
  %v589 = vunpack.c.h.b16 %v139
  %v590 = vunpack.c.l.b16 %v140
  %v591 = vunpack.c.h.b16 %v140
  %v592 = vunpack.c.l.b16 %v141
  %v593 = vunpack.c.h.b16 %v141
  %v594 = vpack.c.b16 %v342, %v338
  %v595 = vpack.c.b16 %v343, %v339
  %v596 = vpack.c.b16 %v344, %v340
  %v597 = vpack.c.b16 %v345, %v341
  %v598 = vpack.c.b16 %v350, %v346
  %v599 = vpack.c.b16 %v351, %v347
  %v600 = vpack.c.b16 %v352, %v348
  %v601 = vpack.c.b16 %v353, %v349
  %v602 = vpack.c.b16 %v358, %v354
  %v603 = vpack.c.b16 %v359, %v355
  %v604 = vpack.c.b16 %v360, %v356
  %v605 = vpack.c.b16 %v361, %v357
  %v606 = vpack.c.b16 %v366, %v362
  %v607 = vpack.c.b16 %v367, %v363
  %v608 = vpack.c.b16 %v368, %v364
  %v609 = vpack.c.b16 %v369, %v365
  %v610 = vpack.c.b16 %v374, %v370
  %v611 = vpack.c.b16 %v375, %v371
  %v612 = vpack.c.b16 %v376, %v372
  %v613 = vpack.c.b16 %v377, %v373
  %v614 = vpack.c.b16 %v382, %v378
  %v615 = vpack.c.b16 %v383, %v379
  %v616 = vpack.c.b16 %v384, %v380
  %v617 = vpack.c.b16 %v385, %v381
  %v618 = vpack.c.b16 %v390, %v386
  %v619 = vpack.c.b16 %v391, %v387
  %v620 = vpack.c.b16 %v392, %v388
  %v621 = vpack.c.b16 %v393, %v389
  %v622 = vpack.c.b16 %v398, %v394
  %v623 = vpack.c.b16 %v399, %v395
  %v624 = vpack.c.b16 %v400, %v396
  %v625 = vpack.c.b16 %v401, %v397
  %v626 = vpack.c.b16 %v406, %v402
  %v627 = vpack.c.b16 %v407, %v403
  %v628 = vpack.c.b16 %v408, %v404
  %v629 = vpack.c.b16 %v409, %v405
  %v630 = vpack.c.b16 %v414, %v410
  %v631 = vpack.c.b16 %v415, %v411
  %v632 = vpack.c.b16 %v416, %v412
  %v633 = vpack.c.b16 %v417, %v413
  %v634 = vpack.c.b16 %v422, %v418
  %v635 = vpack.c.b16 %v423, %v419
  %v636 = vpack.c.b16 %v424, %v420
  %v637 = vpack.c.b16 %v425, %v421
  %v638 = vpack.c.b16 %v430, %v426
  %v639 = vpack.c.b16 %v431, %v427
  %v640 = vpack.c.b16 %v432, %v428
  %v641 = vpack.c.b16 %v433, %v429
  %v642 = vpack.c.b16 %v438, %v434
  %v643 = vpack.c.b16 %v439, %v435
  %v644 = vpack.c.b16 %v440, %v436
  %v645 = vpack.c.b16 %v441, %v437
  %v646 = vpack.c.b16 %v446, %v442
  %v647 = vpack.c.b16 %v447, %v443
  %v648 = vpack.c.b16 %v448, %v444
  %v649 = vpack.c.b16 %v449, %v445
  %v650 = vpack.c.b16 %v454, %v450
  %v651 = vpack.c.b16 %v455, %v451
  %v652 = vpack.c.b16 %v456, %v452
  %v653 = vpack.c.b16 %v457, %v453
  %v654 = vpack.c.b16 %v462, %v458
  %v655 = vpack.c.b16 %v463, %v459
  %v656 = vpack.c.b16 %v464, %v460
  %v657 = vpack.c.b16 %v465, %v461
  %v658 = vpack.c.b16 %v470, %v466
  %v659 = vpack.c.b16 %v471, %v467
  %v660 = vpack.c.b16 %v472, %v468
  %v661 = vpack.c.b16 %v473, %v469
  %v662 = vpack.c.b16 %v478, %v474
  %v663 = vpack.c.b16 %v479, %v475
  %v664 = vpack.c.b16 %v480, %v476
  %v665 = vpack.c.b16 %v481, %v477
  %v666 = vpack.c.b16 %v486, %v482
  %v667 = vpack.c.b16 %v487, %v483
  %v668 = vpack.c.b16 %v488, %v484
  %v669 = vpack.c.b16 %v489, %v485
  %v670 = vpack.c.b16 %v494, %v490
  %v671 = vpack.c.b16 %v495, %v491
  %v672 = vpack.c.b16 %v496, %v492
  %v673 = vpack.c.b16 %v497, %v493
  %v674 = vpack.c.b16 %v502, %v498
  %v675 = vpack.c.b16 %v503, %v499
  %v676 = vpack.c.b16 %v504, %v500
  %v677 = vpack.c.b16 %v505, %v501
  %v678 = vpack.c.b16 %v510, %v506
  %v679 = vpack.c.b16 %v511, %v507
  %v680 = vpack.c.b16 %v512, %v508
  %v681 = vpack.c.b16 %v513, %v509
  %v682 = vpack.c.b16 %v518, %v514
  %v683 = vpack.c.b16 %v519, %v515
  %v684 = vpack.c.b16 %v520, %v516
  %v685 = vpack.c.b16 %v521, %v517
  %v686 = vpack.c.b16 %v526, %v522
  %v687 = vpack.c.b16 %v527, %v523
  %v688 = vpack.c.b16 %v528, %v524
  %v689 = vpack.c.b16 %v529, %v525
  %v690 = vpack.c.b16 %v534, %v530
  %v691 = vpack.c.b16 %v535, %v531
  %v692 = vpack.c.b16 %v536, %v532
  %v693 = vpack.c.b16 %v537, %v533
  %v694 = vpack.c.b16 %v542, %v538
  %v695 = vpack.c.b16 %v543, %v539
  %v696 = vpack.c.b16 %v544, %v540
  %v697 = vpack.c.b16 %v545, %v541
  %v698 = vpack.c.b16 %v550, %v546
  %v699 = vpack.c.b16 %v551, %v547
  %v700 = vpack.c.b16 %v552, %v548
  %v701 = vpack.c.b16 %v553, %v549
  %v702 = vpack.c.b16 %v558, %v554
  %v703 = vpack.c.b16 %v559, %v555
  %v704 = vpack.c.b16 %v560, %v556
  %v705 = vpack.c.b16 %v561, %v557
  %v706 = vpack.c.b16 %v566, %v562
  %v707 = vpack.c.b16 %v567, %v563
  %v708 = vpack.c.b16 %v568, %v564
  %v709 = vpack.c.b16 %v569, %v565
  %v710 = vpack.c.b16 %v574, %v570
  %v711 = vpack.c.b16 %v575, %v571
  %v712 = vpack.c.b16 %v576, %v572
  %v713 = vpack.c.b16 %v577, %v573
  %v714 = vpack.c.b16 %v582, %v578
  %v715 = vpack.c.b16 %v583, %v579
  %v716 = vpack.c.b16 %v584, %v580
  %v717 = vpack.c.b16 %v585, %v581
  %v718 = vpack.c.b16 %v590, %v586
  %v719 = vpack.c.b16 %v591, %v587
  %v720 = vpack.c.b16 %v592, %v588
  %v721 = vpack.c.b16 %v593, %v589
  %v914 = vunpack.c.l.b16 %v142
  %v915 = vunpack.c.l.b16 %v143
  %v916 = vunpack.c.l.b16 %v144
  %v917 = vunpack.c.l.b16 %v145
  %v918 = vunpack.c.l.b16 %v146
  %v919 = vunpack.c.l.b16 %v147
  %v920 = vunpack.c.l.b16 %v148
  %v921 = vunpack.c.l.b16 %v149
  %v922 = vunpack.c.l.b16 %v150
  %v923 = vunpack.c.l.b16 %v151
  %v924 = vunpack.c.l.b16 %v152
  %v925 = vunpack.c.l.b16 %v153
  %v926 = vunpack.c.l.b16 %v154
  %v927 = vunpack.c.l.b16 %v155
  %v928 = vunpack.c.l.b16 %v156
  %v929 = vunpack.c.l.b16 %v157
  %v930 = vunpack.c.l.b16 %v158
  %v931 = vunpack.c.l.b16 %v159
  %v932 = vunpack.c.l.b16 %v160
  %v933 = vunpack.c.l.b16 %v161
  %v934 = vunpack.c.l.b16 %v162
  %v935 = vunpack.c.l.b16 %v163
  %v936 = vunpack.c.l.b16 %v164
  %v937 = vunpack.c.l.b16 %v165
  %v938 = vunpack.c.l.b16 %v166
  %v939 = vunpack.c.l.b16 %v167
  %v940 = vunpack.c.l.b16 %v168
  %v941 = vunpack.c.l.b16 %v169
  %v942 = vunpack.c.l.b16 %v170
  %v943 = vunpack.c.l.b16 %v171
  %v944 = vunpack.c.l.b16 %v172
  %v945 = vunpack.c.l.b16 %v173
  %v946 = vunpack.c.l.b16 %v174
  %v947 = vunpack.c.l.b16 %v175
  %v948 = vunpack.c.l.b16 %v176
  %v949 = vunpack.c.l.b16 %v177
  %v950 = vunpack.c.l.b16 %v178
  %v951 = vunpack.c.l.b16 %v179
  %v952 = vunpack.c.l.b16 %v180
  %v953 = vunpack.c.l.b16 %v181
  %v954 = vunpack.c.l.b16 %v182
  %v955 = vunpack.c.l.b16 %v183
  %v956 = vunpack.c.l.b16 %v184
  %v957 = vunpack.c.l.b16 %v185
  %v958 = vunpack.c.l.b16 %v186
  %v959 = vunpack.c.l.b16 %v187
  %v960 = vunpack.c.l.b16 %v188
  %v961 = vunpack.c.l.b16 %v189
  %v962 = vunpack.c.l.b16 %v190
  %v963 = vunpack.c.l.b16 %v191
  %v964 = vunpack.c.l.b16 %v192
  %v965 = vunpack.c.l.b16 %v193
  %v966 = vunpack.c.l.b16 %v194
  %v967 = vunpack.c.l.b16 %v195
  %v968 = vunpack.c.l.b16 %v196
  %v969 = vunpack.c.l.b16 %v197
  %v970 = vunpack.c.l.b16 %v198
  %v971 = vunpack.c.l.b16 %v199
  %v972 = vunpack.c.l.b16 %v200
  %v973 = vunpack.c.l.b16 %v201
  %v974 = vunpack.c.l.b16 %v202
  %v975 = vunpack.c.l.b16 %v203
  %v976 = vunpack.c.l.b16 %v204
  %v977 = vunpack.c.l.b16 %v205
  %v978 = vpack.c.b16 %v915, %v914
  %v979 = vpack.c.b16 %v917, %v916
  %v980 = vpack.c.b16 %v919, %v918
  %v981 = vpack.c.b16 %v921, %v920
  %v982 = vpack.c.b16 %v923, %v922
  %v983 = vpack.c.b16 %v925, %v924
  %v984 = vpack.c.b16 %v927, %v926
  %v985 = vpack.c.b16 %v929, %v928
  %v986 = vpack.c.b16 %v931, %v930
  %v987 = vpack.c.b16 %v933, %v932
  %v988 = vpack.c.b16 %v935, %v934
  %v989 = vpack.c.b16 %v937, %v936
  %v990 = vpack.c.b16 %v939, %v938
  %v991 = vpack.c.b16 %v941, %v940
  %v992 = vpack.c.b16 %v943, %v942
  %v993 = vpack.c.b16 %v945, %v944
  %v994 = vpack.c.b16 %v947, %v946
  %v995 = vpack.c.b16 %v949, %v948
  %v996 = vpack.c.b16 %v951, %v950
  %v997 = vpack.c.b16 %v953, %v952
  %v998 = vpack.c.b16 %v955, %v954
  %v999 = vpack.c.b16 %v957, %v956
  %v1000 = vpack.c.b16 %v959, %v958
  %v1001 = vpack.c.b16 %v961, %v960
  %v1002 = vpack.c.b16 %v963, %v962
  %v1003 = vpack.c.b16 %v965, %v964
  %v1004 = vpack.c.b16 %v967, %v966
  %v1005 = vpack.c.b16 %v969, %v968
  %v1006 = vpack.c.b16 %v971, %v970
  %v1007 = vpack.c.b16 %v973, %v972
  %v1008 = vpack.c.b16 %v975, %v974
  %v1009 = vpack.c.b16 %v977, %v976
  %1042 = vmatpush.bf16.msra.mxu0 %v985
  %1043 = vmatpush.bf16.msra.mxu0 %v984
  %1044 = vmatpush.bf16.msra.mxu0 %v983
  %1045 = vmatpush.bf16.msra.mxu0 %v982
  %1046 = vmatpush.bf16.msra.mxu0 %v981
  %1047 = vmatpush.bf16.msra.mxu0 %v980
  %1048 = vmatpush.bf16.msra.mxu0 %v979
  %1049 = vmatpush.bf16.msra.mxu0 %v978
  %1050 = vmatmul.bf16.gmra.mxu0 %v594
  %v1051 = vpop.f32.mrf.mxu0
  %v1052 = vadd.f32 %v208, %v1051
  %v1053 = vpop.f32.mrf.mxu0
  %v1054 = vadd.f32 %v208, %v1053
  %1055 = vmatmul.bf16.gmra.mxu0 %v598
  %v1056 = vpop.f32.mrf.mxu0
  %v1057 = vadd.f32 %v208, %v1056
  %v1058 = vpop.f32.mrf.mxu0
  %v1059 = vadd.f32 %v208, %v1058
  %1060 = vmatmul.bf16.gmra.mxu0 %v602
  %v1061 = vpop.f32.mrf.mxu0
  %v1062 = vadd.f32 %v208, %v1061
  %v1063 = vpop.f32.mrf.mxu0
  %v1064 = vadd.f32 %v208, %v1063
  %1065 = vmatmul.bf16.gmra.mxu0 %v606
  %v1066 = vpop.f32.mrf.mxu0
  %v1067 = vadd.f32 %v208, %v1066
  %v1068 = vpop.f32.mrf.mxu0
  %v1069 = vadd.f32 %v208, %v1068
  %1070 = vmatmul.bf16.gmra.mxu0 %v610
  %v1071 = vpop.f32.mrf.mxu0
  %v1072 = vadd.f32 %v208, %v1071
  %v1073 = vpop.f32.mrf.mxu0
  %v1074 = vadd.f32 %v208, %v1073
  %1075 = vmatmul.bf16.gmra.mxu0 %v614
  %v1076 = vpop.f32.mrf.mxu0
  %v1077 = vadd.f32 %v208, %v1076
  %v1078 = vpop.f32.mrf.mxu0
  %v1079 = vadd.f32 %v208, %v1078
  %1080 = vmatmul.bf16.gmra.mxu0 %v618
  %v1081 = vpop.f32.mrf.mxu0
  %v1082 = vadd.f32 %v208, %v1081
  %v1083 = vpop.f32.mrf.mxu0
  %v1084 = vadd.f32 %v208, %v1083
  %1085 = vmatmul.bf16.gmra.mxu0 %v622
  %v1086 = vpop.f32.mrf.mxu0
  %v1087 = vadd.f32 %v208, %v1086
  %v1088 = vpop.f32.mrf.mxu0
  %v1089 = vadd.f32 %v208, %v1088
  %1090 = vmatmul.bf16.gmra.mxu0 %v626
  %v1091 = vpop.f32.mrf.mxu0
  %v1092 = vadd.f32 %v208, %v1091
  %v1093 = vpop.f32.mrf.mxu0
  %v1094 = vadd.f32 %v208, %v1093
  %1095 = vmatmul.bf16.gmra.mxu0 %v630
  %v1096 = vpop.f32.mrf.mxu0
  %v1097 = vadd.f32 %v208, %v1096
  %v1098 = vpop.f32.mrf.mxu0
  %v1099 = vadd.f32 %v208, %v1098
  %1100 = vmatmul.bf16.gmra.mxu0 %v634
  %v1101 = vpop.f32.mrf.mxu0
  %v1102 = vadd.f32 %v208, %v1101
  %v1103 = vpop.f32.mrf.mxu0
  %v1104 = vadd.f32 %v208, %v1103
  %1105 = vmatmul.bf16.gmra.mxu0 %v638
  %v1106 = vpop.f32.mrf.mxu0
  %v1107 = vadd.f32 %v208, %v1106
  %v1108 = vpop.f32.mrf.mxu0
  %v1109 = vadd.f32 %v208, %v1108
  %1110 = vmatmul.bf16.gmra.mxu0 %v642
  %v1111 = vpop.f32.mrf.mxu0
  %v1112 = vadd.f32 %v208, %v1111
  %v1113 = vpop.f32.mrf.mxu0
  %v1114 = vadd.f32 %v208, %v1113
  %1115 = vmatmul.bf16.gmra.mxu0 %v646
  %v1116 = vpop.f32.mrf.mxu0
  %v1117 = vadd.f32 %v208, %v1116
  %v1118 = vpop.f32.mrf.mxu0
  %v1119 = vadd.f32 %v208, %v1118
  %1120 = vmatmul.bf16.gmra.mxu0 %v650
  %v1121 = vpop.f32.mrf.mxu0
  %v1122 = vadd.f32 %v208, %v1121
  %v1123 = vpop.f32.mrf.mxu0
  %v1124 = vadd.f32 %v208, %v1123
  %1125 = vmatmul.bf16.gmra.mxu0 %v654
  %v1126 = vpop.f32.mrf.mxu0
  %v1127 = vadd.f32 %v208, %v1126
  %v1128 = vpop.f32.mrf.mxu0
  %v1129 = vadd.f32 %v208, %v1128
  %1130 = vmatmul.bf16.gmra.mxu0 %v658
  %v1131 = vpop.f32.mrf.mxu0
  %v1132 = vadd.f32 %v208, %v1131
  %v1133 = vpop.f32.mrf.mxu0
  %v1134 = vadd.f32 %v208, %v1133
  %1135 = vmatmul.bf16.gmra.mxu0 %v662
  %v1136 = vpop.f32.mrf.mxu0
  %v1137 = vadd.f32 %v208, %v1136
  %v1138 = vpop.f32.mrf.mxu0
  %v1139 = vadd.f32 %v208, %v1138
  %1140 = vmatmul.bf16.gmra.mxu0 %v666
  %v1141 = vpop.f32.mrf.mxu0
  %v1142 = vadd.f32 %v208, %v1141
  %v1143 = vpop.f32.mrf.mxu0
  %v1144 = vadd.f32 %v208, %v1143
  %1145 = vmatmul.bf16.gmra.mxu0 %v670
  %v1146 = vpop.f32.mrf.mxu0
  %v1147 = vadd.f32 %v208, %v1146
  %v1148 = vpop.f32.mrf.mxu0
  %v1149 = vadd.f32 %v208, %v1148
  %1150 = vmatmul.bf16.gmra.mxu0 %v674
  %v1151 = vpop.f32.mrf.mxu0
  %v1152 = vadd.f32 %v208, %v1151
  %v1153 = vpop.f32.mrf.mxu0
  %v1154 = vadd.f32 %v208, %v1153
  %1155 = vmatmul.bf16.gmra.mxu0 %v678
  %v1156 = vpop.f32.mrf.mxu0
  %v1157 = vadd.f32 %v208, %v1156
  %v1158 = vpop.f32.mrf.mxu0
  %v1159 = vadd.f32 %v208, %v1158
  %1160 = vmatmul.bf16.gmra.mxu0 %v682
  %v1161 = vpop.f32.mrf.mxu0
  %v1162 = vadd.f32 %v208, %v1161
  %v1163 = vpop.f32.mrf.mxu0
  %v1164 = vadd.f32 %v208, %v1163
  %1165 = vmatmul.bf16.gmra.mxu0 %v686
  %v1166 = vpop.f32.mrf.mxu0
  %v1167 = vadd.f32 %v208, %v1166
  %v1168 = vpop.f32.mrf.mxu0
  %v1169 = vadd.f32 %v208, %v1168
  %1170 = vmatmul.bf16.gmra.mxu0 %v690
  %v1171 = vpop.f32.mrf.mxu0
  %v1172 = vadd.f32 %v208, %v1171
  %v1173 = vpop.f32.mrf.mxu0
  %v1174 = vadd.f32 %v208, %v1173
  %1175 = vmatmul.bf16.gmra.mxu0 %v694
  %v1176 = vpop.f32.mrf.mxu0
  %v1177 = vadd.f32 %v208, %v1176
  %v1178 = vpop.f32.mrf.mxu0
  %v1179 = vadd.f32 %v208, %v1178
  %1180 = vmatmul.bf16.gmra.mxu0 %v698
  %v1181 = vpop.f32.mrf.mxu0
  %v1182 = vadd.f32 %v208, %v1181
  %v1183 = vpop.f32.mrf.mxu0
  %v1184 = vadd.f32 %v208, %v1183
  %1185 = vmatmul.bf16.gmra.mxu0 %v702
  %v1186 = vpop.f32.mrf.mxu0
  %v1187 = vadd.f32 %v208, %v1186
  %v1188 = vpop.f32.mrf.mxu0
  %v1189 = vadd.f32 %v208, %v1188
  %1190 = vmatmul.bf16.gmra.mxu0 %v706
  %v1191 = vpop.f32.mrf.mxu0
  %v1192 = vadd.f32 %v208, %v1191
  %v1193 = vpop.f32.mrf.mxu0
  %v1194 = vadd.f32 %v208, %v1193
  %1195 = vmatmul.bf16.gmra.mxu0 %v710
  %v1196 = vpop.f32.mrf.mxu0
  %v1197 = vadd.f32 %v208, %v1196
  %v1198 = vpop.f32.mrf.mxu0
  %v1199 = vadd.f32 %v208, %v1198
  %1200 = vmatmul.bf16.gmra.mxu0 %v714
  %v1201 = vpop.f32.mrf.mxu0
  %v1202 = vadd.f32 %v208, %v1201
  %v1203 = vpop.f32.mrf.mxu0
  %v1204 = vadd.f32 %v208, %v1203
  %1205 = vmatmul.bf16.gmra.mxu0 %v718
  %v1206 = vpop.f32.mrf.mxu0
  %v1207 = vadd.f32 %v208, %v1206
  %v1208 = vpop.f32.mrf.mxu0
  %v1209 = vadd.f32 %v208, %v1208
  %1210 = vdwg.mxu0
  %1211 = vmatpush.bf16.msra.mxu0 %v993
  %1212 = vmatpush.bf16.msra.mxu0 %v992
  %1213 = vmatpush.bf16.msra.mxu0 %v991
  %1214 = vmatpush.bf16.msra.mxu0 %v990
  %1215 = vmatpush.bf16.msra.mxu0 %v989
  %1216 = vmatpush.bf16.msra.mxu0 %v988
  %1217 = vmatpush.bf16.msra.mxu0 %v987
  %1218 = vmatpush.bf16.msra.mxu0 %v986
  %1219 = vmatmul.bf16.gmra.mxu0 %v595
  %v1220 = vpop.f32.mrf.mxu0
  %v1221 = vadd.f32 %v1052, %v1220
  %v1222 = vpop.f32.mrf.mxu0
  %v1223 = vadd.f32 %v1054, %v1222
  %1224 = vmatmul.bf16.gmra.mxu0 %v599
  %v1225 = vpop.f32.mrf.mxu0
  %v1226 = vadd.f32 %v1057, %v1225
  %v1227 = vpop.f32.mrf.mxu0
  %v1228 = vadd.f32 %v1059, %v1227
  %1229 = vmatmul.bf16.gmra.mxu0 %v603
  %v1230 = vpop.f32.mrf.mxu0
  %v1231 = vadd.f32 %v1062, %v1230
  %v1232 = vpop.f32.mrf.mxu0
  %v1233 = vadd.f32 %v1064, %v1232
  %1234 = vmatmul.bf16.gmra.mxu0 %v607
  %v1235 = vpop.f32.mrf.mxu0
  %v1236 = vadd.f32 %v1067, %v1235
  %v1237 = vpop.f32.mrf.mxu0
  %v1238 = vadd.f32 %v1069, %v1237
  %1239 = vmatmul.bf16.gmra.mxu0 %v611
  %v1240 = vpop.f32.mrf.mxu0
  %v1241 = vadd.f32 %v1072, %v1240
  %v1242 = vpop.f32.mrf.mxu0
  %v1243 = vadd.f32 %v1074, %v1242
  %1244 = vmatmul.bf16.gmra.mxu0 %v615
  %v1245 = vpop.f32.mrf.mxu0
  %v1246 = vadd.f32 %v1077, %v1245
  %v1247 = vpop.f32.mrf.mxu0
  %v1248 = vadd.f32 %v1079, %v1247
  %1249 = vmatmul.bf16.gmra.mxu0 %v619
  %v1250 = vpop.f32.mrf.mxu0
  %v1251 = vadd.f32 %v1082, %v1250
  %v1252 = vpop.f32.mrf.mxu0
  %v1253 = vadd.f32 %v1084, %v1252
  %1254 = vmatmul.bf16.gmra.mxu0 %v623
  %v1255 = vpop.f32.mrf.mxu0
  %v1256 = vadd.f32 %v1087, %v1255
  %v1257 = vpop.f32.mrf.mxu0
  %v1258 = vadd.f32 %v1089, %v1257
  %1259 = vmatmul.bf16.gmra.mxu0 %v627
  %v1260 = vpop.f32.mrf.mxu0
  %v1261 = vadd.f32 %v1092, %v1260
  %v1262 = vpop.f32.mrf.mxu0
  %v1263 = vadd.f32 %v1094, %v1262
  %1264 = vmatmul.bf16.gmra.mxu0 %v631
  %v1265 = vpop.f32.mrf.mxu0
  %v1266 = vadd.f32 %v1097, %v1265
  %v1267 = vpop.f32.mrf.mxu0
  %v1268 = vadd.f32 %v1099, %v1267
  %1269 = vmatmul.bf16.gmra.mxu0 %v635
  %v1270 = vpop.f32.mrf.mxu0
  %v1271 = vadd.f32 %v1102, %v1270
  %v1272 = vpop.f32.mrf.mxu0
  %v1273 = vadd.f32 %v1104, %v1272
  %1274 = vmatmul.bf16.gmra.mxu0 %v639
  %v1275 = vpop.f32.mrf.mxu0
  %v1276 = vadd.f32 %v1107, %v1275
  %v1277 = vpop.f32.mrf.mxu0
  %v1278 = vadd.f32 %v1109, %v1277
  %1279 = vmatmul.bf16.gmra.mxu0 %v643
  %v1280 = vpop.f32.mrf.mxu0
  %v1281 = vadd.f32 %v1112, %v1280
  %v1282 = vpop.f32.mrf.mxu0
  %v1283 = vadd.f32 %v1114, %v1282
  %1284 = vmatmul.bf16.gmra.mxu0 %v647
  %v1285 = vpop.f32.mrf.mxu0
  %v1286 = vadd.f32 %v1117, %v1285
  %v1287 = vpop.f32.mrf.mxu0
  %v1288 = vadd.f32 %v1119, %v1287
  %1289 = vmatmul.bf16.gmra.mxu0 %v651
  %v1290 = vpop.f32.mrf.mxu0
  %v1291 = vadd.f32 %v1122, %v1290
  %v1292 = vpop.f32.mrf.mxu0
  %v1293 = vadd.f32 %v1124, %v1292
  %1294 = vmatmul.bf16.gmra.mxu0 %v655
  %v1295 = vpop.f32.mrf.mxu0
  %v1296 = vadd.f32 %v1127, %v1295
  %v1297 = vpop.f32.mrf.mxu0
  %v1298 = vadd.f32 %v1129, %v1297
  %1299 = vmatmul.bf16.gmra.mxu0 %v659
  %v1300 = vpop.f32.mrf.mxu0
  %v1301 = vadd.f32 %v1132, %v1300
  %v1302 = vpop.f32.mrf.mxu0
  %v1303 = vadd.f32 %v1134, %v1302
  %1304 = vmatmul.bf16.gmra.mxu0 %v663
  %v1305 = vpop.f32.mrf.mxu0
  %v1306 = vadd.f32 %v1137, %v1305
  %v1307 = vpop.f32.mrf.mxu0
  %v1308 = vadd.f32 %v1139, %v1307
  %1309 = vmatmul.bf16.gmra.mxu0 %v667
  %v1310 = vpop.f32.mrf.mxu0
  %v1311 = vadd.f32 %v1142, %v1310
  %v1312 = vpop.f32.mrf.mxu0
  %v1313 = vadd.f32 %v1144, %v1312
  %1314 = vmatmul.bf16.gmra.mxu0 %v671
  %v1315 = vpop.f32.mrf.mxu0
  %v1316 = vadd.f32 %v1147, %v1315
  %v1317 = vpop.f32.mrf.mxu0
  %v1318 = vadd.f32 %v1149, %v1317
  %1319 = vmatmul.bf16.gmra.mxu0 %v675
  %v1320 = vpop.f32.mrf.mxu0
  %v1321 = vadd.f32 %v1152, %v1320
  %v1322 = vpop.f32.mrf.mxu0
  %v1323 = vadd.f32 %v1154, %v1322
  %1324 = vmatmul.bf16.gmra.mxu0 %v679
  %v1325 = vpop.f32.mrf.mxu0
  %v1326 = vadd.f32 %v1157, %v1325
  %v1327 = vpop.f32.mrf.mxu0
  %v1328 = vadd.f32 %v1159, %v1327
  %1329 = vmatmul.bf16.gmra.mxu0 %v683
  %v1330 = vpop.f32.mrf.mxu0
  %v1331 = vadd.f32 %v1162, %v1330
  %v1332 = vpop.f32.mrf.mxu0
  %v1333 = vadd.f32 %v1164, %v1332
  %1334 = vmatmul.bf16.gmra.mxu0 %v687
  %v1335 = vpop.f32.mrf.mxu0
  %v1336 = vadd.f32 %v1167, %v1335
  %v1337 = vpop.f32.mrf.mxu0
  %v1338 = vadd.f32 %v1169, %v1337
  %1339 = vmatmul.bf16.gmra.mxu0 %v691
  %v1340 = vpop.f32.mrf.mxu0
  %v1341 = vadd.f32 %v1172, %v1340
  %v1342 = vpop.f32.mrf.mxu0
  %v1343 = vadd.f32 %v1174, %v1342
  %1344 = vmatmul.bf16.gmra.mxu0 %v695
  %v1345 = vpop.f32.mrf.mxu0
  %v1346 = vadd.f32 %v1177, %v1345
  %v1347 = vpop.f32.mrf.mxu0
  %v1348 = vadd.f32 %v1179, %v1347
  %1349 = vmatmul.bf16.gmra.mxu0 %v699
  %v1350 = vpop.f32.mrf.mxu0
  %v1351 = vadd.f32 %v1182, %v1350
  %v1352 = vpop.f32.mrf.mxu0
  %v1353 = vadd.f32 %v1184, %v1352
  %1354 = vmatmul.bf16.gmra.mxu0 %v703
  %v1355 = vpop.f32.mrf.mxu0
  %v1356 = vadd.f32 %v1187, %v1355
  %v1357 = vpop.f32.mrf.mxu0
  %v1358 = vadd.f32 %v1189, %v1357
  %1359 = vmatmul.bf16.gmra.mxu0 %v707
  %v1360 = vpop.f32.mrf.mxu0
  %v1361 = vadd.f32 %v1192, %v1360
  %v1362 = vpop.f32.mrf.mxu0
  %v1363 = vadd.f32 %v1194, %v1362
  %1364 = vmatmul.bf16.gmra.mxu0 %v711
  %v1365 = vpop.f32.mrf.mxu0
  %v1366 = vadd.f32 %v1197, %v1365
  %v1367 = vpop.f32.mrf.mxu0
  %v1368 = vadd.f32 %v1199, %v1367
  %1369 = vmatmul.bf16.gmra.mxu0 %v715
  %v1370 = vpop.f32.mrf.mxu0
  %v1371 = vadd.f32 %v1202, %v1370
  %v1372 = vpop.f32.mrf.mxu0
  %v1373 = vadd.f32 %v1204, %v1372
  %1374 = vmatmul.bf16.gmra.mxu0 %v719
  %v1375 = vpop.f32.mrf.mxu0
  %v1376 = vadd.f32 %v1207, %v1375
  %v1377 = vpop.f32.mrf.mxu0
  %v1378 = vadd.f32 %v1209, %v1377
  %1379 = vdwg.mxu0
  %1380 = vmatpush.bf16.msra.mxu0 %v1001
  %1381 = vmatpush.bf16.msra.mxu0 %v1000
  %1382 = vmatpush.bf16.msra.mxu0 %v999
  %1383 = vmatpush.bf16.msra.mxu0 %v998
  %1384 = vmatpush.bf16.msra.mxu0 %v997
  %1385 = vmatpush.bf16.msra.mxu0 %v996
  %1386 = vmatpush.bf16.msra.mxu0 %v995
  %1387 = vmatpush.bf16.msra.mxu0 %v994
  %1388 = vmatmul.bf16.gmra.mxu0 %v596
  %v1389 = vpop.f32.mrf.mxu0
  %v1390 = vadd.f32 %v1221, %v1389
  %v1391 = vpop.f32.mrf.mxu0
  %v1392 = vadd.f32 %v1223, %v1391
  %1393 = vmatmul.bf16.gmra.mxu0 %v600
  %v1394 = vpop.f32.mrf.mxu0
  %v1395 = vadd.f32 %v1226, %v1394
  %v1396 = vpop.f32.mrf.mxu0
  %v1397 = vadd.f32 %v1228, %v1396
  %1398 = vmatmul.bf16.gmra.mxu0 %v604
  %v1399 = vpop.f32.mrf.mxu0
  %v1400 = vadd.f32 %v1231, %v1399
  %v1401 = vpop.f32.mrf.mxu0
  %v1402 = vadd.f32 %v1233, %v1401
  %1403 = vmatmul.bf16.gmra.mxu0 %v608
  %v1404 = vpop.f32.mrf.mxu0
  %v1405 = vadd.f32 %v1236, %v1404
  %v1406 = vpop.f32.mrf.mxu0
  %v1407 = vadd.f32 %v1238, %v1406
  %1408 = vmatmul.bf16.gmra.mxu0 %v612
  %v1409 = vpop.f32.mrf.mxu0
  %v1410 = vadd.f32 %v1241, %v1409
  %v1411 = vpop.f32.mrf.mxu0
  %v1412 = vadd.f32 %v1243, %v1411
  %1413 = vmatmul.bf16.gmra.mxu0 %v616
  %v1414 = vpop.f32.mrf.mxu0
  %v1415 = vadd.f32 %v1246, %v1414
  %v1416 = vpop.f32.mrf.mxu0
  %v1417 = vadd.f32 %v1248, %v1416
  %1418 = vmatmul.bf16.gmra.mxu0 %v620
  %v1419 = vpop.f32.mrf.mxu0
  %v1420 = vadd.f32 %v1251, %v1419
  %v1421 = vpop.f32.mrf.mxu0
  %v1422 = vadd.f32 %v1253, %v1421
  %1423 = vmatmul.bf16.gmra.mxu0 %v624
  %v1424 = vpop.f32.mrf.mxu0
  %v1425 = vadd.f32 %v1256, %v1424
  %v1426 = vpop.f32.mrf.mxu0
  %v1427 = vadd.f32 %v1258, %v1426
  %1428 = vmatmul.bf16.gmra.mxu0 %v628
  %v1429 = vpop.f32.mrf.mxu0
  %v1430 = vadd.f32 %v1261, %v1429
  %v1431 = vpop.f32.mrf.mxu0
  %v1432 = vadd.f32 %v1263, %v1431
  %1433 = vmatmul.bf16.gmra.mxu0 %v632
  %v1434 = vpop.f32.mrf.mxu0
  %v1435 = vadd.f32 %v1266, %v1434
  %v1436 = vpop.f32.mrf.mxu0
  %v1437 = vadd.f32 %v1268, %v1436
  %1438 = vmatmul.bf16.gmra.mxu0 %v636
  %v1439 = vpop.f32.mrf.mxu0
  %v1440 = vadd.f32 %v1271, %v1439
  %v1441 = vpop.f32.mrf.mxu0
  %v1442 = vadd.f32 %v1273, %v1441
  %1443 = vmatmul.bf16.gmra.mxu0 %v640
  %v1444 = vpop.f32.mrf.mxu0
  %v1445 = vadd.f32 %v1276, %v1444
  %v1446 = vpop.f32.mrf.mxu0
  %v1447 = vadd.f32 %v1278, %v1446
  %1448 = vmatmul.bf16.gmra.mxu0 %v644
  %v1449 = vpop.f32.mrf.mxu0
  %v1450 = vadd.f32 %v1281, %v1449
  %v1451 = vpop.f32.mrf.mxu0
  %v1452 = vadd.f32 %v1283, %v1451
  %1453 = vmatmul.bf16.gmra.mxu0 %v648
  %v1454 = vpop.f32.mrf.mxu0
  %v1455 = vadd.f32 %v1286, %v1454
  %v1456 = vpop.f32.mrf.mxu0
  %v1457 = vadd.f32 %v1288, %v1456
  %1458 = vmatmul.bf16.gmra.mxu0 %v652
  %v1459 = vpop.f32.mrf.mxu0
  %v1460 = vadd.f32 %v1291, %v1459
  %v1461 = vpop.f32.mrf.mxu0
  %v1462 = vadd.f32 %v1293, %v1461
  %1463 = vmatmul.bf16.gmra.mxu0 %v656
  %v1464 = vpop.f32.mrf.mxu0
  %v1465 = vadd.f32 %v1296, %v1464
  %v1466 = vpop.f32.mrf.mxu0
  %v1467 = vadd.f32 %v1298, %v1466
  %1468 = vmatmul.bf16.gmra.mxu0 %v660
  %v1469 = vpop.f32.mrf.mxu0
  %v1470 = vadd.f32 %v1301, %v1469
  %v1471 = vpop.f32.mrf.mxu0
  %v1472 = vadd.f32 %v1303, %v1471
  %1473 = vmatmul.bf16.gmra.mxu0 %v664
  %v1474 = vpop.f32.mrf.mxu0
  %v1475 = vadd.f32 %v1306, %v1474
  %v1476 = vpop.f32.mrf.mxu0
  %v1477 = vadd.f32 %v1308, %v1476
  %1478 = vmatmul.bf16.gmra.mxu0 %v668
  %v1479 = vpop.f32.mrf.mxu0
  %v1480 = vadd.f32 %v1311, %v1479
  %v1481 = vpop.f32.mrf.mxu0
  %v1482 = vadd.f32 %v1313, %v1481
  %1483 = vmatmul.bf16.gmra.mxu0 %v672
  %v1484 = vpop.f32.mrf.mxu0
  %v1485 = vadd.f32 %v1316, %v1484
  %v1486 = vpop.f32.mrf.mxu0
  %v1487 = vadd.f32 %v1318, %v1486
  %1488 = vmatmul.bf16.gmra.mxu0 %v676
  %v1489 = vpop.f32.mrf.mxu0
  %v1490 = vadd.f32 %v1321, %v1489
  %v1491 = vpop.f32.mrf.mxu0
  %v1492 = vadd.f32 %v1323, %v1491
  %1493 = vmatmul.bf16.gmra.mxu0 %v680
  %v1494 = vpop.f32.mrf.mxu0
  %v1495 = vadd.f32 %v1326, %v1494
  %v1496 = vpop.f32.mrf.mxu0
  %v1497 = vadd.f32 %v1328, %v1496
  %1498 = vmatmul.bf16.gmra.mxu0 %v684
  %v1499 = vpop.f32.mrf.mxu0
  %v1500 = vadd.f32 %v1331, %v1499
  %v1501 = vpop.f32.mrf.mxu0
  %v1502 = vadd.f32 %v1333, %v1501
  %1503 = vmatmul.bf16.gmra.mxu0 %v688
  %v1504 = vpop.f32.mrf.mxu0
  %v1505 = vadd.f32 %v1336, %v1504
  %v1506 = vpop.f32.mrf.mxu0
  %v1507 = vadd.f32 %v1338, %v1506
  %1508 = vmatmul.bf16.gmra.mxu0 %v692
  %v1509 = vpop.f32.mrf.mxu0
  %v1510 = vadd.f32 %v1341, %v1509
  %v1511 = vpop.f32.mrf.mxu0
  %v1512 = vadd.f32 %v1343, %v1511
  %1513 = vmatmul.bf16.gmra.mxu0 %v696
  %v1514 = vpop.f32.mrf.mxu0
  %v1515 = vadd.f32 %v1346, %v1514
  %v1516 = vpop.f32.mrf.mxu0
  %v1517 = vadd.f32 %v1348, %v1516
  %1518 = vmatmul.bf16.gmra.mxu0 %v700
  %v1519 = vpop.f32.mrf.mxu0
  %v1520 = vadd.f32 %v1351, %v1519
  %v1521 = vpop.f32.mrf.mxu0
  %v1522 = vadd.f32 %v1353, %v1521
  %1523 = vmatmul.bf16.gmra.mxu0 %v704
  %v1524 = vpop.f32.mrf.mxu0
  %v1525 = vadd.f32 %v1356, %v1524
  %v1526 = vpop.f32.mrf.mxu0
  %v1527 = vadd.f32 %v1358, %v1526
  %1528 = vmatmul.bf16.gmra.mxu0 %v708
  %v1529 = vpop.f32.mrf.mxu0
  %v1530 = vadd.f32 %v1361, %v1529
  %v1531 = vpop.f32.mrf.mxu0
  %v1532 = vadd.f32 %v1363, %v1531
  %1533 = vmatmul.bf16.gmra.mxu0 %v712
  %v1534 = vpop.f32.mrf.mxu0
  %v1535 = vadd.f32 %v1366, %v1534
  %v1536 = vpop.f32.mrf.mxu0
  %v1537 = vadd.f32 %v1368, %v1536
  %1538 = vmatmul.bf16.gmra.mxu0 %v716
  %v1539 = vpop.f32.mrf.mxu0
  %v1540 = vadd.f32 %v1371, %v1539
  %v1541 = vpop.f32.mrf.mxu0
  %v1542 = vadd.f32 %v1373, %v1541
  %1543 = vmatmul.bf16.gmra.mxu0 %v720
  %v1544 = vpop.f32.mrf.mxu0
  %v1545 = vadd.f32 %v1376, %v1544
  %v1546 = vpop.f32.mrf.mxu0
  %v1547 = vadd.f32 %v1378, %v1546
  %1548 = vdwg.mxu0
  %1549 = vmatpush.bf16.msra.mxu0 %v1009
  %1550 = vmatpush.bf16.msra.mxu0 %v1008
  %1551 = vmatpush.bf16.msra.mxu0 %v1007
  %1552 = vmatpush.bf16.msra.mxu0 %v1006
  %1553 = vmatpush.bf16.msra.mxu0 %v1005
  %1554 = vmatpush.bf16.msra.mxu0 %v1004
  %1555 = vmatpush.bf16.msra.mxu0 %v1003
  %1556 = vmatpush.bf16.msra.mxu0 %v1002
  %1557 = vmatmul.bf16.gmra.mxu0 %v597
  %v1558 = vpop.f32.mrf.mxu0
  %v1559 = vadd.f32 %v1390, %v1558
  %v1560 = vpop.f32.mrf.mxu0
  %v1561 = vadd.f32 %v1392, %v1560
  %1562 = vmatmul.bf16.gmra.mxu0 %v601
  %v1563 = vpop.f32.mrf.mxu0
  %v1564 = vadd.f32 %v1395, %v1563
  %v1565 = vpop.f32.mrf.mxu0
  %v1566 = vadd.f32 %v1397, %v1565
  %1567 = vmatmul.bf16.gmra.mxu0 %v605
  %v1568 = vpop.f32.mrf.mxu0
  %v1569 = vadd.f32 %v1400, %v1568
  %v1570 = vpop.f32.mrf.mxu0
  %v1571 = vadd.f32 %v1402, %v1570
  %1572 = vmatmul.bf16.gmra.mxu0 %v609
  %v1573 = vpop.f32.mrf.mxu0
  %v1574 = vadd.f32 %v1405, %v1573
  %v1575 = vpop.f32.mrf.mxu0
  %v1576 = vadd.f32 %v1407, %v1575
  %1577 = vmatmul.bf16.gmra.mxu0 %v613
  %v1578 = vpop.f32.mrf.mxu0
  %v1579 = vadd.f32 %v1410, %v1578
  %v1580 = vpop.f32.mrf.mxu0
  %v1581 = vadd.f32 %v1412, %v1580
  %1582 = vmatmul.bf16.gmra.mxu0 %v617
  %v1583 = vpop.f32.mrf.mxu0
  %v1584 = vadd.f32 %v1415, %v1583
  %v1585 = vpop.f32.mrf.mxu0
  %v1586 = vadd.f32 %v1417, %v1585
  %1587 = vmatmul.bf16.gmra.mxu0 %v621
  %v1588 = vpop.f32.mrf.mxu0
  %v1589 = vadd.f32 %v1420, %v1588
  %v1590 = vpop.f32.mrf.mxu0
  %v1591 = vadd.f32 %v1422, %v1590
  %1592 = vmatmul.bf16.gmra.mxu0 %v625
  %v1593 = vpop.f32.mrf.mxu0
  %v1594 = vadd.f32 %v1425, %v1593
  %v1595 = vpop.f32.mrf.mxu0
  %v1596 = vadd.f32 %v1427, %v1595
  %1597 = vmatmul.bf16.gmra.mxu0 %v629
  %v1598 = vpop.f32.mrf.mxu0
  %v1599 = vadd.f32 %v1430, %v1598
  %v1600 = vpop.f32.mrf.mxu0
  %v1601 = vadd.f32 %v1432, %v1600
  %1602 = vmatmul.bf16.gmra.mxu0 %v633
  %v1603 = vpop.f32.mrf.mxu0
  %v1604 = vadd.f32 %v1435, %v1603
  %v1605 = vpop.f32.mrf.mxu0
  %v1606 = vadd.f32 %v1437, %v1605
  %1607 = vmatmul.bf16.gmra.mxu0 %v637
  %v1608 = vpop.f32.mrf.mxu0
  %v1609 = vadd.f32 %v1440, %v1608
  %v1610 = vpop.f32.mrf.mxu0
  %v1611 = vadd.f32 %v1442, %v1610
  %1612 = vmatmul.bf16.gmra.mxu0 %v641
  %v1613 = vpop.f32.mrf.mxu0
  %v1614 = vadd.f32 %v1445, %v1613
  %v1615 = vpop.f32.mrf.mxu0
  %v1616 = vadd.f32 %v1447, %v1615
  %1617 = vmatmul.bf16.gmra.mxu0 %v645
  %v1618 = vpop.f32.mrf.mxu0
  %v1619 = vadd.f32 %v1450, %v1618
  %v1620 = vpop.f32.mrf.mxu0
  %v1621 = vadd.f32 %v1452, %v1620
  %1622 = vmatmul.bf16.gmra.mxu0 %v649
  %v1623 = vpop.f32.mrf.mxu0
  %v1624 = vadd.f32 %v1455, %v1623
  %v1625 = vpop.f32.mrf.mxu0
  %v1626 = vadd.f32 %v1457, %v1625
  %1627 = vmatmul.bf16.gmra.mxu0 %v653
  %v1628 = vpop.f32.mrf.mxu0
  %v1629 = vadd.f32 %v1460, %v1628
  %v1630 = vpop.f32.mrf.mxu0
  %v1631 = vadd.f32 %v1462, %v1630
  %1632 = vmatmul.bf16.gmra.mxu0 %v657
  %v1633 = vpop.f32.mrf.mxu0
  %v1634 = vadd.f32 %v1465, %v1633
  %v1635 = vpop.f32.mrf.mxu0
  %v1636 = vadd.f32 %v1467, %v1635
  %1637 = vmatmul.bf16.gmra.mxu0 %v661
  %v1638 = vpop.f32.mrf.mxu0
  %v1639 = vadd.f32 %v1470, %v1638
  %v1640 = vpop.f32.mrf.mxu0
  %v1641 = vadd.f32 %v1472, %v1640
  %1642 = vmatmul.bf16.gmra.mxu0 %v665
  %v1643 = vpop.f32.mrf.mxu0
  %v1644 = vadd.f32 %v1475, %v1643
  %v1645 = vpop.f32.mrf.mxu0
  %v1646 = vadd.f32 %v1477, %v1645
  %1647 = vmatmul.bf16.gmra.mxu0 %v669
  %v1648 = vpop.f32.mrf.mxu0
  %v1649 = vadd.f32 %v1480, %v1648
  %v1650 = vpop.f32.mrf.mxu0
  %v1651 = vadd.f32 %v1482, %v1650
  %1652 = vmatmul.bf16.gmra.mxu0 %v673
  %v1653 = vpop.f32.mrf.mxu0
  %v1654 = vadd.f32 %v1485, %v1653
  %v1655 = vpop.f32.mrf.mxu0
  %v1656 = vadd.f32 %v1487, %v1655
  %1657 = vmatmul.bf16.gmra.mxu0 %v677
  %v1658 = vpop.f32.mrf.mxu0
  %v1659 = vadd.f32 %v1490, %v1658
  %v1660 = vpop.f32.mrf.mxu0
  %v1661 = vadd.f32 %v1492, %v1660
  %1662 = vmatmul.bf16.gmra.mxu0 %v681
  %v1663 = vpop.f32.mrf.mxu0
  %v1664 = vadd.f32 %v1495, %v1663
  %v1665 = vpop.f32.mrf.mxu0
  %v1666 = vadd.f32 %v1497, %v1665
  %1667 = vmatmul.bf16.gmra.mxu0 %v685
  %v1668 = vpop.f32.mrf.mxu0
  %v1669 = vadd.f32 %v1500, %v1668
  %v1670 = vpop.f32.mrf.mxu0
  %v1671 = vadd.f32 %v1502, %v1670
  %1672 = vmatmul.bf16.gmra.mxu0 %v689
  %v1673 = vpop.f32.mrf.mxu0
  %v1674 = vadd.f32 %v1505, %v1673
  %v1675 = vpop.f32.mrf.mxu0
  %v1676 = vadd.f32 %v1507, %v1675
  %1677 = vmatmul.bf16.gmra.mxu0 %v693
  %v1678 = vpop.f32.mrf.mxu0
  %v1679 = vadd.f32 %v1510, %v1678
  %v1680 = vpop.f32.mrf.mxu0
  %v1681 = vadd.f32 %v1512, %v1680
  %1682 = vmatmul.bf16.gmra.mxu0 %v697
  %v1683 = vpop.f32.mrf.mxu0
  %v1684 = vadd.f32 %v1515, %v1683
  %v1685 = vpop.f32.mrf.mxu0
  %v1686 = vadd.f32 %v1517, %v1685
  %1687 = vmatmul.bf16.gmra.mxu0 %v701
  %v1688 = vpop.f32.mrf.mxu0
  %v1689 = vadd.f32 %v1520, %v1688
  %v1690 = vpop.f32.mrf.mxu0
  %v1691 = vadd.f32 %v1522, %v1690
  %1692 = vmatmul.bf16.gmra.mxu0 %v705
  %v1693 = vpop.f32.mrf.mxu0
  %v1694 = vadd.f32 %v1525, %v1693
  %v1695 = vpop.f32.mrf.mxu0
  %v1696 = vadd.f32 %v1527, %v1695
  %1697 = vmatmul.bf16.gmra.mxu0 %v709
  %v1698 = vpop.f32.mrf.mxu0
  %v1699 = vadd.f32 %v1530, %v1698
  %v1700 = vpop.f32.mrf.mxu0
  %v1701 = vadd.f32 %v1532, %v1700
  %1702 = vmatmul.bf16.gmra.mxu0 %v713
  %v1703 = vpop.f32.mrf.mxu0
  %v1704 = vadd.f32 %v1535, %v1703
  %v1705 = vpop.f32.mrf.mxu0
  %v1706 = vadd.f32 %v1537, %v1705
  %1707 = vmatmul.bf16.gmra.mxu0 %v717
  %v1708 = vpop.f32.mrf.mxu0
  %v1709 = vadd.f32 %v1540, %v1708
  %v1710 = vpop.f32.mrf.mxu0
  %v1711 = vadd.f32 %v1542, %v1710
  %1712 = vmatmul.bf16.gmra.mxu0 %v721
  %v1713 = vpop.f32.mrf.mxu0
  %v1714 = vadd.f32 %v1545, %v1713
  %v1715 = vpop.f32.mrf.mxu0
  %v1716 = vadd.f32 %v1547, %v1715
  %1717 = vdwg.mxu0
  %v1718 = vtanh.pop %v1559
  %v1719 = vtanh.pop %v1561
  %v1720 = vtanh.pop %v1564
  %v1721 = vtanh.pop %v1566
  %v1722 = vtanh.pop %v1569
  %v1723 = vtanh.pop %v1571
  %v1724 = vtanh.pop %v1574
  %v1725 = vtanh.pop %v1576
  %v1726 = vtanh.pop %v1579
  %v1727 = vtanh.pop %v1581
  %v1728 = vtanh.pop %v1584
  %v1729 = vtanh.pop %v1586
  %v1730 = vtanh.pop %v1589
  %v1731 = vtanh.pop %v1591
  %v1732 = vtanh.pop %v1594
  %v1733 = vtanh.pop %v1596
  %v1734 = vtanh.pop %v1599
  %v1735 = vtanh.pop %v1601
  %v1736 = vtanh.pop %v1604
  %v1737 = vtanh.pop %v1606
  %v1738 = vtanh.pop %v1609
  %v1739 = vtanh.pop %v1611
  %v1740 = vtanh.pop %v1614
  %v1741 = vtanh.pop %v1616
  %v1742 = vtanh.pop %v1619
  %v1743 = vtanh.pop %v1621
  %v1744 = vtanh.pop %v1624
  %v1745 = vtanh.pop %v1626
  %v1746 = vtanh.pop %v1629
  %v1747 = vtanh.pop %v1631
  %v1748 = vtanh.pop %v1634
  %v1749 = vtanh.pop %v1636
  %v1750 = vtanh.pop %v1639
  %v1751 = vtanh.pop %v1641
  %v1752 = vtanh.pop %v1644
  %v1753 = vtanh.pop %v1646
  %v1754 = vtanh.pop %v1649
  %v1755 = vtanh.pop %v1651
  %v1756 = vtanh.pop %v1654
  %v1757 = vtanh.pop %v1656
  %v1758 = vtanh.pop %v1659
  %v1759 = vtanh.pop %v1661
  %v1760 = vtanh.pop %v1664
  %v1761 = vtanh.pop %v1666
  %v1762 = vtanh.pop %v1669
  %v1763 = vtanh.pop %v1671
  %v1764 = vtanh.pop %v1674
  %v1765 = vtanh.pop %v1676
  %v1766 = vtanh.pop %v1679
  %v1767 = vtanh.pop %v1681
  %v1768 = vtanh.pop %v1684
  %v1769 = vtanh.pop %v1686
  %v1770 = vtanh.pop %v1689
  %v1771 = vtanh.pop %v1691
  %v1772 = vtanh.pop %v1694
  %v1773 = vtanh.pop %v1696
  %v1774 = vtanh.pop %v1699
  %v1775 = vtanh.pop %v1701
  %v1776 = vtanh.pop %v1704
  %v1777 = vtanh.pop %v1706
  %v1778 = vtanh.pop %v1709
  %v1779 = vtanh.pop %v1711
  %v1780 = vtanh.pop %v1714
  %v1781 = vtanh.pop %v1716
  %v1782 = vpack.c.bf16 %v1718, %v1718
  %v1783 = vpack.c.bf16 %v1719, %v1719
  %v1784 = vpack.c.bf16 %v1720, %v1720
  %v1785 = vpack.c.bf16 %v1721, %v1721
  %v1786 = vpack.c.bf16 %v1722, %v1722
  %v1787 = vpack.c.bf16 %v1723, %v1723
  %v1788 = vpack.c.bf16 %v1724, %v1724
  %v1789 = vpack.c.bf16 %v1725, %v1725
  %v1790 = vpack.c.bf16 %v1726, %v1726
  %v1791 = vpack.c.bf16 %v1727, %v1727
  %v1792 = vpack.c.bf16 %v1728, %v1728
  %v1793 = vpack.c.bf16 %v1729, %v1729
  %v1794 = vpack.c.bf16 %v1730, %v1730
  %v1795 = vpack.c.bf16 %v1731, %v1731
  %v1796 = vpack.c.bf16 %v1732, %v1732
  %v1797 = vpack.c.bf16 %v1733, %v1733
  %v1798 = vpack.c.bf16 %v1734, %v1734
  %v1799 = vpack.c.bf16 %v1735, %v1735
  %v1800 = vpack.c.bf16 %v1736, %v1736
  %v1801 = vpack.c.bf16 %v1737, %v1737
  %v1802 = vpack.c.bf16 %v1738, %v1738
  %v1803 = vpack.c.bf16 %v1739, %v1739
  %v1804 = vpack.c.bf16 %v1740, %v1740
  %v1805 = vpack.c.bf16 %v1741, %v1741
  %v1806 = vpack.c.bf16 %v1742, %v1742
  %v1807 = vpack.c.bf16 %v1743, %v1743
  %v1808 = vpack.c.bf16 %v1744, %v1744
  %v1809 = vpack.c.bf16 %v1745, %v1745
  %v1810 = vpack.c.bf16 %v1746, %v1746
  %v1811 = vpack.c.bf16 %v1747, %v1747
  %v1812 = vpack.c.bf16 %v1748, %v1748
  %v1813 = vpack.c.bf16 %v1749, %v1749
  %v1814 = vpack.c.bf16 %v1750, %v1750
  %v1815 = vpack.c.bf16 %v1751, %v1751
  %v1816 = vpack.c.bf16 %v1752, %v1752
  %v1817 = vpack.c.bf16 %v1753, %v1753
  %v1818 = vpack.c.bf16 %v1754, %v1754
  %v1819 = vpack.c.bf16 %v1755, %v1755
  %v1820 = vpack.c.bf16 %v1756, %v1756
  %v1821 = vpack.c.bf16 %v1757, %v1757
  %v1822 = vpack.c.bf16 %v1758, %v1758
  %v1823 = vpack.c.bf16 %v1759, %v1759
  %v1824 = vpack.c.bf16 %v1760, %v1760
  %v1825 = vpack.c.bf16 %v1761, %v1761
  %v1826 = vpack.c.bf16 %v1762, %v1762
  %v1827 = vpack.c.bf16 %v1763, %v1763
  %v1828 = vpack.c.bf16 %v1764, %v1764
  %v1829 = vpack.c.bf16 %v1765, %v1765
  %v1830 = vpack.c.bf16 %v1766, %v1766
  %v1831 = vpack.c.bf16 %v1767, %v1767
  %v1832 = vpack.c.bf16 %v1768, %v1768
  %v1833 = vpack.c.bf16 %v1769, %v1769
  %v1834 = vpack.c.bf16 %v1770, %v1770
  %v1835 = vpack.c.bf16 %v1771, %v1771
  %v1836 = vpack.c.bf16 %v1772, %v1772
  %v1837 = vpack.c.bf16 %v1773, %v1773
  %v1838 = vpack.c.bf16 %v1774, %v1774
  %v1839 = vpack.c.bf16 %v1775, %v1775
  %v1840 = vpack.c.bf16 %v1776, %v1776
  %v1841 = vpack.c.bf16 %v1777, %v1777
  %v1842 = vpack.c.bf16 %v1778, %v1778
  %v1843 = vpack.c.bf16 %v1779, %v1779
  %v1844 = vpack.c.bf16 %v1780, %v1780
  %v1845 = vpack.c.bf16 %v1781, %v1781
  %1846 = vst [vmem:[%s3] sm:$0xf] %v1782
  %1847 = vst [vmem:[%s3 + $0x4] sm:$0xf] %v1783
  %1848 = vst [vmem:[%s3 + $0x8] sm:$0xf] %v1784
  %1849 = vst [vmem:[%s3 + $0xc] sm:$0xf] %v1785
  %1850 = vst [vmem:[%s3 + $0x10] sm:$0xf] %v1786
  %1851 = vst [vmem:[%s3 + $0x14] sm:$0xf] %v1787
  %1852 = vst [vmem:[%s3 + $0x18] sm:$0xf] %v1788
  %1853 = vst [vmem:[%s3 + $0x1c] sm:$0xf] %v1789
  %1854 = vst [vmem:[%s3 + $0x20] sm:$0xf] %v1790
  %1855 = vst [vmem:[%s3 + $0x24] sm:$0xf] %v1791
  %1856 = vst [vmem:[%s3 + $0x28] sm:$0xf] %v1792
  %1857 = vst [vmem:[%s3 + $0x2c] sm:$0xf] %v1793
  %1858 = vst [vmem:[%s3 + $0x30] sm:$0xf] %v1794
  %1859 = vst [vmem:[%s3 + $0x34] sm:$0xf] %v1795
  %1860 = vst [vmem:[%s3 + $0x38] sm:$0xf] %v1796
  %1861 = vst [vmem:[%s3 + $0x3c] sm:$0xf] %v1797
  %1862 = vst [vmem:[%s3 + $0x40] sm:$0xf] %v1798
  %1863 = vst [vmem:[%s3 + $0x44] sm:$0xf] %v1799
  %1864 = vst [vmem:[%s3 + $0x48] sm:$0xf] %v1800
  %1865 = vst [vmem:[%s3 + $0x4c] sm:$0xf] %v1801
  %1866 = vst [vmem:[%s3 + $0x50] sm:$0xf] %v1802
  %1867 = vst [vmem:[%s3 + $0x54] sm:$0xf] %v1803
  %1868 = vst [vmem:[%s3 + $0x58] sm:$0xf] %v1804
  %1869 = vst [vmem:[%s3 + $0x5c] sm:$0xf] %v1805
  %1870 = vst [vmem:[%s3 + $0x60] sm:$0xf] %v1806
  %1871 = vst [vmem:[%s3 + $0x64] sm:$0xf] %v1807
  %1872 = vst [vmem:[%s3 + $0x68] sm:$0xf] %v1808
  %1873 = vst [vmem:[%s3 + $0x6c] sm:$0xf] %v1809
  %1874 = vst [vmem:[%s3 + $0x70] sm:$0xf] %v1810
  %1875 = vst [vmem:[%s3 + $0x74] sm:$0xf] %v1811
  %1876 = vst [vmem:[%s3 + $0x78] sm:$0xf] %v1812
  %1877 = vst [vmem:[%s3 + $0x7c] sm:$0xf] %v1813
  %1878 = vst [vmem:[%s3 + $0x80] sm:$0xf] %v1814
  %1879 = vst [vmem:[%s3 + $0x84] sm:$0xf] %v1815
  %1880 = vst [vmem:[%s3 + $0x88] sm:$0xf] %v1816
  %1881 = vst [vmem:[%s3 + $0x8c] sm:$0xf] %v1817
  %1882 = vst [vmem:[%s3 + $0x90] sm:$0xf] %v1818
  %1883 = vst [vmem:[%s3 + $0x94] sm:$0xf] %v1819
  %1884 = vst [vmem:[%s3 + $0x98] sm:$0xf] %v1820
  %1885 = vst [vmem:[%s3 + $0x9c] sm:$0xf] %v1821
  %1886 = vst [vmem:[%s3 + $0xa0] sm:$0xf] %v1822
  %1887 = vst [vmem:[%s3 + $0xa4] sm:$0xf] %v1823
  %1888 = vst [vmem:[%s3 + $0xa8] sm:$0xf] %v1824
  %1889 = vst [vmem:[%s3 + $0xac] sm:$0xf] %v1825
  %1890 = vst [vmem:[%s3 + $0xb0] sm:$0xf] %v1826
  %1891 = vst [vmem:[%s3 + $0xb4] sm:$0xf] %v1827
  %1892 = vst [vmem:[%s3 + $0xb8] sm:$0xf] %v1828
  %1893 = vst [vmem:[%s3 + $0xbc] sm:$0xf] %v1829
  %1894 = vst [vmem:[%s3 + $0xc0] sm:$0xf] %v1830
  %1895 = vst [vmem:[%s3 + $0xc4] sm:$0xf] %v1831
  %1896 = vst [vmem:[%s3 + $0xc8] sm:$0xf] %v1832
  %1897 = vst [vmem:[%s3 + $0xcc] sm:$0xf] %v1833
  %1898 = vst [vmem:[%s3 + $0xd0] sm:$0xf] %v1834
  %1899 = vst [vmem:[%s3 + $0xd4] sm:$0xf] %v1835
  %1900 = vst [vmem:[%s3 + $0xd8] sm:$0xf] %v1836
  %1901 = vst [vmem:[%s3 + $0xdc] sm:$0xf] %v1837
  %1902 = vst [vmem:[%s3 + $0xe0] sm:$0xf] %v1838
  %1903 = vst [vmem:[%s3 + $0xe4] sm:$0xf] %v1839
  %1904 = vst [vmem:[%s3 + $0xe8] sm:$0xf] %v1840
  %1905 = vst [vmem:[%s3 + $0xec] sm:$0xf] %v1841
  %1906 = vst [vmem:[%s3 + $0xf0] sm:$0xf] %v1842
  %1907 = vst [vmem:[%s3 + $0xf4] sm:$0xf] %v1843
  %1908 = vst [vmem:[%s3 + $0xf8] sm:$0xf] %v1844
  %1909 = vst [vmem:[%s3 + $0xfc] sm:$0xf] %v1845
  // Predicated region
  $region14: #{resnet_generator_forward.19} parent=0 // pred_check
    _
  $region15: #{resnet_generator_forward.19} parent=0 // pred_check_branch
    %1911 = sbr.rel (0) target = $region17
  $region16: #{resnet_generator_forward.19} parent=0 // pred_region
    _
  $region17: #{resnet_generator_forward.19} parent=0 // pred_fallthru
    _
  // Predicated region
  $region18: #{resnet_generator_forward.19} parent=0 // pred_check
    _
  $region19: #{resnet_generator_forward.19} parent=0 // pred_check_branch
    %1913 = sbr.rel (0) target = $region21
  $region20: #{resnet_generator_forward.19} parent=0 // pred_region
    _
  $region21: #{resnet_generator_forward.19} parent=0 // pred_fallthru
    _

</llo_original>
